<compile_context>
chip_gen: v5e
topology: v5e:2x2
jax: 0.10.0
libtpu: 0.0.40
codegen_flags: <defaults>
</compile_context>

<pallas_src>
import functools

import jax
import jax.numpy as jnp
import numpy as np
from jax.experimental import pallas as pl
from jax.experimental.pallas import tpu as pltpu


def _powersvd_iters_kernel(x_ref, pt_ref, q_ref, pt_out_ref, *, num_iters):
    """Run `num_iters` fused PowerSVD power iterations with x resident in VMEM.

    x_ref:      (bn, C, S)  bf16   activation block (S = H*W on the lane axis)
    pt_ref:     (bn, r, S)  f32    p carried transposed (lane-dense in S)
    q_ref:      (bn, C, r)  f32    q from the last iteration
    pt_out_ref: (bn, r, S)  f32    p^T after the last iteration
    """
    bn = x_ref.shape[0]
    # bn and num_iters are small static ints -> unrolled at trace time.
    for b in range(bn):
        x = x_ref[b]                       # (C, S) bf16, stays in VMEM
        pt = pt_ref[b]                     # (r, S) f32 carry
        q = None
        for _ in range(num_iters):
            # q = M @ p : contract S (last dim of both) -> (C, r).
            # x is the natural MXU LHS; f32 accumulation.
            q = jax.lax.dot_general(
                x, pt.astype(jnp.bfloat16),
                dimension_numbers=(((1,), (1,)), ((), ())),
                preferred_element_type=jnp.float32)
            # p^T = q^T @ M : contract C -> (r, S).
            # x is the natural MXU RHS (K=C first, S lane-dense output);
            # only the tiny (C, r) q is "transposed".
            pt = jax.lax.dot_general(
                q.astype(jnp.bfloat16), x,
                dimension_numbers=(((0,), (0,)), ((), ())),
                preferred_element_type=jnp.float32)
        q_ref[b] = q.astype(q_ref.dtype)
        pt_out_ref[b] = pt.astype(pt_out_ref.dtype)


def _pick_block_n(n, c, s, budget_bytes=4 * 1024 * 1024):
    """Largest batch block whose bf16 x tile fits `budget_bytes`, preferring to
    keep >= 2 grid steps so v7x can shard the batch axis across its 2 TCs.
    The budget keeps 2x (double buffer) x block + p/q tiles far below the
    32 MiB default scoped VMEM (and v7x's 64 MiB physical VMEM)."""
    per_elem = c * s * 2  # bf16 bytes per batch element
    fitting = [d for d in range(1, n + 1)
               if n % d == 0 and d * per_elem <= budget_bytes]
    if not fitting:
        # TODO(synk): for very large C*HW a single batch element exceeds the
        # budget; an S-tiled (reduction-axis) variant would be needed.
        return 1
    multi = [d for d in fitting if n // d >= 2]
    return max(multi) if multi else max(fitting)


def _powersvd_iters(x_mat, pt, *, num_iters):
    """x_mat: (N, C, S) bf16, pt: (N, r, S) f32.

    Runs `num_iters` fused power iterations (x read from HBM once).
    Returns (q, pt_new): q (N, C, r) f32 from the last iteration,
    pt_new (N, r, S) f32.
    """
    N, C, S = x_mat.shape
    r = pt.shape[1]
    bn = _pick_block_n(N, C, S)
    grid = (N // bn,)
    kernel = functools.partial(_powersvd_iters_kernel, num_iters=num_iters)
    flops = 4 * N * C * S * r * num_iters          # two matmuls per iteration
    bytes_accessed = N * C * S * 2 + 2 * N * r * S * 4 + N * C * r * 4
    q, pt_new = pl.pallas_call(
        kernel,
        out_shape=(jax.ShapeDtypeStruct((N, C, r), jnp.float32),
                   jax.ShapeDtypeStruct((N, r, S), jnp.float32)),
        grid_spec=pltpu.PrefetchScalarGridSpec(
            num_scalar_prefetch=0,
            grid=grid,
            in_specs=[pl.BlockSpec((bn, C, S), lambda b: (b, 0, 0)),
                      pl.BlockSpec((bn, r, S), lambda b: (b, 0, 0))],
            out_specs=[pl.BlockSpec((bn, C, r), lambda b: (b, 0, 0)),
                       pl.BlockSpec((bn, r, S), lambda b: (b, 0, 0))],
        ),
        compiler_params=pltpu.CompilerParams(
            dimension_semantics=("parallel",)),
        input_output_aliases={1: 1},   # p^T carry reuses its input HBM buffer
        cost_estimate=pl.CostEstimate(flops=flops, transcendentals=0,
                                      bytes_accessed=bytes_accessed),
    )(x_mat, pt)
    return q, pt_new


def _powersvd_forward(x, p0, *, n_iter):
    """PowerSVD(input, q_buffer, p_buffer, n_iter); returns (x, p, q)."""
    N, C, H, W = x.shape
    S = H * W
    # bf16 activation halves HBM traffic for the dominant operand; f32 acc.
    x_mat = x.reshape(N, C, S).astype(jnp.bfloat16)
    pt = jnp.swapaxes(p0, 1, 2)                    # (N, r, S) lane-dense carry
    if n_iter > 1:
        # All pre-QR iterations fused into a single kernel launch.
        _, pt = _powersvd_iters(x_mat, pt, num_iters=n_iter - 1)
    # TODO(synk): batched QR (torch.linalg.qr(...).Q) has no clean Pallas
    # equivalent; done with jnp.linalg.qr (XLA) on the small (N, S, r) p.
    pt = jnp.swapaxes(jnp.linalg.qr(jnp.swapaxes(pt, 1, 2))[0], 1, 2)
    # Final post-QR iteration produces the q/p that get sent.
    q, pt = _powersvd_iters(x_mat, pt, num_iters=1)
    p = jnp.swapaxes(pt, 1, 2)                     # back to (N, S, r) layout
    return x, p, q


class PowerSVDClientSendLayer:
    """JAX/Pallas port of the PyTorch PowerSVDClientSendLayer (forward only)."""

    def __init__(self, rank, shape, n_iter, key):
        N, C, H, W = (int(s) for s in shape)
        assert int(n_iter) >= 1
        kp, kq = jax.random.split(key)
        # torch.rand -> uniform [0, 1); deterministic synthetic init.
        self.p_buffer = jax.random.uniform(kp, (N, H * W, rank), jnp.float32)
        self.q_buffer = jax.random.uniform(kq, (N, C, rank), jnp.float32)
        self.iter = int(n_iter)
        self.rank = int(rank)
        self.shape = (N, C, H, W)
        self._forward = jax.jit(
            functools.partial(_powersvd_forward, n_iter=self.iter))

    def forward(self, x):
        out, p, q = self._forward(x, self.p_buffer)
        self.p_buffer = p
        self.q_buffer = q
        # TODO(synk): dist.isend(p/q, send_rank, group=pg) is a NCCL side
        # effect with no single-device equivalent; p and q are returned here.
        return out, p, q


# ----------------------------- reference check ------------------------------

def _round_bf16(a):
    """Round an array to bfloat16 (RTNE) and return it as float64."""
    rounded = jnp.asarray(a, jnp.float32).astype(jnp.bfloat16).astype(jnp.float32)
    return np.asarray(jax.device_get(rounded)).astype(np.float64)


def _reference(x, p0, n_iter):
    """Numpy reference of PowerSVD that mirrors the kernel's intentional bf16
    input quantization (accumulation kept in f64)."""
    N, C, H, W = x.shape
    m = _round_bf16(np.asarray(x).reshape(N, C, H * W))
    p = np.asarray(p0, dtype=np.float64)
    q = None
    for i in range(n_iter):
        if i == n_iter - 1:
            p = np.linalg.qr(p)[0]
        q = np.einsum('ncs,nsr->ncr', m, _round_bf16(p))
        p = np.einsum('ncs,ncr->nsr', m, _round_bf16(q))
    return p, q


if __name__ == "__main__":
    key = jax.random.PRNGKey(0)
    kx, kinit = jax.random.split(key)

    N, C, H, W = 2, 4, 16, 16
    rank, n_iter = 4, 2

    x = jax.random.normal(kx, (N, C, H, W), jnp.float32)
    layer = PowerSVDClientSendLayer(rank, (N, C, H, W), n_iter, kinit)
    p0 = layer.p_buffer

    out, p, q = layer.forward(x)
    jax.block_until_ready((out, p, q))

    # forward output must be the input, unchanged
    assert np.allclose(np.asarray(out), np.asarray(x))

    # check the compression buffers against the numpy reference
    p_ref, q_ref = _reference(np.asarray(x), np.asarray(p0), n_iter)
    p_err = np.max(np.abs(np.asarray(p) - p_ref)) / (np.max(np.abs(p_ref)) + 1e-6)
    q_err = np.max(np.abs(np.asarray(q) - q_ref)) / (np.max(np.abs(q_ref)) + 1e-6)
    assert p_err < 2e-2 and q_err < 2e-2, (p_err, q_err)

    print("KERNEL_OK")
</pallas_src>

<mosaic_0001>
module attributes {stable_mosaic.version = 11 : i64} {
  func.func @_powersvd_iters_kernel(%arg0: i32, %arg1: memref<1x4x256xbf16, #tpu.memory_space<vmem>>, %arg2: memref<1x4x256xf32, #tpu.memory_space<vmem>>, %arg3: memref<1x4x4xf32, #tpu.memory_space<vmem>>, %arg4: memref<1x4x256xf32, #tpu.memory_space<vmem>>) attributes {dimension_semantics = [#tpu.dimension_semantics<parallel>], iteration_bounds = array<i64: 2>, scalar_prefetch = 0 : i64, scratch_operands = 0 : i64, tpu.core_type = #tpu.core_type<tc>, window_params = [{transform_indices = @transform_0, window_bounds = array<i64: 1, 4, 256>}, {transform_indices = @transform_1, window_bounds = array<i64: 1, 4, 256>}, {transform_indices = @transform_2, window_bounds = array<i64: 1, 4, 4>}, {transform_indices = @transform_3, window_bounds = array<i64: 1, 4, 256>}]} {
    %c0 = arith.constant 0 : index
    %c0_0 = arith.constant 0 : index
    %c0_1 = arith.constant 0 : index
    %0 = vector.load %arg1[%c0, %c0_0, %c0_1] : memref<1x4x256xbf16, #tpu.memory_space<vmem>>, vector<1x4x256xbf16>
    %1 = vector.shape_cast %0 : vector<1x4x256xbf16> to vector<4x256xbf16>
    %c0_2 = arith.constant 0 : index
    %c0_3 = arith.constant 0 : index
    %c0_4 = arith.constant 0 : index
    %2 = vector.load %arg2[%c0_2, %c0_3, %c0_4] : memref<1x4x256xf32, #tpu.memory_space<vmem>>, vector<1x4x256xf32>
    %3 = vector.shape_cast %2 : vector<1x4x256xf32> to vector<4x256xf32>
    %4 = arith.truncf %3 : vector<4x256xf32> to vector<4x256xbf16>
    %cst = arith.constant dense<0.000000e+00> : vector<4x4xf32>
    %5 = tpu.matmul %1, %4, %cst {dimension_numbers = #tpu.dot_dimension_numbers<[1], [1], [0], [0], [0, 0, 1, 0], [], []>} : vector<4x256xbf16>, vector<4x256xbf16>, vector<4x4xf32> -> vector<4x4xf32>
    %6 = arith.truncf %5 : vector<4x4xf32> to vector<4x4xbf16>
    %cst_5 = arith.constant dense<0.000000e+00> : vector<4x256xf32>
    %7 = tpu.matmul %6, %1, %cst_5 {dimension_numbers = #tpu.dot_dimension_numbers<[0], [0], [1], [1], [0, 1, 1, 1], [], []>} : vector<4x4xbf16>, vector<4x256xbf16>, vector<4x256xf32> -> vector<4x256xf32>
    %c0_6 = arith.constant 0 : index
    %c0_7 = arith.constant 0 : index
    %c0_8 = arith.constant 0 : index
    %8 = vector.load %arg3[%c0_6, %c0_7, %c0_8] : memref<1x4x4xf32, #tpu.memory_space<vmem>>, vector<1x4x4xf32>
    %9 = vector.shape_cast %8 : vector<1x4x4xf32> to vector<4x4xf32>
    %10 = vector.shape_cast %5 : vector<4x4xf32> to vector<1x4x4xf32>
    tpu.vector_store %arg3[%c0_6, %c0_7, %c0_8], %10 {strides = array<i32>} : memref<1x4x4xf32, #tpu.memory_space<vmem>>, vector<1x4x4xf32>,
    %c0_9 = arith.constant 0 : index
    %c0_10 = arith.constant 0 : index
    %c0_11 = arith.constant 0 : index
    %11 = vector.load %arg4[%c0_9, %c0_10, %c0_11] : memref<1x4x256xf32, #tpu.memory_space<vmem>>, vector<1x4x256xf32>
    %12 = vector.shape_cast %11 : vector<1x4x256xf32> to vector<4x256xf32>
    %13 = vector.shape_cast %7 : vector<4x256xf32> to vector<1x4x256xf32>
    tpu.vector_store %arg4[%c0_9, %c0_10, %c0_11], %13 {strides = array<i32>} : memref<1x4x256xf32, #tpu.memory_space<vmem>>, vector<1x4x256xf32>,
    return
  }
  func.func @transform_0(%arg0: i32) -> (i32, i32, i32) {
    %c0_i32 = arith.constant 0 : i32
    %c0_i32_0 = arith.constant 0 : i32
    %c0_i32_1 = arith.constant 0 : i32
    return %arg0, %c0_i32, %c0_i32_0 : i32, i32, i32
  }
  func.func @transform_1(%arg0: i32) -> (i32, i32, i32) {
    %c0_i32 = arith.constant 0 : i32
    %c0_i32_0 = arith.constant 0 : i32
    %c0_i32_1 = arith.constant 0 : i32
    return %arg0, %c0_i32, %c0_i32_0 : i32, i32, i32
  }
  func.func @transform_2(%arg0: i32) -> (i32, i32, i32) {
    %c0_i32 = arith.constant 0 : i32
    %c0_i32_0 = arith.constant 0 : i32
    %c0_i32_1 = arith.constant 0 : i32
    return %arg0, %c0_i32, %c0_i32_0 : i32, i32, i32
  }
  func.func @transform_3(%arg0: i32) -> (i32, i32, i32) {
    %c0_i32 = arith.constant 0 : i32
    %c0_i32_0 = arith.constant 0 : i32
    %c0_i32_1 = arith.constant 0 : i32
    return %arg0, %c0_i32, %c0_i32_0 : i32, i32, i32
  }
}

</mosaic_0001>

<llo_original>
// kernel: custom-call.6
$region0: #{custom-call.6}
  %s0 = inlined_call_operand.vmem [shape: f32[2,256,4], index: 0, kind: input, shape index: {}]
  %s1 = inlined_call_operand.vmem [shape: f32[2,256,4], index: 1, kind: output, shape index: {0}]
  %s2 = inlined_call_operand.vmem [shape: f32[2,4], index: 2, kind: output, shape index: {1}]
  %3 = xla_tuple %s1, %s2
  $region1: #{custom-call.6} parent=0
    #allocation0 [shape = 'u8[262144]{0}', space=vmem, size = 0x40000, scoped, tag = 'operand span for operand 0']
    #allocation1 [shape = 'u8[262144]{0}', space=vmem, size = 0x40000, scoped, tag = 'operand span for operand 1']
    #allocation2 [shape = 'u8[4096]{0}', space=vmem, size = 0x1000, scoped, tag = 'operand span for operand 2']
    #allocation3 [shape = 'u8[2048]{0}', space=vmem, size = 0x800, scoped, tag = 'packed  for operand 2']
    loop: start=0, step=1, limit=4
    $region2: #{custom-call.6} parent=1 // loop_pre_header
      _
    $region3: #{custom-call.6} parent=1 // loop_header
      %s5 = sphi 0, %s9
      %p6 = scmp.ge.s32.totalorder %s5, 4
      %s12 = sphi 0, %s31
      %s13 = sphi 0, %s27
      %s14 = sphi 0, %s23
      %s15 = sphi 0, %s12
      %s16 = sphi 0, %s13
      %s17 = sphi 0, %s14
      %s18 = sphi 0, %s15
      %s19 = sphi 0, %s16
      %s20 = sphi 0, %s17
      %s46 = sphi 0, %s48
      %s49 = sphi 0, %s46
      %s50 = sphi 0, %s49
      %s66 = sphi 0, %s50
    $region4: #{custom-call.6} parent=1 // loop_header_branch
      %8 = sbr.rel (%p6) target = $region8
    $region5: #{custom-call.6} parent=1 // loop_body
      %s10 = ssub.s32 %s5, 1
      %s11 = ssub.s32 %s5, 2
      %s21 = sadd.s32 1, %s14
      %p22 = scmp.ge.s32.totalorder %s21, 1
      %s23 = scalar_select %p22, 0, %s21
      %s24 = sadd.s32 1, %s13
      %s25 = scalar_select %p22, %s24, %s13
      %p26 = scmp.ge.s32.totalorder %s25, 1
      %s27 = scalar_select %p26, 0, %s25
      %s28 = sadd.s32 1, %s12
      %s29 = scalar_select %p26, %s28, %s12
      %p30 = scmp.ge.s32.totalorder %s29, 2
      %s31 = scalar_select %p30, 0, %s29
      %p32 = scmp.lt.s32.totalorder %s12, 0
      %s33 = ssub.s32 0, %s12
      %s34 = scalar_select %p32, %s33, %s12
      %s35 = sshrl.u32 %s34, 3
      %s36 = ssub.s32 0, %s35
      %s37 = scalar_select %p32, %s36, %s35
      %p38 = scmp.lt.s32.totalorder %s31, 0
      %s39 = ssub.s32 0, %s31
      %s40 = scalar_select %p38, %s39, %s31
      %s41 = sshrl.u32 %s40, 3
      %s42 = ssub.s32 0, %s41
      %s43 = scalar_select %p38, %s42, %s41
      %s44 = ssub.s32 %s37, %s43
      %p45 = scmp.eq.s32.totalorder %s44, 0
      %s47 = sadd.s32 %s46, 1
      %s48 = scalar_select %p45, %s46, %s47
      %p51 = pneg %p45
      %p52 = scmp.eq.s32.totalorder %s5, 1
      %p53 = por %p51, %p52
      %p54 = scmp.ne.s32.totalorder %s46, %s49
      %p55 = scmp.eq.s32.totalorder %s5, 0
      %p56 = por %p54, %p55
      %p57 = scmp.ne.s32.totalorder %s46, %s49
      %p58 = scmp.eq.s32.totalorder %s10, 1
      %p59 = por %p57, %p58
      %p60 = scmp.ne.s32.totalorder %s49, %s50
      %p61 = scmp.eq.s32.totalorder %s10, 0
      %p62 = por %p60, %p61
      %p63 = scmp.ne.s32.totalorder %s49, %s50
      %p64 = scmp.eq.s32.totalorder %s11, 1
      %p65 = por %p63, %p64
      %p67 = scmp.ne.s32.totalorder %s50, %s66
      %p68 = scmp.eq.s32.totalorder %s11, 0
      %p69 = por %p67, %p68
      %p70 = scmp.le.s32.totalorder 1, %s5
      %p71 = scmp.lt.s32.totalorder %s5, 3
      %p72 = pnand %p70, %p71
      %p73 = pneg %p72
      // Predicated region
      $region9: #{custom-call.6} parent=5 // pred_check
        _
      $region10: #{custom-call.6} parent=5 // pred_check_branch
        %75 = sbr.rel (%p72) target = $region12
      $region11: #{custom-call.6} parent=5 // pred_region
        %s76 = ssub.s32 %s5, 1
      $region12: #{custom-call.6} parent=5 // pred_fallthru
        _
      %p77 = scmp.lt.s32.totalorder %s5, 2
      // Predicated region
      $region13: #{custom-call.6} parent=5 // pred_check
        %p78 = pneg %p77
      $region14: #{custom-call.6} parent=5 // pred_check_branch
        %80 = sbr.rel (%p78) target = $region16
      $region15: #{custom-call.6} parent=5 // pred_region
        %s81 = sand.u32 %s5, 1
        %s82 = sand.u32 %s5, 1
        %s83 = smul.addr %s82, 256
        %s84 = scalar_lea.vmem [#allocation0], %s83
        %s85 = smul.u32 32, %s13
        %s86 = sadd.s32 %s14, %s85
        %s87 = smul.addr %s12, 32
        %s88 = sadd.s32 %s86, %s87
        %s89 = smul.addr %s88, 8
        %s90 = scalar_lea.vmem %s0, %s89
        // Predicated region
        $region17: #{custom-call.6} parent=15 // pred_check
          _
        $region18: #{custom-call.6} parent=15 // pred_check_branch
          %92 = sbr.rel (0) target = $region20
        $region19: #{custom-call.6} parent=15 // pred_region
          // Predicated region
          $region21: #{custom-call.6} parent=19 // pred_check
            _
          $region22: #{custom-call.6} parent=19 // pred_check_branch
            %94 = sbr.rel (0) target = $region24
          $region23: #{custom-call.6} parent=19 // pred_region
            // Predicated region
            $region36: #{custom-call.6} parent=23 // pred_check
              _
            $region37: #{custom-call.6} parent=23 // pred_check_branch
              %172 = sbr.rel (0) target = $region39
            $region38: #{custom-call.6} parent=23 // pred_region
              loop: start=0, step=1, limit=1
              $region40: #{custom-call.6} parent=38 // loop_pre_header
                _
              $region41: #{custom-call.6} parent=38 // loop_header
                %s174 = sphi 0, %s178
                %p175 = scmp.ge.s32.totalorder %s174, 1
                %s179 = sphi %s90, %s90
                %s180 = sphi %s84, %s84
              $region42: #{custom-call.6} parent=38 // loop_header_branch
                %177 = sbr.rel (%p175) target = $region46
              $region43: #{custom-call.6} parent=38 // loop_body
                %v181 = vld [vmem:[%s179] sm:$0xff]
                %182 = vst [vmem:[%s180] sm:$0xff] %v181
                %v183 = vld [vmem:[%s179 + $0x8] sm:$0xff]
                %184 = vst [vmem:[%s180 + $0x8] sm:$0xff] %v183
                %v185 = vld [vmem:[%s179 + $0x10] sm:$0xff]
                %186 = vst [vmem:[%s180 + $0x10] sm:$0xff] %v185
                %v187 = vld [vmem:[%s179 + $0x18] sm:$0xff]
                %188 = vst [vmem:[%s180 + $0x18] sm:$0xff] %v187
                %v189 = vld [vmem:[%s179 + $0x20] sm:$0xff]
                %190 = vst [vmem:[%s180 + $0x20] sm:$0xff] %v189
                %v191 = vld [vmem:[%s179 + $0x28] sm:$0xff]
                %192 = vst [vmem:[%s180 + $0x28] sm:$0xff] %v191
                %v193 = vld [vmem:[%s179 + $0x30] sm:$0xff]
                %194 = vst [vmem:[%s180 + $0x30] sm:$0xff] %v193
                %v195 = vld [vmem:[%s179 + $0x38] sm:$0xff]
                %196 = vst [vmem:[%s180 + $0x38] sm:$0xff] %v195
                %v197 = vld [vmem:[%s179 + $0x40] sm:$0xff]
                %198 = vst [vmem:[%s180 + $0x40] sm:$0xff] %v197
                %v199 = vld [vmem:[%s179 + $0x48] sm:$0xff]
                %200 = vst [vmem:[%s180 + $0x48] sm:$0xff] %v199
                %v201 = vld [vmem:[%s179 + $0x50] sm:$0xff]
                %202 = vst [vmem:[%s180 + $0x50] sm:$0xff] %v201
                %v203 = vld [vmem:[%s179 + $0x58] sm:$0xff]
                %204 = vst [vmem:[%s180 + $0x58] sm:$0xff] %v203
                %v205 = vld [vmem:[%s179 + $0x60] sm:$0xff]
                %206 = vst [vmem:[%s180 + $0x60] sm:$0xff] %v205
                %v207 = vld [vmem:[%s179 + $0x68] sm:$0xff]
                %208 = vst [vmem:[%s180 + $0x68] sm:$0xff] %v207
                %v209 = vld [vmem:[%s179 + $0x70] sm:$0xff]
                %210 = vst [vmem:[%s180 + $0x70] sm:$0xff] %v209
                %v211 = vld [vmem:[%s179 + $0x78] sm:$0xff]
                %212 = vst [vmem:[%s180 + $0x78] sm:$0xff] %v211
                %v213 = vld [vmem:[%s179 + $0x80] sm:$0xff]
                %214 = vst [vmem:[%s180 + $0x80] sm:$0xff] %v213
                %v215 = vld [vmem:[%s179 + $0x88] sm:$0xff]
                %216 = vst [vmem:[%s180 + $0x88] sm:$0xff] %v215
                %v217 = vld [vmem:[%s179 + $0x90] sm:$0xff]
                %218 = vst [vmem:[%s180 + $0x90] sm:$0xff] %v217
                %v219 = vld [vmem:[%s179 + $0x98] sm:$0xff]
                %220 = vst [vmem:[%s180 + $0x98] sm:$0xff] %v219
                %v221 = vld [vmem:[%s179 + $0xa0] sm:$0xff]
                %222 = vst [vmem:[%s180 + $0xa0] sm:$0xff] %v221
                %v223 = vld [vmem:[%s179 + $0xa8] sm:$0xff]
                %224 = vst [vmem:[%s180 + $0xa8] sm:$0xff] %v223
                %v225 = vld [vmem:[%s179 + $0xb0] sm:$0xff]
                %226 = vst [vmem:[%s180 + $0xb0] sm:$0xff] %v225
                %v227 = vld [vmem:[%s179 + $0xb8] sm:$0xff]
                %228 = vst [vmem:[%s180 + $0xb8] sm:$0xff] %v227
                %v229 = vld [vmem:[%s179 + $0xc0] sm:$0xff]
                %230 = vst [vmem:[%s180 + $0xc0] sm:$0xff] %v229
                %v231 = vld [vmem:[%s179 + $0xc8] sm:$0xff]
                %232 = vst [vmem:[%s180 + $0xc8] sm:$0xff] %v231
                %v233 = vld [vmem:[%s179 + $0xd0] sm:$0xff]
                %234 = vst [vmem:[%s180 + $0xd0] sm:$0xff] %v233
                %v235 = vld [vmem:[%s179 + $0xd8] sm:$0xff]
                %236 = vst [vmem:[%s180 + $0xd8] sm:$0xff] %v235
                %v237 = vld [vmem:[%s179 + $0xe0] sm:$0xff]
                %238 = vst [vmem:[%s180 + $0xe0] sm:$0xff] %v237
                %v239 = vld [vmem:[%s179 + $0xe8] sm:$0xff]
                %240 = vst [vmem:[%s180 + $0xe8] sm:$0xff] %v239
                %v241 = vld [vmem:[%s179 + $0xf0] sm:$0xff]
                %242 = vst [vmem:[%s180 + $0xf0] sm:$0xff] %v241
                %v243 = vld [vmem:[%s179 + $0xf8] sm:$0xff]
                %244 = vst [vmem:[%s180 + $0xf8] sm:$0xff] %v243
              $region44: #{custom-call.6} parent=38 // loop_footer
                %s178 = sadd.s32 1, %s174
              $region45: #{custom-call.6} parent=38 // loop_footer_branch
                %173 = sbr.rel target = $region41
              $region46: #{custom-call.6} parent=38 // loop_exit
                _
            $region39: #{custom-call.6} parent=23 // pred_fallthru
              _
            // Predicated region
            $region47: #{custom-call.6} parent=23 // pred_check
              _
            $region48: #{custom-call.6} parent=23 // pred_check_branch
              %246 = sbr.rel target = $region50
            $region49: #{custom-call.6} parent=23 // pred_region
              _
            $region50: #{custom-call.6} parent=23 // pred_fallthru
              _
          $region24: #{custom-call.6} parent=19 // pred_fallthru
            _
          // Predicated region
          $region25: #{custom-call.6} parent=19 // pred_check
            _
          $region26: #{custom-call.6} parent=19 // pred_check_branch
            %96 = sbr.rel target = $region28
          $region27: #{custom-call.6} parent=19 // pred_region
            %s98 = ssub.s32 256, 1
            loop: start=0, step=1, limit=1
            $region29: #{custom-call.6} parent=27 // loop_pre_header
              _
            $region30: #{custom-call.6} parent=27 // loop_header
              %s100 = sphi 0, %s104
              %p101 = scmp.ge.s32.totalorder %s100, 1
              %s105 = sphi %s90, %s90
              %s106 = sphi %s84, %s84
            $region31: #{custom-call.6} parent=27 // loop_header_branch
              %103 = sbr.rel (%p101) target = $region35
            $region32: #{custom-call.6} parent=27 // loop_body
              %v107 = vld [vmem:[%s105] sm:%s98]
              %108 = vst [vmem:[%s106] sm:%s98] %v107
              %v109 = vld [vmem:[%s105 + $0x8] sm:%s98]
              %110 = vst [vmem:[%s106 + $0x8] sm:%s98] %v109
              %v111 = vld [vmem:[%s105 + $0x10] sm:%s98]
              %112 = vst [vmem:[%s106 + $0x10] sm:%s98] %v111
              %v113 = vld [vmem:[%s105 + $0x18] sm:%s98]
              %114 = vst [vmem:[%s106 + $0x18] sm:%s98] %v113
              %v115 = vld [vmem:[%s105 + $0x20] sm:%s98]
              %116 = vst [vmem:[%s106 + $0x20] sm:%s98] %v115
              %v117 = vld [vmem:[%s105 + $0x28] sm:%s98]
              %118 = vst [vmem:[%s106 + $0x28] sm:%s98] %v117
              %v119 = vld [vmem:[%s105 + $0x30] sm:%s98]
              %120 = vst [vmem:[%s106 + $0x30] sm:%s98] %v119
              %v121 = vld [vmem:[%s105 + $0x38] sm:%s98]
              %122 = vst [vmem:[%s106 + $0x38] sm:%s98] %v121
              %v123 = vld [vmem:[%s105 + $0x40] sm:%s98]
              %124 = vst [vmem:[%s106 + $0x40] sm:%s98] %v123
              %v125 = vld [vmem:[%s105 + $0x48] sm:%s98]
              %126 = vst [vmem:[%s106 + $0x48] sm:%s98] %v125
              %v127 = vld [vmem:[%s105 + $0x50] sm:%s98]
              %128 = vst [vmem:[%s106 + $0x50] sm:%s98] %v127
              %v129 = vld [vmem:[%s105 + $0x58] sm:%s98]
              %130 = vst [vmem:[%s106 + $0x58] sm:%s98] %v129
              %v131 = vld [vmem:[%s105 + $0x60] sm:%s98]
              %132 = vst [vmem:[%s106 + $0x60] sm:%s98] %v131
              %v133 = vld [vmem:[%s105 + $0x68] sm:%s98]
              %134 = vst [vmem:[%s106 + $0x68] sm:%s98] %v133
              %v135 = vld [vmem:[%s105 + $0x70] sm:%s98]
              %136 = vst [vmem:[%s106 + $0x70] sm:%s98] %v135
              %v137 = vld [vmem:[%s105 + $0x78] sm:%s98]
              %138 = vst [vmem:[%s106 + $0x78] sm:%s98] %v137
              %v139 = vld [vmem:[%s105 + $0x80] sm:%s98]
              %140 = vst [vmem:[%s106 + $0x80] sm:%s98] %v139
              %v141 = vld [vmem:[%s105 + $0x88] sm:%s98]
              %142 = vst [vmem:[%s106 + $0x88] sm:%s98] %v141
              %v143 = vld [vmem:[%s105 + $0x90] sm:%s98]
              %144 = vst [vmem:[%s106 + $0x90] sm:%s98] %v143
              %v145 = vld [vmem:[%s105 + $0x98] sm:%s98]
              %146 = vst [vmem:[%s106 + $0x98] sm:%s98] %v145
              %v147 = vld [vmem:[%s105 + $0xa0] sm:%s98]
              %148 = vst [vmem:[%s106 + $0xa0] sm:%s98] %v147
              %v149 = vld [vmem:[%s105 + $0xa8] sm:%s98]
              %150 = vst [vmem:[%s106 + $0xa8] sm:%s98] %v149
              %v151 = vld [vmem:[%s105 + $0xb0] sm:%s98]
              %152 = vst [vmem:[%s106 + $0xb0] sm:%s98] %v151
              %v153 = vld [vmem:[%s105 + $0xb8] sm:%s98]
              %154 = vst [vmem:[%s106 + $0xb8] sm:%s98] %v153
              %v155 = vld [vmem:[%s105 + $0xc0] sm:%s98]
              %156 = vst [vmem:[%s106 + $0xc0] sm:%s98] %v155
              %v157 = vld [vmem:[%s105 + $0xc8] sm:%s98]
              %158 = vst [vmem:[%s106 + $0xc8] sm:%s98] %v157
              %v159 = vld [vmem:[%s105 + $0xd0] sm:%s98]
              %160 = vst [vmem:[%s106 + $0xd0] sm:%s98] %v159
              %v161 = vld [vmem:[%s105 + $0xd8] sm:%s98]
              %162 = vst [vmem:[%s106 + $0xd8] sm:%s98] %v161
              %v163 = vld [vmem:[%s105 + $0xe0] sm:%s98]
              %164 = vst [vmem:[%s106 + $0xe0] sm:%s98] %v163
              %v165 = vld [vmem:[%s105 + $0xe8] sm:%s98]
              %166 = vst [vmem:[%s106 + $0xe8] sm:%s98] %v165
              %v167 = vld [vmem:[%s105 + $0xf0] sm:%s98]
              %168 = vst [vmem:[%s106 + $0xf0] sm:%s98] %v167
              %v169 = vld [vmem:[%s105 + $0xf8] sm:%s98]
              %170 = vst [vmem:[%s106 + $0xf8] sm:%s98] %v169
            $region33: #{custom-call.6} parent=27 // loop_footer
              %s104 = sadd.s32 1, %s100
            $region34: #{custom-call.6} parent=27 // loop_footer_branch
              %99 = sbr.rel target = $region30
            $region35: #{custom-call.6} parent=27 // loop_exit
              _
          $region28: #{custom-call.6} parent=19 // pred_fallthru
            _
        $region20: #{custom-call.6} parent=15 // pred_fallthru
          _
        %247 = vnop
      $region16: #{custom-call.6} parent=5 // pred_fallthru
        _
      %p248 = scmp.le.s32.totalorder 1, %s5
      %p249 = scmp.lt.s32.totalorder %s5, 3
      %p250 = pnand %p248, %p249
      %p251 = pneg %p250
      // Predicated region
      $region51: #{custom-call.6} parent=5 // pred_check
        _
      $region52: #{custom-call.6} parent=5 // pred_check_branch
        %253 = sbr.rel (%p250) target = $region54
      $region53: #{custom-call.6} parent=5 // pred_region
        #allocation4 [shape = 'f32[256,128]{1,0}', space=vmem, size = 0x20000, scoped, tag = 'scratch for Householder reflectors']
        %s254 = ssub.s32 %s5, 1
        %s255 = sand.u32 %s10, 1
        %s256 = sand.u32 %s10, 1
        %s257 = smul.addr %s256, 256
        %s258 = scalar_lea.vmem [#allocation0], %s257
        %s259 = sand.u32 %s10, 1
        %s260 = sand.u32 %s10, 1
        %s261 = smul.addr %s260, 256
        %s262 = scalar_lea.vmem [#allocation0], %s261
        %s263 = sand.u32 %s10, 1
        %s264 = sand.u32 %s10, 1
        %s265 = smul.addr %s264, 256
        %s266 = scalar_lea.vmem [#allocation1], %s265
        %p267 = pneg %p62
        %p268 = pneg %p59
        %s269 = sand.u32 %s49, 1
        %s270 = sand.u32 %s49, 1
        %s271 = smul.addr %s270, 2
        %s272 = scalar_lea.vmem [#allocation3], %s271
        %s273 = smul.u32 32, %s16
        %s274 = smul.u32 32, %s16
        %p275 = scmp.lt.s32.totalorder %s15, 0
        %s276 = ssub.s32 0, %s15
        %s277 = scalar_select %p275, %s276, %s15
        %s278 = sshrl.u32 %s277, 3
        %s279 = ssub.s32 0, %s278
        %s280 = scalar_select %p275, %s279, %s278
        %s281 = sand.u32 %s15, 7
        %s282 = scalar_lea.vmem [#allocation2], %s281
        %v283 = vld [vmem:[%s258] sm:$0xff]
        %284 = vst [vmem:[%s266] sm:$0xff] %v283
        %s285 = scalar_lea.vmem %s266, 8 [#allocation1]
        %s286 = scalar_lea.vmem %s258, 8 [#allocation0]
        %v287 = vld [vmem:[%s286] sm:$0xff]
        %288 = vst [vmem:[%s285] sm:$0xff] %v287
        %s289 = scalar_lea.vmem %s266, 16 [#allocation1]
        %s290 = scalar_lea.vmem %s258, 16 [#allocation0]
        %v291 = vld [vmem:[%s290] sm:$0xff]
        %292 = vst [vmem:[%s289] sm:$0xff] %v291
        %s293 = scalar_lea.vmem %s266, 24 [#allocation1]
        %s294 = scalar_lea.vmem %s258, 24 [#allocation0]
        %v295 = vld [vmem:[%s294] sm:$0xff]
        %296 = vst [vmem:[%s293] sm:$0xff] %v295
        %s297 = scalar_lea.vmem %s266, 32 [#allocation1]
        %s298 = scalar_lea.vmem %s258, 32 [#allocation0]
        %v299 = vld [vmem:[%s298] sm:$0xff]
        %300 = vst [vmem:[%s297] sm:$0xff] %v299
        %s301 = scalar_lea.vmem %s266, 40 [#allocation1]
        %s302 = scalar_lea.vmem %s258, 40 [#allocation0]
        %v303 = vld [vmem:[%s302] sm:$0xff]
        %304 = vst [vmem:[%s301] sm:$0xff] %v303
        %s305 = scalar_lea.vmem %s266, 48 [#allocation1]
        %s306 = scalar_lea.vmem %s258, 48 [#allocation0]
        %v307 = vld [vmem:[%s306] sm:$0xff]
        %308 = vst [vmem:[%s305] sm:$0xff] %v307
        %s309 = scalar_lea.vmem %s266, 56 [#allocation1]
        %s310 = scalar_lea.vmem %s258, 56 [#allocation0]
        %v311 = vld [vmem:[%s310] sm:$0xff]
        %312 = vst [vmem:[%s309] sm:$0xff] %v311
        %s313 = scalar_lea.vmem %s266, 64 [#allocation1]
        %s314 = scalar_lea.vmem %s258, 64 [#allocation0]
        %v315 = vld [vmem:[%s314] sm:$0xff]
        %316 = vst [vmem:[%s313] sm:$0xff] %v315
        %s317 = scalar_lea.vmem %s266, 72 [#allocation1]
        %s318 = scalar_lea.vmem %s258, 72 [#allocation0]
        %v319 = vld [vmem:[%s318] sm:$0xff]
        %320 = vst [vmem:[%s317] sm:$0xff] %v319
        %s321 = scalar_lea.vmem %s266, 80 [#allocation1]
        %s322 = scalar_lea.vmem %s258, 80 [#allocation0]
        %v323 = vld [vmem:[%s322] sm:$0xff]
        %324 = vst [vmem:[%s321] sm:$0xff] %v323
        %s325 = scalar_lea.vmem %s266, 88 [#allocation1]
        %s326 = scalar_lea.vmem %s258, 88 [#allocation0]
        %v327 = vld [vmem:[%s326] sm:$0xff]
        %328 = vst [vmem:[%s325] sm:$0xff] %v327
        %s329 = scalar_lea.vmem %s266, 96 [#allocation1]
        %s330 = scalar_lea.vmem %s258, 96 [#allocation0]
        %v331 = vld [vmem:[%s330] sm:$0xff]
        %332 = vst [vmem:[%s329] sm:$0xff] %v331
        %s333 = scalar_lea.vmem %s266, 104 [#allocation1]
        %s334 = scalar_lea.vmem %s258, 104 [#allocation0]
        %v335 = vld [vmem:[%s334] sm:$0xff]
        %336 = vst [vmem:[%s333] sm:$0xff] %v335
        %s337 = scalar_lea.vmem %s266, 112 [#allocation1]
        %s338 = scalar_lea.vmem %s258, 112 [#allocation0]
        %v339 = vld [vmem:[%s338] sm:$0xff]
        %340 = vst [vmem:[%s337] sm:$0xff] %v339
        %s341 = scalar_lea.vmem %s266, 120 [#allocation1]
        %s342 = scalar_lea.vmem %s258, 120 [#allocation0]
        %v343 = vld [vmem:[%s342] sm:$0xff]
        %344 = vst [vmem:[%s341] sm:$0xff] %v343
        %s345 = scalar_lea.vmem %s266, 128 [#allocation1]
        %s346 = scalar_lea.vmem %s258, 128 [#allocation0]
        %v347 = vld [vmem:[%s346] sm:$0xff]
        %348 = vst [vmem:[%s345] sm:$0xff] %v347
        %s349 = scalar_lea.vmem %s266, 136 [#allocation1]
        %s350 = scalar_lea.vmem %s258, 136 [#allocation0]
        %v351 = vld [vmem:[%s350] sm:$0xff]
        %352 = vst [vmem:[%s349] sm:$0xff] %v351
        %s353 = scalar_lea.vmem %s266, 144 [#allocation1]
        %s354 = scalar_lea.vmem %s258, 144 [#allocation0]
        %v355 = vld [vmem:[%s354] sm:$0xff]
        %356 = vst [vmem:[%s353] sm:$0xff] %v355
        %s357 = scalar_lea.vmem %s266, 152 [#allocation1]
        %s358 = scalar_lea.vmem %s258, 152 [#allocation0]
        %v359 = vld [vmem:[%s358] sm:$0xff]
        %360 = vst [vmem:[%s357] sm:$0xff] %v359
        %s361 = scalar_lea.vmem %s266, 160 [#allocation1]
        %s362 = scalar_lea.vmem %s258, 160 [#allocation0]
        %v363 = vld [vmem:[%s362] sm:$0xff]
        %364 = vst [vmem:[%s361] sm:$0xff] %v363
        %s365 = scalar_lea.vmem %s266, 168 [#allocation1]
        %s366 = scalar_lea.vmem %s258, 168 [#allocation0]
        %v367 = vld [vmem:[%s366] sm:$0xff]
        %368 = vst [vmem:[%s365] sm:$0xff] %v367
        %s369 = scalar_lea.vmem %s266, 176 [#allocation1]
        %s370 = scalar_lea.vmem %s258, 176 [#allocation0]
        %v371 = vld [vmem:[%s370] sm:$0xff]
        %372 = vst [vmem:[%s369] sm:$0xff] %v371
        %s373 = scalar_lea.vmem %s266, 184 [#allocation1]
        %s374 = scalar_lea.vmem %s258, 184 [#allocation0]
        %v375 = vld [vmem:[%s374] sm:$0xff]
        %376 = vst [vmem:[%s373] sm:$0xff] %v375
        %s377 = scalar_lea.vmem %s266, 192 [#allocation1]
        %s378 = scalar_lea.vmem %s258, 192 [#allocation0]
        %v379 = vld [vmem:[%s378] sm:$0xff]
        %380 = vst [vmem:[%s377] sm:$0xff] %v379
        %s381 = scalar_lea.vmem %s266, 200 [#allocation1]
        %s382 = scalar_lea.vmem %s258, 200 [#allocation0]
        %v383 = vld [vmem:[%s382] sm:$0xff]
        %384 = vst [vmem:[%s381] sm:$0xff] %v383
        %s385 = scalar_lea.vmem %s266, 208 [#allocation1]
        %s386 = scalar_lea.vmem %s258, 208 [#allocation0]
        %v387 = vld [vmem:[%s386] sm:$0xff]
        %388 = vst [vmem:[%s385] sm:$0xff] %v387
        %s389 = scalar_lea.vmem %s266, 216 [#allocation1]
        %s390 = scalar_lea.vmem %s258, 216 [#allocation0]
        %v391 = vld [vmem:[%s390] sm:$0xff]
        %392 = vst [vmem:[%s389] sm:$0xff] %v391
        %s393 = scalar_lea.vmem %s266, 224 [#allocation1]
        %s394 = scalar_lea.vmem %s258, 224 [#allocation0]
        %v395 = vld [vmem:[%s394] sm:$0xff]
        %396 = vst [vmem:[%s393] sm:$0xff] %v395
        %s397 = scalar_lea.vmem %s266, 232 [#allocation1]
        %s398 = scalar_lea.vmem %s258, 232 [#allocation0]
        %v399 = vld [vmem:[%s398] sm:$0xff]
        %400 = vst [vmem:[%s397] sm:$0xff] %v399
        %s401 = scalar_lea.vmem %s266, 240 [#allocation1]
        %s402 = scalar_lea.vmem %s258, 240 [#allocation0]
        %v403 = vld [vmem:[%s402] sm:$0xff]
        %404 = vst [vmem:[%s401] sm:$0xff] %v403
        %s405 = scalar_lea.vmem %s266, 248 [#allocation1]
        %s406 = scalar_lea.vmem %s258, 248 [#allocation0]
        %v407 = vld [vmem:[%s406] sm:$0xff]
        %408 = vst [vmem:[%s405] sm:$0xff] %v407
        %409 = vst [vmem:[%s282] sm:$0x1] 0.0
        loop: start=0, step=1, limit=4
        $region55: #{custom-call.6} parent=53 // loop_pre_header
          _
        $region56: #{custom-call.6} parent=53 // loop_header
          %s411 = sphi 0, %s415
          %p412 = scmp.ge.s32.totalorder %s411, 4
        $region57: #{custom-call.6} parent=53 // loop_header_branch
          %414 = sbr.rel (%p412) target = $region61
        $region58: #{custom-call.6} parent=53 // loop_body
          %v416 = vld [vmem:[%s266] sm:$0xff]
          %v417 = vlaneseq
          %v418 = vshrl.u32 %v417, 7
          %v420 = vstv %s411
          %vm421 = vcmp.gt.s32.totalorder %v418, %v420
          %v422 = vsel %vm421, %v416, 0.0
          %v423 = vmul.f32 %v422, %v422
          %s424 = scalar_lea.vmem %s266, 8 [#allocation1]
          %v425 = vld [vmem:[%s424] sm:$0xff]
          %v426 = vlaneseq
          %v427 = vshrl.u32 %v426, 7
          %v428 = vadd.s32 %v427, 8
          %v429 = vstv %s411
          %vm430 = vcmp.gt.s32.totalorder %v428, %v429
          %v431 = vsel %vm430, %v425, 0.0
          %v432 = vmul.f32 %v431, %v431
          %v433 = vadd.f32 %v423, %v432
          %s434 = scalar_lea.vmem %s266, 16 [#allocation1]
          %v435 = vld [vmem:[%s434] sm:$0xff]
          %v436 = vlaneseq
          %v437 = vshrl.u32 %v436, 7
          %v438 = vadd.s32 %v437, 16
          %v439 = vstv %s411
          %vm440 = vcmp.gt.s32.totalorder %v438, %v439
          %v441 = vsel %vm440, %v435, 0.0
          %v442 = vmul.f32 %v441, %v441
          %v443 = vadd.f32 %v433, %v442
          %s444 = scalar_lea.vmem %s266, 24 [#allocation1]
          %v445 = vld [vmem:[%s444] sm:$0xff]
          %v446 = vlaneseq
          %v447 = vshrl.u32 %v446, 7
          %v448 = vadd.s32 %v447, 24
          %v449 = vstv %s411
          %vm450 = vcmp.gt.s32.totalorder %v448, %v449
          %v451 = vsel %vm450, %v445, 0.0
          %v452 = vmul.f32 %v451, %v451
          %v453 = vadd.f32 %v443, %v452
          %s454 = scalar_lea.vmem %s266, 32 [#allocation1]
          %v455 = vld [vmem:[%s454] sm:$0xff]
          %v456 = vlaneseq
          %v457 = vshrl.u32 %v456, 7
          %v458 = vadd.s32 %v457, 32
          %v459 = vstv %s411
          %vm460 = vcmp.gt.s32.totalorder %v458, %v459
          %v461 = vsel %vm460, %v455, 0.0
          %v462 = vmul.f32 %v461, %v461
          %v463 = vadd.f32 %v453, %v462
          %s464 = scalar_lea.vmem %s266, 40 [#allocation1]
          %v465 = vld [vmem:[%s464] sm:$0xff]
          %v466 = vlaneseq
          %v467 = vshrl.u32 %v466, 7
          %v468 = vadd.s32 %v467, 40
          %v469 = vstv %s411
          %vm470 = vcmp.gt.s32.totalorder %v468, %v469
          %v471 = vsel %vm470, %v465, 0.0
          %v472 = vmul.f32 %v471, %v471
          %v473 = vadd.f32 %v463, %v472
          %s474 = scalar_lea.vmem %s266, 48 [#allocation1]
          %v475 = vld [vmem:[%s474] sm:$0xff]
          %v476 = vlaneseq
          %v477 = vshrl.u32 %v476, 7
          %v478 = vadd.s32 %v477, 48
          %v479 = vstv %s411
          %vm480 = vcmp.gt.s32.totalorder %v478, %v479
          %v481 = vsel %vm480, %v475, 0.0
          %v482 = vmul.f32 %v481, %v481
          %v483 = vadd.f32 %v473, %v482
          %s484 = scalar_lea.vmem %s266, 56 [#allocation1]
          %v485 = vld [vmem:[%s484] sm:$0xff]
          %v486 = vlaneseq
          %v487 = vshrl.u32 %v486, 7
          %v488 = vadd.s32 %v487, 56
          %v489 = vstv %s411
          %vm490 = vcmp.gt.s32.totalorder %v488, %v489
          %v491 = vsel %vm490, %v485, 0.0
          %v492 = vmul.f32 %v491, %v491
          %v493 = vadd.f32 %v483, %v492
          %s494 = scalar_lea.vmem %s266, 64 [#allocation1]
          %v495 = vld [vmem:[%s494] sm:$0xff]
          %v496 = vlaneseq
          %v497 = vshrl.u32 %v496, 7
          %v498 = vadd.s32 %v497, 64
          %v499 = vstv %s411
          %vm500 = vcmp.gt.s32.totalorder %v498, %v499
          %v501 = vsel %vm500, %v495, 0.0
          %v502 = vmul.f32 %v501, %v501
          %v503 = vadd.f32 %v493, %v502
          %s504 = scalar_lea.vmem %s266, 72 [#allocation1]
          %v505 = vld [vmem:[%s504] sm:$0xff]
          %v506 = vlaneseq
          %v507 = vshrl.u32 %v506, 7
          %v508 = vadd.s32 %v507, 72
          %v509 = vstv %s411
          %vm510 = vcmp.gt.s32.totalorder %v508, %v509
          %v511 = vsel %vm510, %v505, 0.0
          %v512 = vmul.f32 %v511, %v511
          %v513 = vadd.f32 %v503, %v512
          %s514 = scalar_lea.vmem %s266, 80 [#allocation1]
          %v515 = vld [vmem:[%s514] sm:$0xff]
          %v516 = vlaneseq
          %v517 = vshrl.u32 %v516, 7
          %v518 = vadd.s32 %v517, 80
          %v519 = vstv %s411
          %vm520 = vcmp.gt.s32.totalorder %v518, %v519
          %v521 = vsel %vm520, %v515, 0.0
          %v522 = vmul.f32 %v521, %v521
          %v523 = vadd.f32 %v513, %v522
          %s524 = scalar_lea.vmem %s266, 88 [#allocation1]
          %v525 = vld [vmem:[%s524] sm:$0xff]
          %v526 = vlaneseq
          %v527 = vshrl.u32 %v526, 7
          %v528 = vadd.s32 %v527, 88
          %v529 = vstv %s411
          %vm530 = vcmp.gt.s32.totalorder %v528, %v529
          %v531 = vsel %vm530, %v525, 0.0
          %v532 = vmul.f32 %v531, %v531
          %v533 = vadd.f32 %v523, %v532
          %s534 = scalar_lea.vmem %s266, 96 [#allocation1]
          %v535 = vld [vmem:[%s534] sm:$0xff]
          %v536 = vlaneseq
          %v537 = vshrl.u32 %v536, 7
          %v538 = vadd.s32 %v537, 96
          %v539 = vstv %s411
          %vm540 = vcmp.gt.s32.totalorder %v538, %v539
          %v541 = vsel %vm540, %v535, 0.0
          %v542 = vmul.f32 %v541, %v541
          %v543 = vadd.f32 %v533, %v542
          %s544 = scalar_lea.vmem %s266, 104 [#allocation1]
          %v545 = vld [vmem:[%s544] sm:$0xff]
          %v546 = vlaneseq
          %v547 = vshrl.u32 %v546, 7
          %v548 = vadd.s32 %v547, 104
          %v549 = vstv %s411
          %vm550 = vcmp.gt.s32.totalorder %v548, %v549
          %v551 = vsel %vm550, %v545, 0.0
          %v552 = vmul.f32 %v551, %v551
          %v553 = vadd.f32 %v543, %v552
          %s554 = scalar_lea.vmem %s266, 112 [#allocation1]
          %v555 = vld [vmem:[%s554] sm:$0xff]
          %v556 = vlaneseq
          %v557 = vshrl.u32 %v556, 7
          %v558 = vadd.s32 %v557, 112
          %v559 = vstv %s411
          %vm560 = vcmp.gt.s32.totalorder %v558, %v559
          %v561 = vsel %vm560, %v555, 0.0
          %v562 = vmul.f32 %v561, %v561
          %v563 = vadd.f32 %v553, %v562
          %s564 = scalar_lea.vmem %s266, 120 [#allocation1]
          %v565 = vld [vmem:[%s564] sm:$0xff]
          %v566 = vlaneseq
          %v567 = vshrl.u32 %v566, 7
          %v568 = vadd.s32 %v567, 120
          %v569 = vstv %s411
          %vm570 = vcmp.gt.s32.totalorder %v568, %v569
          %v571 = vsel %vm570, %v565, 0.0
          %v572 = vmul.f32 %v571, %v571
          %v573 = vadd.f32 %v563, %v572
          %s574 = scalar_lea.vmem %s266, 128 [#allocation1]
          %v575 = vld [vmem:[%s574] sm:$0xff]
          %v576 = vlaneseq
          %v577 = vshrl.u32 %v576, 7
          %v578 = vadd.s32 %v577, 128
          %v579 = vstv %s411
          %vm580 = vcmp.gt.s32.totalorder %v578, %v579
          %v581 = vsel %vm580, %v575, 0.0
          %v582 = vmul.f32 %v581, %v581
          %v583 = vadd.f32 %v573, %v582
          %s584 = scalar_lea.vmem %s266, 136 [#allocation1]
          %v585 = vld [vmem:[%s584] sm:$0xff]
          %v586 = vlaneseq
          %v587 = vshrl.u32 %v586, 7
          %v588 = vadd.s32 %v587, 136
          %v589 = vstv %s411
          %vm590 = vcmp.gt.s32.totalorder %v588, %v589
          %v591 = vsel %vm590, %v585, 0.0
          %v592 = vmul.f32 %v591, %v591
          %v593 = vadd.f32 %v583, %v592
          %s594 = scalar_lea.vmem %s266, 144 [#allocation1]
          %v595 = vld [vmem:[%s594] sm:$0xff]
          %v596 = vlaneseq
          %v597 = vshrl.u32 %v596, 7
          %v598 = vadd.s32 %v597, 144
          %v599 = vstv %s411
          %vm600 = vcmp.gt.s32.totalorder %v598, %v599
          %v601 = vsel %vm600, %v595, 0.0
          %v602 = vmul.f32 %v601, %v601
          %v603 = vadd.f32 %v593, %v602
          %s604 = scalar_lea.vmem %s266, 152 [#allocation1]
          %v605 = vld [vmem:[%s604] sm:$0xff]
          %v606 = vlaneseq
          %v607 = vshrl.u32 %v606, 7
          %v608 = vadd.s32 %v607, 152
          %v609 = vstv %s411
          %vm610 = vcmp.gt.s32.totalorder %v608, %v609
          %v611 = vsel %vm610, %v605, 0.0
          %v612 = vmul.f32 %v611, %v611
          %v613 = vadd.f32 %v603, %v612
          %s614 = scalar_lea.vmem %s266, 160 [#allocation1]
          %v615 = vld [vmem:[%s614] sm:$0xff]
          %v616 = vlaneseq
          %v617 = vshrl.u32 %v616, 7
          %v618 = vadd.s32 %v617, 160
          %v619 = vstv %s411
          %vm620 = vcmp.gt.s32.totalorder %v618, %v619
          %v621 = vsel %vm620, %v615, 0.0
          %v622 = vmul.f32 %v621, %v621
          %v623 = vadd.f32 %v613, %v622
          %s624 = scalar_lea.vmem %s266, 168 [#allocation1]
          %v625 = vld [vmem:[%s624] sm:$0xff]
          %v626 = vlaneseq
          %v627 = vshrl.u32 %v626, 7
          %v628 = vadd.s32 %v627, 168
          %v629 = vstv %s411
          %vm630 = vcmp.gt.s32.totalorder %v628, %v629
          %v631 = vsel %vm630, %v625, 0.0
          %v632 = vmul.f32 %v631, %v631
          %v633 = vadd.f32 %v623, %v632
          %s634 = scalar_lea.vmem %s266, 176 [#allocation1]
          %v635 = vld [vmem:[%s634] sm:$0xff]
          %v636 = vlaneseq
          %v637 = vshrl.u32 %v636, 7
          %v638 = vadd.s32 %v637, 176
          %v639 = vstv %s411
          %vm640 = vcmp.gt.s32.totalorder %v638, %v639
          %v641 = vsel %vm640, %v635, 0.0
          %v642 = vmul.f32 %v641, %v641
          %v643 = vadd.f32 %v633, %v642
          %s644 = scalar_lea.vmem %s266, 184 [#allocation1]
          %v645 = vld [vmem:[%s644] sm:$0xff]
          %v646 = vlaneseq
          %v647 = vshrl.u32 %v646, 7
          %v648 = vadd.s32 %v647, 184
          %v649 = vstv %s411
          %vm650 = vcmp.gt.s32.totalorder %v648, %v649
          %v651 = vsel %vm650, %v645, 0.0
          %v652 = vmul.f32 %v651, %v651
          %v653 = vadd.f32 %v643, %v652
          %s654 = scalar_lea.vmem %s266, 192 [#allocation1]
          %v655 = vld [vmem:[%s654] sm:$0xff]
          %v656 = vlaneseq
          %v657 = vshrl.u32 %v656, 7
          %v658 = vadd.s32 %v657, 192
          %v659 = vstv %s411
          %vm660 = vcmp.gt.s32.totalorder %v658, %v659
          %v661 = vsel %vm660, %v655, 0.0
          %v662 = vmul.f32 %v661, %v661
          %v663 = vadd.f32 %v653, %v662
          %s664 = scalar_lea.vmem %s266, 200 [#allocation1]
          %v665 = vld [vmem:[%s664] sm:$0xff]
          %v666 = vlaneseq
          %v667 = vshrl.u32 %v666, 7
          %v668 = vadd.s32 %v667, 200
          %v669 = vstv %s411
          %vm670 = vcmp.gt.s32.totalorder %v668, %v669
          %v671 = vsel %vm670, %v665, 0.0
          %v672 = vmul.f32 %v671, %v671
          %v673 = vadd.f32 %v663, %v672
          %s674 = scalar_lea.vmem %s266, 208 [#allocation1]
          %v675 = vld [vmem:[%s674] sm:$0xff]
          %v676 = vlaneseq
          %v677 = vshrl.u32 %v676, 7
          %v678 = vadd.s32 %v677, 208
          %v679 = vstv %s411
          %vm680 = vcmp.gt.s32.totalorder %v678, %v679
          %v681 = vsel %vm680, %v675, 0.0
          %v682 = vmul.f32 %v681, %v681
          %v683 = vadd.f32 %v673, %v682
          %s684 = scalar_lea.vmem %s266, 216 [#allocation1]
          %v685 = vld [vmem:[%s684] sm:$0xff]
          %v686 = vlaneseq
          %v687 = vshrl.u32 %v686, 7
          %v688 = vadd.s32 %v687, 216
          %v689 = vstv %s411
          %vm690 = vcmp.gt.s32.totalorder %v688, %v689
          %v691 = vsel %vm690, %v685, 0.0
          %v692 = vmul.f32 %v691, %v691
          %v693 = vadd.f32 %v683, %v692
          %s694 = scalar_lea.vmem %s266, 224 [#allocation1]
          %v695 = vld [vmem:[%s694] sm:$0xff]
          %v696 = vlaneseq
          %v697 = vshrl.u32 %v696, 7
          %v698 = vadd.s32 %v697, 224
          %v699 = vstv %s411
          %vm700 = vcmp.gt.s32.totalorder %v698, %v699
          %v701 = vsel %vm700, %v695, 0.0
          %v702 = vmul.f32 %v701, %v701
          %v703 = vadd.f32 %v693, %v702
          %s704 = scalar_lea.vmem %s266, 232 [#allocation1]
          %v705 = vld [vmem:[%s704] sm:$0xff]
          %v706 = vlaneseq
          %v707 = vshrl.u32 %v706, 7
          %v708 = vadd.s32 %v707, 232
          %v709 = vstv %s411
          %vm710 = vcmp.gt.s32.totalorder %v708, %v709
          %v711 = vsel %vm710, %v705, 0.0
          %v712 = vmul.f32 %v711, %v711
          %v713 = vadd.f32 %v703, %v712
          %s714 = scalar_lea.vmem %s266, 240 [#allocation1]
          %v715 = vld [vmem:[%s714] sm:$0xff]
          %v716 = vlaneseq
          %v717 = vshrl.u32 %v716, 7
          %v718 = vadd.s32 %v717, 240
          %v719 = vstv %s411
          %vm720 = vcmp.gt.s32.totalorder %v718, %v719
          %v721 = vsel %vm720, %v715, 0.0
          %v722 = vmul.f32 %v721, %v721
          %v723 = vadd.f32 %v713, %v722
          %s724 = scalar_lea.vmem %s266, 248 [#allocation1]
          %v725 = vld [vmem:[%s724] sm:$0xff]
          %v726 = vlaneseq
          %v727 = vshrl.u32 %v726, 7
          %v728 = vadd.s32 %v727, 248
          %v729 = vstv %s411
          %vm730 = vcmp.gt.s32.totalorder %v728, %v729
          %vm731 = vcmp.lt.s32.totalorder %v728, 256
          %vm732 = vmand %vm730, %vm731
          %v733 = vsel %vm732, %v725, 0.0
          %v734 = vmul.f32 %v733, %v733
          %v735 = vadd.f32 %v723, %v734
          %v736 = vrot.slane %v735, 4
          %v737 = vadd.f32 %v735, %v736
          %v738 = vrot.slane %v737, 2
          %v739 = vadd.f32 %v737, %v738
          %v740 = vrot.slane %v739, 1
          %v741 = vadd.f32 %v739, %v740
          %v742 = vrsqrt.pop %v741
          %v743 = vmul.f32 %v742, %v741
          %v744 = vmul.f32 %v743, %v742
          %v745 = vmul.f32 0.5, %v744
          %v746 = vsub.f32 1.5, %v745
          %v747 = vmul.f32 %v742, %v746
          %v748 = vmul.f32 %v741, %v747
          %vm749 = vcmp.eq.f32.partialorder %v741, inf
          %v750 = vsel %vm749, %v741, %v748
          %vm751 = vcmp.eq.f32.partialorder %v741, 0.0
          %v752 = vand.u32 %v741, 2147483648
          %v753 = vsel %vm751, %v752, %v750
          %vm754 = vcmp.eq.f32.partialorder %v741, 0.0
          %s755 = sshrl.u32 %s411, 3
          %s756 = sand.u32 %s411, 7
          %s757 = smul.addr %s755, 8
          %s758 = sadd.s32 %s756, %s757
          %s759 = scalar_lea.vmem %s266, %s758 [#allocation1]
          %v760 = vld [vmem:[%s759] ss:$0 sm:$0xff]
          %v761 = vand.u32 2147483647, %v760
          %v762 = vmax.f32 %v761, 0.0
          %v763 = vand.u32 2147483647, %v753
          %v764 = vmax.f32 %v762, %v763
          %v765 = vrcp.pop %v764
          %v766 = vmul.f32 %v764, %v765
          %v767 = vsub.f32 1.0, %v766
          %v768 = vmul.f32 %v765, %v767
          %v769 = vadd.f32 %v765, %v768
          %vm770 = vweird.f32 %v764
          %vm771 = vweird.f32 %v765
          %vm772 = vmor %vm770, %vm771
          %v773 = vsel %vm772, %v765, %v769
          %v774 = vand.u32 2147483647, %v764
          %vm775 = vcmp.eq.f32.partialorder %v774, 8.507059e+37
          %v776 = vand.u32 %v764, 2147483648
          %v777 = vor.u32 1.1754944e-38, %v776
          %v778 = vsel %vm775, %v777, %v773
          %v779 = vmul.f32 %v761, %v778
          %v780 = vmul.f32 %v779, %v779
          %v781 = vrcp.pop %v764
          %v782 = vmul.f32 %v764, %v781
          %v783 = vsub.f32 1.0, %v782
          %v784 = vmul.f32 %v781, %v783
          %v785 = vadd.f32 %v781, %v784
          %vm786 = vweird.f32 %v764
          %vm787 = vweird.f32 %v781
          %vm788 = vmor %vm786, %vm787
          %v789 = vsel %vm788, %v781, %v785
          %v790 = vand.u32 2147483647, %v764
          %vm791 = vcmp.eq.f32.partialorder %v790, 8.507059e+37
          %v792 = vand.u32 %v764, 2147483648
          %v793 = vor.u32 1.1754944e-38, %v792
          %v794 = vsel %vm791, %v793, %v789
          %v795 = vmul.f32 0.0, %v794
          %v796 = vmul.f32 %v795, %v795
          %v797 = vadd.f32 %v780, %v796
          %v798 = vrcp.pop %v764
          %v799 = vmul.f32 %v764, %v798
          %v800 = vsub.f32 1.0, %v799
          %v801 = vmul.f32 %v798, %v800
          %v802 = vadd.f32 %v798, %v801
          %vm803 = vweird.f32 %v764
          %vm804 = vweird.f32 %v798
          %vm805 = vmor %vm803, %vm804
          %v806 = vsel %vm805, %v798, %v802
          %v807 = vand.u32 2147483647, %v764
          %vm808 = vcmp.eq.f32.partialorder %v807, 8.507059e+37
          %v809 = vand.u32 %v764, 2147483648
          %v810 = vor.u32 1.1754944e-38, %v809
          %v811 = vsel %vm808, %v810, %v806
          %v812 = vmul.f32 %v763, %v811
          %v813 = vmul.f32 %v812, %v812
          %v814 = vadd.f32 %v797, %v813
          %vm815 = vcmp.eq.f32.partialorder %v764, 0.0
          %v816 = vrsqrt.pop %v814
          %v817 = vmul.f32 %v816, %v814
          %v818 = vmul.f32 %v817, %v816
          %v819 = vmul.f32 0.5, %v818
          %v820 = vsub.f32 1.5, %v819
          %v821 = vmul.f32 %v816, %v820
          %v822 = vmul.f32 %v814, %v821
          %vm823 = vcmp.eq.f32.partialorder %v814, inf
          %v824 = vsel %vm823, %v814, %v822
          %vm825 = vcmp.eq.f32.partialorder %v814, 0.0
          %v826 = vand.u32 %v814, 2147483648
          %v827 = vsel %vm825, %v826, %v824
          %v828 = vmul.f32 %v764, %v827
          %v829 = vsel %vm815, 0.0, %v828
          %vm830 = vcmp.lt.f32.partialorder %v760, 0.0
          %v831 = vxor.u32 %v829, 2147483648
          %v832 = vsel %vm830, %v829, %v831
          %v833 = vsub.f32 %v832, %v760
          %v834 = vrcp.pop %v832
          %v835 = vmul.f32 %v832, %v834
          %v836 = vsub.f32 1.0, %v835
          %v837 = vmul.f32 %v834, %v836
          %v838 = vadd.f32 %v834, %v837
          %vm839 = vweird.f32 %v832
          %vm840 = vweird.f32 %v834
          %vm841 = vmor %vm839, %vm840
          %v842 = vsel %vm841, %v834, %v838
          %v843 = vand.u32 2147483647, %v832
          %vm844 = vcmp.eq.f32.partialorder %v843, 8.507059e+37
          %v845 = vand.u32 %v832, 2147483648
          %v846 = vor.u32 1.1754944e-38, %v845
          %v847 = vsel %vm844, %v846, %v842
          %v848 = vmul.f32 %v833, %v847
          %v849 = vsel %vm754, %v760, %v832
          %v850 = vsel %vm754, 0.0, %v848
          %v851 = vsub.f32 %v760, %v849
          %s852 = smov %s266
          %v853 = vlaneseq
          %v854 = vshrl.u32 %v853, 7
          %v855 = vmov %v854
          %v856 = vld [vmem:[%s852] sm:$0xff]
          %v858 = vstv %s411
          %vm859 = vcmp.gt.s32.totalorder %v855, %v858
          %v860 = vsel %vm859, %v856, 0.0
          %v861 = vrcp.pop %v851
          %v862 = vmul.f32 %v851, %v861
          %v863 = vsub.f32 1.0, %v862
          %v864 = vmul.f32 %v861, %v863
          %v865 = vadd.f32 %v861, %v864
          %vm866 = vweird.f32 %v851
          %vm867 = vweird.f32 %v861
          %vm868 = vmor %vm866, %vm867
          %v869 = vsel %vm868, %v861, %v865
          %v870 = vand.u32 2147483647, %v851
          %vm871 = vcmp.eq.f32.partialorder %v870, 8.507059e+37
          %v872 = vand.u32 %v851, 2147483648
          %v873 = vor.u32 1.1754944e-38, %v872
          %v874 = vsel %vm871, %v873, %v869
          %v875 = vmul.f32 %v860, %v874
          %v876 = vsel %vm754, 0.0, %v875
          %v877 = vstv %s411
          %v878 = vlaneseq
          %v879 = vand.u32 %v878, 127
          %vm880 = vcmp.eq.s32.totalorder %v879, %v877
          %v881 = vsel %vm880, %v876, 0.0
          %882 = vadd.xlane.f32.xlu0 %v881
          %v883 = vpop.xlane.xlu0 %882
          %884 = vst [vmem:[#allocation4] sm:$0xff] %v883
          %s885 = scalar_lea.vmem %s852, 8
          %v886 = vld [vmem:[%s885] sm:$0xff]
          %v887 = vadd.s32 %v855, 8
          %v888 = vstv %s411
          %vm889 = vcmp.gt.s32.totalorder %v887, %v888
          %v890 = vsel %vm889, %v886, 0.0
          %v891 = vrcp.pop %v851
          %v892 = vmul.f32 %v851, %v891
          %v893 = vsub.f32 1.0, %v892
          %v894 = vmul.f32 %v891, %v893
          %v895 = vadd.f32 %v891, %v894
          %vm896 = vweird.f32 %v851
          %vm897 = vweird.f32 %v891
          %vm898 = vmor %vm896, %vm897
          %v899 = vsel %vm898, %v891, %v895
          %v900 = vand.u32 2147483647, %v851
          %vm901 = vcmp.eq.f32.partialorder %v900, 8.507059e+37
          %v902 = vand.u32 %v851, 2147483648
          %v903 = vor.u32 1.1754944e-38, %v902
          %v904 = vsel %vm901, %v903, %v899
          %v905 = vmul.f32 %v890, %v904
          %v906 = vsel %vm754, 0.0, %v905
          %v907 = vstv %s411
          %v908 = vlaneseq
          %v909 = vand.u32 %v908, 127
          %vm910 = vcmp.eq.s32.totalorder %v909, %v907
          %v911 = vsel %vm910, %v906, 0.0
          %912 = vadd.xlane.f32.xlu0 %v911
          %v913 = vpop.xlane.xlu0 %912
          %s914 = scalar_lea.vmem [#allocation4], 8
          %915 = vst [vmem:[%s914] sm:$0xff] %v913
          %s916 = scalar_lea.vmem %s852, 16
          %v917 = vld [vmem:[%s916] sm:$0xff]
          %v918 = vadd.s32 %v855, 16
          %v919 = vstv %s411
          %vm920 = vcmp.gt.s32.totalorder %v918, %v919
          %v921 = vsel %vm920, %v917, 0.0
          %v922 = vrcp.pop %v851
          %v923 = vmul.f32 %v851, %v922
          %v924 = vsub.f32 1.0, %v923
          %v925 = vmul.f32 %v922, %v924
          %v926 = vadd.f32 %v922, %v925
          %vm927 = vweird.f32 %v851
          %vm928 = vweird.f32 %v922
          %vm929 = vmor %vm927, %vm928
          %v930 = vsel %vm929, %v922, %v926
          %v931 = vand.u32 2147483647, %v851
          %vm932 = vcmp.eq.f32.partialorder %v931, 8.507059e+37
          %v933 = vand.u32 %v851, 2147483648
          %v934 = vor.u32 1.1754944e-38, %v933
          %v935 = vsel %vm932, %v934, %v930
          %v936 = vmul.f32 %v921, %v935
          %v937 = vsel %vm754, 0.0, %v936
          %v938 = vstv %s411
          %v939 = vlaneseq
          %v940 = vand.u32 %v939, 127
          %vm941 = vcmp.eq.s32.totalorder %v940, %v938
          %v942 = vsel %vm941, %v937, 0.0
          %943 = vadd.xlane.f32.xlu0 %v942
          %v944 = vpop.xlane.xlu0 %943
          %s945 = scalar_lea.vmem [#allocation4], 16
          %946 = vst [vmem:[%s945] sm:$0xff] %v944
          %s947 = scalar_lea.vmem %s852, 24
          %v948 = vld [vmem:[%s947] sm:$0xff]
          %v949 = vadd.s32 %v855, 24
          %v950 = vstv %s411
          %vm951 = vcmp.gt.s32.totalorder %v949, %v950
          %v952 = vsel %vm951, %v948, 0.0
          %v953 = vrcp.pop %v851
          %v954 = vmul.f32 %v851, %v953
          %v955 = vsub.f32 1.0, %v954
          %v956 = vmul.f32 %v953, %v955
          %v957 = vadd.f32 %v953, %v956
          %vm958 = vweird.f32 %v851
          %vm959 = vweird.f32 %v953
          %vm960 = vmor %vm958, %vm959
          %v961 = vsel %vm960, %v953, %v957
          %v962 = vand.u32 2147483647, %v851
          %vm963 = vcmp.eq.f32.partialorder %v962, 8.507059e+37
          %v964 = vand.u32 %v851, 2147483648
          %v965 = vor.u32 1.1754944e-38, %v964
          %v966 = vsel %vm963, %v965, %v961
          %v967 = vmul.f32 %v952, %v966
          %v968 = vsel %vm754, 0.0, %v967
          %v969 = vstv %s411
          %v970 = vlaneseq
          %v971 = vand.u32 %v970, 127
          %vm972 = vcmp.eq.s32.totalorder %v971, %v969
          %v973 = vsel %vm972, %v968, 0.0
          %974 = vadd.xlane.f32.xlu0 %v973
          %v975 = vpop.xlane.xlu0 %974
          %s976 = scalar_lea.vmem [#allocation4], 24
          %977 = vst [vmem:[%s976] sm:$0xff] %v975
          %s978 = scalar_lea.vmem %s852, 32
          %v979 = vld [vmem:[%s978] sm:$0xff]
          %v980 = vadd.s32 %v855, 32
          %v981 = vstv %s411
          %vm982 = vcmp.gt.s32.totalorder %v980, %v981
          %v983 = vsel %vm982, %v979, 0.0
          %v984 = vrcp.pop %v851
          %v985 = vmul.f32 %v851, %v984
          %v986 = vsub.f32 1.0, %v985
          %v987 = vmul.f32 %v984, %v986
          %v988 = vadd.f32 %v984, %v987
          %vm989 = vweird.f32 %v851
          %vm990 = vweird.f32 %v984
          %vm991 = vmor %vm989, %vm990
          %v992 = vsel %vm991, %v984, %v988
          %v993 = vand.u32 2147483647, %v851
          %vm994 = vcmp.eq.f32.partialorder %v993, 8.507059e+37
          %v995 = vand.u32 %v851, 2147483648
          %v996 = vor.u32 1.1754944e-38, %v995
          %v997 = vsel %vm994, %v996, %v992
          %v998 = vmul.f32 %v983, %v997
          %v999 = vsel %vm754, 0.0, %v998
          %v1000 = vstv %s411
          %v1001 = vlaneseq
          %v1002 = vand.u32 %v1001, 127
          %vm1003 = vcmp.eq.s32.totalorder %v1002, %v1000
          %v1004 = vsel %vm1003, %v999, 0.0
          %1005 = vadd.xlane.f32.xlu0 %v1004
          %v1006 = vpop.xlane.xlu0 %1005
          %s1007 = scalar_lea.vmem [#allocation4], 32
          %1008 = vst [vmem:[%s1007] sm:$0xff] %v1006
          %s1009 = scalar_lea.vmem %s852, 40
          %v1010 = vld [vmem:[%s1009] sm:$0xff]
          %v1011 = vadd.s32 %v855, 40
          %v1012 = vstv %s411
          %vm1013 = vcmp.gt.s32.totalorder %v1011, %v1012
          %v1014 = vsel %vm1013, %v1010, 0.0
          %v1015 = vrcp.pop %v851
          %v1016 = vmul.f32 %v851, %v1015
          %v1017 = vsub.f32 1.0, %v1016
          %v1018 = vmul.f32 %v1015, %v1017
          %v1019 = vadd.f32 %v1015, %v1018
          %vm1020 = vweird.f32 %v851
          %vm1021 = vweird.f32 %v1015
          %vm1022 = vmor %vm1020, %vm1021
          %v1023 = vsel %vm1022, %v1015, %v1019
          %v1024 = vand.u32 2147483647, %v851
          %vm1025 = vcmp.eq.f32.partialorder %v1024, 8.507059e+37
          %v1026 = vand.u32 %v851, 2147483648
          %v1027 = vor.u32 1.1754944e-38, %v1026
          %v1028 = vsel %vm1025, %v1027, %v1023
          %v1029 = vmul.f32 %v1014, %v1028
          %v1030 = vsel %vm754, 0.0, %v1029
          %v1031 = vstv %s411
          %v1032 = vlaneseq
          %v1033 = vand.u32 %v1032, 127
          %vm1034 = vcmp.eq.s32.totalorder %v1033, %v1031
          %v1035 = vsel %vm1034, %v1030, 0.0
          %1036 = vadd.xlane.f32.xlu0 %v1035
          %v1037 = vpop.xlane.xlu0 %1036
          %s1038 = scalar_lea.vmem [#allocation4], 40
          %1039 = vst [vmem:[%s1038] sm:$0xff] %v1037
          %s1040 = scalar_lea.vmem %s852, 48
          %v1041 = vld [vmem:[%s1040] sm:$0xff]
          %v1042 = vadd.s32 %v855, 48
          %v1043 = vstv %s411
          %vm1044 = vcmp.gt.s32.totalorder %v1042, %v1043
          %v1045 = vsel %vm1044, %v1041, 0.0
          %v1046 = vrcp.pop %v851
          %v1047 = vmul.f32 %v851, %v1046
          %v1048 = vsub.f32 1.0, %v1047
          %v1049 = vmul.f32 %v1046, %v1048
          %v1050 = vadd.f32 %v1046, %v1049
          %vm1051 = vweird.f32 %v851
          %vm1052 = vweird.f32 %v1046
          %vm1053 = vmor %vm1051, %vm1052
          %v1054 = vsel %vm1053, %v1046, %v1050
          %v1055 = vand.u32 2147483647, %v851
          %vm1056 = vcmp.eq.f32.partialorder %v1055, 8.507059e+37
          %v1057 = vand.u32 %v851, 2147483648
          %v1058 = vor.u32 1.1754944e-38, %v1057
          %v1059 = vsel %vm1056, %v1058, %v1054
          %v1060 = vmul.f32 %v1045, %v1059
          %v1061 = vsel %vm754, 0.0, %v1060
          %v1062 = vstv %s411
          %v1063 = vlaneseq
          %v1064 = vand.u32 %v1063, 127
          %vm1065 = vcmp.eq.s32.totalorder %v1064, %v1062
          %v1066 = vsel %vm1065, %v1061, 0.0
          %1067 = vadd.xlane.f32.xlu0 %v1066
          %v1068 = vpop.xlane.xlu0 %1067
          %s1069 = scalar_lea.vmem [#allocation4], 48
          %1070 = vst [vmem:[%s1069] sm:$0xff] %v1068
          %s1071 = scalar_lea.vmem %s852, 56
          %v1072 = vld [vmem:[%s1071] sm:$0xff]
          %v1073 = vadd.s32 %v855, 56
          %v1074 = vstv %s411
          %vm1075 = vcmp.gt.s32.totalorder %v1073, %v1074
          %v1076 = vsel %vm1075, %v1072, 0.0
          %v1077 = vrcp.pop %v851
          %v1078 = vmul.f32 %v851, %v1077
          %v1079 = vsub.f32 1.0, %v1078
          %v1080 = vmul.f32 %v1077, %v1079
          %v1081 = vadd.f32 %v1077, %v1080
          %vm1082 = vweird.f32 %v851
          %vm1083 = vweird.f32 %v1077
          %vm1084 = vmor %vm1082, %vm1083
          %v1085 = vsel %vm1084, %v1077, %v1081
          %v1086 = vand.u32 2147483647, %v851
          %vm1087 = vcmp.eq.f32.partialorder %v1086, 8.507059e+37
          %v1088 = vand.u32 %v851, 2147483648
          %v1089 = vor.u32 1.1754944e-38, %v1088
          %v1090 = vsel %vm1087, %v1089, %v1085
          %v1091 = vmul.f32 %v1076, %v1090
          %v1092 = vsel %vm754, 0.0, %v1091
          %v1093 = vstv %s411
          %v1094 = vlaneseq
          %v1095 = vand.u32 %v1094, 127
          %vm1096 = vcmp.eq.s32.totalorder %v1095, %v1093
          %v1097 = vsel %vm1096, %v1092, 0.0
          %1098 = vadd.xlane.f32.xlu0 %v1097
          %v1099 = vpop.xlane.xlu0 %1098
          %s1100 = scalar_lea.vmem [#allocation4], 56
          %1101 = vst [vmem:[%s1100] sm:$0xff] %v1099
          %s1102 = scalar_lea.vmem %s852, 64
          %v1103 = vld [vmem:[%s1102] sm:$0xff]
          %v1104 = vadd.s32 %v855, 64
          %v1105 = vstv %s411
          %vm1106 = vcmp.gt.s32.totalorder %v1104, %v1105
          %v1107 = vsel %vm1106, %v1103, 0.0
          %v1108 = vrcp.pop %v851
          %v1109 = vmul.f32 %v851, %v1108
          %v1110 = vsub.f32 1.0, %v1109
          %v1111 = vmul.f32 %v1108, %v1110
          %v1112 = vadd.f32 %v1108, %v1111
          %vm1113 = vweird.f32 %v851
          %vm1114 = vweird.f32 %v1108
          %vm1115 = vmor %vm1113, %vm1114
          %v1116 = vsel %vm1115, %v1108, %v1112
          %v1117 = vand.u32 2147483647, %v851
          %vm1118 = vcmp.eq.f32.partialorder %v1117, 8.507059e+37
          %v1119 = vand.u32 %v851, 2147483648
          %v1120 = vor.u32 1.1754944e-38, %v1119
          %v1121 = vsel %vm1118, %v1120, %v1116
          %v1122 = vmul.f32 %v1107, %v1121
          %v1123 = vsel %vm754, 0.0, %v1122
          %v1124 = vstv %s411
          %v1125 = vlaneseq
          %v1126 = vand.u32 %v1125, 127
          %vm1127 = vcmp.eq.s32.totalorder %v1126, %v1124
          %v1128 = vsel %vm1127, %v1123, 0.0
          %1129 = vadd.xlane.f32.xlu0 %v1128
          %v1130 = vpop.xlane.xlu0 %1129
          %s1131 = scalar_lea.vmem [#allocation4], 64
          %1132 = vst [vmem:[%s1131] sm:$0xff] %v1130
          %s1133 = scalar_lea.vmem %s852, 72
          %v1134 = vld [vmem:[%s1133] sm:$0xff]
          %v1135 = vadd.s32 %v855, 72
          %v1136 = vstv %s411
          %vm1137 = vcmp.gt.s32.totalorder %v1135, %v1136
          %v1138 = vsel %vm1137, %v1134, 0.0
          %v1139 = vrcp.pop %v851
          %v1140 = vmul.f32 %v851, %v1139
          %v1141 = vsub.f32 1.0, %v1140
          %v1142 = vmul.f32 %v1139, %v1141
          %v1143 = vadd.f32 %v1139, %v1142
          %vm1144 = vweird.f32 %v851
          %vm1145 = vweird.f32 %v1139
          %vm1146 = vmor %vm1144, %vm1145
          %v1147 = vsel %vm1146, %v1139, %v1143
          %v1148 = vand.u32 2147483647, %v851
          %vm1149 = vcmp.eq.f32.partialorder %v1148, 8.507059e+37
          %v1150 = vand.u32 %v851, 2147483648
          %v1151 = vor.u32 1.1754944e-38, %v1150
          %v1152 = vsel %vm1149, %v1151, %v1147
          %v1153 = vmul.f32 %v1138, %v1152
          %v1154 = vsel %vm754, 0.0, %v1153
          %v1155 = vstv %s411
          %v1156 = vlaneseq
          %v1157 = vand.u32 %v1156, 127
          %vm1158 = vcmp.eq.s32.totalorder %v1157, %v1155
          %v1159 = vsel %vm1158, %v1154, 0.0
          %1160 = vadd.xlane.f32.xlu0 %v1159
          %v1161 = vpop.xlane.xlu0 %1160
          %s1162 = scalar_lea.vmem [#allocation4], 72
          %1163 = vst [vmem:[%s1162] sm:$0xff] %v1161
          %s1164 = scalar_lea.vmem %s852, 80
          %v1165 = vld [vmem:[%s1164] sm:$0xff]
          %v1166 = vadd.s32 %v855, 80
          %v1167 = vstv %s411
          %vm1168 = vcmp.gt.s32.totalorder %v1166, %v1167
          %v1169 = vsel %vm1168, %v1165, 0.0
          %v1170 = vrcp.pop %v851
          %v1171 = vmul.f32 %v851, %v1170
          %v1172 = vsub.f32 1.0, %v1171
          %v1173 = vmul.f32 %v1170, %v1172
          %v1174 = vadd.f32 %v1170, %v1173
          %vm1175 = vweird.f32 %v851
          %vm1176 = vweird.f32 %v1170
          %vm1177 = vmor %vm1175, %vm1176
          %v1178 = vsel %vm1177, %v1170, %v1174
          %v1179 = vand.u32 2147483647, %v851
          %vm1180 = vcmp.eq.f32.partialorder %v1179, 8.507059e+37
          %v1181 = vand.u32 %v851, 2147483648
          %v1182 = vor.u32 1.1754944e-38, %v1181
          %v1183 = vsel %vm1180, %v1182, %v1178
          %v1184 = vmul.f32 %v1169, %v1183
          %v1185 = vsel %vm754, 0.0, %v1184
          %v1186 = vstv %s411
          %v1187 = vlaneseq
          %v1188 = vand.u32 %v1187, 127
          %vm1189 = vcmp.eq.s32.totalorder %v1188, %v1186
          %v1190 = vsel %vm1189, %v1185, 0.0
          %1191 = vadd.xlane.f32.xlu0 %v1190
          %v1192 = vpop.xlane.xlu0 %1191
          %s1193 = scalar_lea.vmem [#allocation4], 80
          %1194 = vst [vmem:[%s1193] sm:$0xff] %v1192
          %s1195 = scalar_lea.vmem %s852, 88
          %v1196 = vld [vmem:[%s1195] sm:$0xff]
          %v1197 = vadd.s32 %v855, 88
          %v1198 = vstv %s411
          %vm1199 = vcmp.gt.s32.totalorder %v1197, %v1198
          %v1200 = vsel %vm1199, %v1196, 0.0
          %v1201 = vrcp.pop %v851
          %v1202 = vmul.f32 %v851, %v1201
          %v1203 = vsub.f32 1.0, %v1202
          %v1204 = vmul.f32 %v1201, %v1203
          %v1205 = vadd.f32 %v1201, %v1204
          %vm1206 = vweird.f32 %v851
          %vm1207 = vweird.f32 %v1201
          %vm1208 = vmor %vm1206, %vm1207
          %v1209 = vsel %vm1208, %v1201, %v1205
          %v1210 = vand.u32 2147483647, %v851
          %vm1211 = vcmp.eq.f32.partialorder %v1210, 8.507059e+37
          %v1212 = vand.u32 %v851, 2147483648
          %v1213 = vor.u32 1.1754944e-38, %v1212
          %v1214 = vsel %vm1211, %v1213, %v1209
          %v1215 = vmul.f32 %v1200, %v1214
          %v1216 = vsel %vm754, 0.0, %v1215
          %v1217 = vstv %s411
          %v1218 = vlaneseq
          %v1219 = vand.u32 %v1218, 127
          %vm1220 = vcmp.eq.s32.totalorder %v1219, %v1217
          %v1221 = vsel %vm1220, %v1216, 0.0
          %1222 = vadd.xlane.f32.xlu0 %v1221
          %v1223 = vpop.xlane.xlu0 %1222
          %s1224 = scalar_lea.vmem [#allocation4], 88
          %1225 = vst [vmem:[%s1224] sm:$0xff] %v1223
          %s1226 = scalar_lea.vmem %s852, 96
          %v1227 = vld [vmem:[%s1226] sm:$0xff]
          %v1228 = vadd.s32 %v855, 96
          %v1229 = vstv %s411
          %vm1230 = vcmp.gt.s32.totalorder %v1228, %v1229
          %v1231 = vsel %vm1230, %v1227, 0.0
          %v1232 = vrcp.pop %v851
          %v1233 = vmul.f32 %v851, %v1232
          %v1234 = vsub.f32 1.0, %v1233
          %v1235 = vmul.f32 %v1232, %v1234
          %v1236 = vadd.f32 %v1232, %v1235
          %vm1237 = vweird.f32 %v851
          %vm1238 = vweird.f32 %v1232
          %vm1239 = vmor %vm1237, %vm1238
          %v1240 = vsel %vm1239, %v1232, %v1236
          %v1241 = vand.u32 2147483647, %v851
          %vm1242 = vcmp.eq.f32.partialorder %v1241, 8.507059e+37
          %v1243 = vand.u32 %v851, 2147483648
          %v1244 = vor.u32 1.1754944e-38, %v1243
          %v1245 = vsel %vm1242, %v1244, %v1240
          %v1246 = vmul.f32 %v1231, %v1245
          %v1247 = vsel %vm754, 0.0, %v1246
          %v1248 = vstv %s411
          %v1249 = vlaneseq
          %v1250 = vand.u32 %v1249, 127
          %vm1251 = vcmp.eq.s32.totalorder %v1250, %v1248
          %v1252 = vsel %vm1251, %v1247, 0.0
          %1253 = vadd.xlane.f32.xlu0 %v1252
          %v1254 = vpop.xlane.xlu0 %1253
          %s1255 = scalar_lea.vmem [#allocation4], 96
          %1256 = vst [vmem:[%s1255] sm:$0xff] %v1254
          %s1257 = scalar_lea.vmem %s852, 104
          %v1258 = vld [vmem:[%s1257] sm:$0xff]
          %v1259 = vadd.s32 %v855, 104
          %v1260 = vstv %s411
          %vm1261 = vcmp.gt.s32.totalorder %v1259, %v1260
          %v1262 = vsel %vm1261, %v1258, 0.0
          %v1263 = vrcp.pop %v851
          %v1264 = vmul.f32 %v851, %v1263
          %v1265 = vsub.f32 1.0, %v1264
          %v1266 = vmul.f32 %v1263, %v1265
          %v1267 = vadd.f32 %v1263, %v1266
          %vm1268 = vweird.f32 %v851
          %vm1269 = vweird.f32 %v1263
          %vm1270 = vmor %vm1268, %vm1269
          %v1271 = vsel %vm1270, %v1263, %v1267
          %v1272 = vand.u32 2147483647, %v851
          %vm1273 = vcmp.eq.f32.partialorder %v1272, 8.507059e+37
          %v1274 = vand.u32 %v851, 2147483648
          %v1275 = vor.u32 1.1754944e-38, %v1274
          %v1276 = vsel %vm1273, %v1275, %v1271
          %v1277 = vmul.f32 %v1262, %v1276
          %v1278 = vsel %vm754, 0.0, %v1277
          %v1279 = vstv %s411
          %v1280 = vlaneseq
          %v1281 = vand.u32 %v1280, 127
          %vm1282 = vcmp.eq.s32.totalorder %v1281, %v1279
          %v1283 = vsel %vm1282, %v1278, 0.0
          %1284 = vadd.xlane.f32.xlu0 %v1283
          %v1285 = vpop.xlane.xlu0 %1284
          %s1286 = scalar_lea.vmem [#allocation4], 104
          %1287 = vst [vmem:[%s1286] sm:$0xff] %v1285
          %s1288 = scalar_lea.vmem %s852, 112
          %v1289 = vld [vmem:[%s1288] sm:$0xff]
          %v1290 = vadd.s32 %v855, 112
          %v1291 = vstv %s411
          %vm1292 = vcmp.gt.s32.totalorder %v1290, %v1291
          %v1293 = vsel %vm1292, %v1289, 0.0
          %v1294 = vrcp.pop %v851
          %v1295 = vmul.f32 %v851, %v1294
          %v1296 = vsub.f32 1.0, %v1295
          %v1297 = vmul.f32 %v1294, %v1296
          %v1298 = vadd.f32 %v1294, %v1297
          %vm1299 = vweird.f32 %v851
          %vm1300 = vweird.f32 %v1294
          %vm1301 = vmor %vm1299, %vm1300
          %v1302 = vsel %vm1301, %v1294, %v1298
          %v1303 = vand.u32 2147483647, %v851
          %vm1304 = vcmp.eq.f32.partialorder %v1303, 8.507059e+37
          %v1305 = vand.u32 %v851, 2147483648
          %v1306 = vor.u32 1.1754944e-38, %v1305
          %v1307 = vsel %vm1304, %v1306, %v1302
          %v1308 = vmul.f32 %v1293, %v1307
          %v1309 = vsel %vm754, 0.0, %v1308
          %v1310 = vstv %s411
          %v1311 = vlaneseq
          %v1312 = vand.u32 %v1311, 127
          %vm1313 = vcmp.eq.s32.totalorder %v1312, %v1310
          %v1314 = vsel %vm1313, %v1309, 0.0
          %1315 = vadd.xlane.f32.xlu0 %v1314
          %v1316 = vpop.xlane.xlu0 %1315
          %s1317 = scalar_lea.vmem [#allocation4], 112
          %1318 = vst [vmem:[%s1317] sm:$0xff] %v1316
          %s1319 = scalar_lea.vmem %s852, 120
          %v1320 = vld [vmem:[%s1319] sm:$0xff]
          %v1321 = vadd.s32 %v855, 120
          %v1322 = vstv %s411
          %vm1323 = vcmp.gt.s32.totalorder %v1321, %v1322
          %v1324 = vsel %vm1323, %v1320, 0.0
          %v1325 = vrcp.pop %v851
          %v1326 = vmul.f32 %v851, %v1325
          %v1327 = vsub.f32 1.0, %v1326
          %v1328 = vmul.f32 %v1325, %v1327
          %v1329 = vadd.f32 %v1325, %v1328
          %vm1330 = vweird.f32 %v851
          %vm1331 = vweird.f32 %v1325
          %vm1332 = vmor %vm1330, %vm1331
          %v1333 = vsel %vm1332, %v1325, %v1329
          %v1334 = vand.u32 2147483647, %v851
          %vm1335 = vcmp.eq.f32.partialorder %v1334, 8.507059e+37
          %v1336 = vand.u32 %v851, 2147483648
          %v1337 = vor.u32 1.1754944e-38, %v1336
          %v1338 = vsel %vm1335, %v1337, %v1333
          %v1339 = vmul.f32 %v1324, %v1338
          %v1340 = vsel %vm754, 0.0, %v1339
          %v1341 = vstv %s411
          %v1342 = vlaneseq
          %v1343 = vand.u32 %v1342, 127
          %vm1344 = vcmp.eq.s32.totalorder %v1343, %v1341
          %v1345 = vsel %vm1344, %v1340, 0.0
          %1346 = vadd.xlane.f32.xlu0 %v1345
          %v1347 = vpop.xlane.xlu0 %1346
          %s1348 = scalar_lea.vmem [#allocation4], 120
          %1349 = vst [vmem:[%s1348] sm:$0xff] %v1347
          %s1350 = scalar_lea.vmem %s852, 128
          %v1351 = vld [vmem:[%s1350] sm:$0xff]
          %v1352 = vadd.s32 %v855, 128
          %v1353 = vstv %s411
          %vm1354 = vcmp.gt.s32.totalorder %v1352, %v1353
          %v1355 = vsel %vm1354, %v1351, 0.0
          %v1356 = vrcp.pop %v851
          %v1357 = vmul.f32 %v851, %v1356
          %v1358 = vsub.f32 1.0, %v1357
          %v1359 = vmul.f32 %v1356, %v1358
          %v1360 = vadd.f32 %v1356, %v1359
          %vm1361 = vweird.f32 %v851
          %vm1362 = vweird.f32 %v1356
          %vm1363 = vmor %vm1361, %vm1362
          %v1364 = vsel %vm1363, %v1356, %v1360
          %v1365 = vand.u32 2147483647, %v851
          %vm1366 = vcmp.eq.f32.partialorder %v1365, 8.507059e+37
          %v1367 = vand.u32 %v851, 2147483648
          %v1368 = vor.u32 1.1754944e-38, %v1367
          %v1369 = vsel %vm1366, %v1368, %v1364
          %v1370 = vmul.f32 %v1355, %v1369
          %v1371 = vsel %vm754, 0.0, %v1370
          %v1372 = vstv %s411
          %v1373 = vlaneseq
          %v1374 = vand.u32 %v1373, 127
          %vm1375 = vcmp.eq.s32.totalorder %v1374, %v1372
          %v1376 = vsel %vm1375, %v1371, 0.0
          %1377 = vadd.xlane.f32.xlu0 %v1376
          %v1378 = vpop.xlane.xlu0 %1377
          %s1379 = scalar_lea.vmem [#allocation4], 128
          %1380 = vst [vmem:[%s1379] sm:$0xff] %v1378
          %s1381 = scalar_lea.vmem %s852, 136
          %v1382 = vld [vmem:[%s1381] sm:$0xff]
          %v1383 = vadd.s32 %v855, 136
          %v1384 = vstv %s411
          %vm1385 = vcmp.gt.s32.totalorder %v1383, %v1384
          %v1386 = vsel %vm1385, %v1382, 0.0
          %v1387 = vrcp.pop %v851
          %v1388 = vmul.f32 %v851, %v1387
          %v1389 = vsub.f32 1.0, %v1388
          %v1390 = vmul.f32 %v1387, %v1389
          %v1391 = vadd.f32 %v1387, %v1390
          %vm1392 = vweird.f32 %v851
          %vm1393 = vweird.f32 %v1387
          %vm1394 = vmor %vm1392, %vm1393
          %v1395 = vsel %vm1394, %v1387, %v1391
          %v1396 = vand.u32 2147483647, %v851
          %vm1397 = vcmp.eq.f32.partialorder %v1396, 8.507059e+37
          %v1398 = vand.u32 %v851, 2147483648
          %v1399 = vor.u32 1.1754944e-38, %v1398
          %v1400 = vsel %vm1397, %v1399, %v1395
          %v1401 = vmul.f32 %v1386, %v1400
          %v1402 = vsel %vm754, 0.0, %v1401
          %v1403 = vstv %s411
          %v1404 = vlaneseq
          %v1405 = vand.u32 %v1404, 127
          %vm1406 = vcmp.eq.s32.totalorder %v1405, %v1403
          %v1407 = vsel %vm1406, %v1402, 0.0
          %1408 = vadd.xlane.f32.xlu0 %v1407
          %v1409 = vpop.xlane.xlu0 %1408
          %s1410 = scalar_lea.vmem [#allocation4], 136
          %1411 = vst [vmem:[%s1410] sm:$0xff] %v1409
          %s1412 = scalar_lea.vmem %s852, 144
          %v1413 = vld [vmem:[%s1412] sm:$0xff]
          %v1414 = vadd.s32 %v855, 144
          %v1415 = vstv %s411
          %vm1416 = vcmp.gt.s32.totalorder %v1414, %v1415
          %v1417 = vsel %vm1416, %v1413, 0.0
          %v1418 = vrcp.pop %v851
          %v1419 = vmul.f32 %v851, %v1418
          %v1420 = vsub.f32 1.0, %v1419
          %v1421 = vmul.f32 %v1418, %v1420
          %v1422 = vadd.f32 %v1418, %v1421
          %vm1423 = vweird.f32 %v851
          %vm1424 = vweird.f32 %v1418
          %vm1425 = vmor %vm1423, %vm1424
          %v1426 = vsel %vm1425, %v1418, %v1422
          %v1427 = vand.u32 2147483647, %v851
          %vm1428 = vcmp.eq.f32.partialorder %v1427, 8.507059e+37
          %v1429 = vand.u32 %v851, 2147483648
          %v1430 = vor.u32 1.1754944e-38, %v1429
          %v1431 = vsel %vm1428, %v1430, %v1426
          %v1432 = vmul.f32 %v1417, %v1431
          %v1433 = vsel %vm754, 0.0, %v1432
          %v1434 = vstv %s411
          %v1435 = vlaneseq
          %v1436 = vand.u32 %v1435, 127
          %vm1437 = vcmp.eq.s32.totalorder %v1436, %v1434
          %v1438 = vsel %vm1437, %v1433, 0.0
          %1439 = vadd.xlane.f32.xlu0 %v1438
          %v1440 = vpop.xlane.xlu0 %1439
          %s1441 = scalar_lea.vmem [#allocation4], 144
          %1442 = vst [vmem:[%s1441] sm:$0xff] %v1440
          %s1443 = scalar_lea.vmem %s852, 152
          %v1444 = vld [vmem:[%s1443] sm:$0xff]
          %v1445 = vadd.s32 %v855, 152
          %v1446 = vstv %s411
          %vm1447 = vcmp.gt.s32.totalorder %v1445, %v1446
          %v1448 = vsel %vm1447, %v1444, 0.0
          %v1449 = vrcp.pop %v851
          %v1450 = vmul.f32 %v851, %v1449
          %v1451 = vsub.f32 1.0, %v1450
          %v1452 = vmul.f32 %v1449, %v1451
          %v1453 = vadd.f32 %v1449, %v1452
          %vm1454 = vweird.f32 %v851
          %vm1455 = vweird.f32 %v1449
          %vm1456 = vmor %vm1454, %vm1455
          %v1457 = vsel %vm1456, %v1449, %v1453
          %v1458 = vand.u32 2147483647, %v851
          %vm1459 = vcmp.eq.f32.partialorder %v1458, 8.507059e+37
          %v1460 = vand.u32 %v851, 2147483648
          %v1461 = vor.u32 1.1754944e-38, %v1460
          %v1462 = vsel %vm1459, %v1461, %v1457
          %v1463 = vmul.f32 %v1448, %v1462
          %v1464 = vsel %vm754, 0.0, %v1463
          %v1465 = vstv %s411
          %v1466 = vlaneseq
          %v1467 = vand.u32 %v1466, 127
          %vm1468 = vcmp.eq.s32.totalorder %v1467, %v1465
          %v1469 = vsel %vm1468, %v1464, 0.0
          %1470 = vadd.xlane.f32.xlu0 %v1469
          %v1471 = vpop.xlane.xlu0 %1470
          %s1472 = scalar_lea.vmem [#allocation4], 152
          %1473 = vst [vmem:[%s1472] sm:$0xff] %v1471
          %s1474 = scalar_lea.vmem %s852, 160
          %v1475 = vld [vmem:[%s1474] sm:$0xff]
          %v1476 = vadd.s32 %v855, 160
          %v1477 = vstv %s411
          %vm1478 = vcmp.gt.s32.totalorder %v1476, %v1477
          %v1479 = vsel %vm1478, %v1475, 0.0
          %v1480 = vrcp.pop %v851
          %v1481 = vmul.f32 %v851, %v1480
          %v1482 = vsub.f32 1.0, %v1481
          %v1483 = vmul.f32 %v1480, %v1482
          %v1484 = vadd.f32 %v1480, %v1483
          %vm1485 = vweird.f32 %v851
          %vm1486 = vweird.f32 %v1480
          %vm1487 = vmor %vm1485, %vm1486
          %v1488 = vsel %vm1487, %v1480, %v1484
          %v1489 = vand.u32 2147483647, %v851
          %vm1490 = vcmp.eq.f32.partialorder %v1489, 8.507059e+37
          %v1491 = vand.u32 %v851, 2147483648
          %v1492 = vor.u32 1.1754944e-38, %v1491
          %v1493 = vsel %vm1490, %v1492, %v1488
          %v1494 = vmul.f32 %v1479, %v1493
          %v1495 = vsel %vm754, 0.0, %v1494
          %v1496 = vstv %s411
          %v1497 = vlaneseq
          %v1498 = vand.u32 %v1497, 127
          %vm1499 = vcmp.eq.s32.totalorder %v1498, %v1496
          %v1500 = vsel %vm1499, %v1495, 0.0
          %1501 = vadd.xlane.f32.xlu0 %v1500
          %v1502 = vpop.xlane.xlu0 %1501
          %s1503 = scalar_lea.vmem [#allocation4], 160
          %1504 = vst [vmem:[%s1503] sm:$0xff] %v1502
          %s1505 = scalar_lea.vmem %s852, 168
          %v1506 = vld [vmem:[%s1505] sm:$0xff]
          %v1507 = vadd.s32 %v855, 168
          %v1508 = vstv %s411
          %vm1509 = vcmp.gt.s32.totalorder %v1507, %v1508
          %v1510 = vsel %vm1509, %v1506, 0.0
          %v1511 = vrcp.pop %v851
          %v1512 = vmul.f32 %v851, %v1511
          %v1513 = vsub.f32 1.0, %v1512
          %v1514 = vmul.f32 %v1511, %v1513
          %v1515 = vadd.f32 %v1511, %v1514
          %vm1516 = vweird.f32 %v851
          %vm1517 = vweird.f32 %v1511
          %vm1518 = vmor %vm1516, %vm1517
          %v1519 = vsel %vm1518, %v1511, %v1515
          %v1520 = vand.u32 2147483647, %v851
          %vm1521 = vcmp.eq.f32.partialorder %v1520, 8.507059e+37
          %v1522 = vand.u32 %v851, 2147483648
          %v1523 = vor.u32 1.1754944e-38, %v1522
          %v1524 = vsel %vm1521, %v1523, %v1519
          %v1525 = vmul.f32 %v1510, %v1524
          %v1526 = vsel %vm754, 0.0, %v1525
          %v1527 = vstv %s411
          %v1528 = vlaneseq
          %v1529 = vand.u32 %v1528, 127
          %vm1530 = vcmp.eq.s32.totalorder %v1529, %v1527
          %v1531 = vsel %vm1530, %v1526, 0.0
          %1532 = vadd.xlane.f32.xlu0 %v1531
          %v1533 = vpop.xlane.xlu0 %1532
          %s1534 = scalar_lea.vmem [#allocation4], 168
          %1535 = vst [vmem:[%s1534] sm:$0xff] %v1533
          %s1536 = scalar_lea.vmem %s852, 176
          %v1537 = vld [vmem:[%s1536] sm:$0xff]
          %v1538 = vadd.s32 %v855, 176
          %v1539 = vstv %s411
          %vm1540 = vcmp.gt.s32.totalorder %v1538, %v1539
          %v1541 = vsel %vm1540, %v1537, 0.0
          %v1542 = vrcp.pop %v851
          %v1543 = vmul.f32 %v851, %v1542
          %v1544 = vsub.f32 1.0, %v1543
          %v1545 = vmul.f32 %v1542, %v1544
          %v1546 = vadd.f32 %v1542, %v1545
          %vm1547 = vweird.f32 %v851
          %vm1548 = vweird.f32 %v1542
          %vm1549 = vmor %vm1547, %vm1548
          %v1550 = vsel %vm1549, %v1542, %v1546
          %v1551 = vand.u32 2147483647, %v851
          %vm1552 = vcmp.eq.f32.partialorder %v1551, 8.507059e+37
          %v1553 = vand.u32 %v851, 2147483648
          %v1554 = vor.u32 1.1754944e-38, %v1553
          %v1555 = vsel %vm1552, %v1554, %v1550
          %v1556 = vmul.f32 %v1541, %v1555
          %v1557 = vsel %vm754, 0.0, %v1556
          %v1558 = vstv %s411
          %v1559 = vlaneseq
          %v1560 = vand.u32 %v1559, 127
          %vm1561 = vcmp.eq.s32.totalorder %v1560, %v1558
          %v1562 = vsel %vm1561, %v1557, 0.0
          %1563 = vadd.xlane.f32.xlu0 %v1562
          %v1564 = vpop.xlane.xlu0 %1563
          %s1565 = scalar_lea.vmem [#allocation4], 176
          %1566 = vst [vmem:[%s1565] sm:$0xff] %v1564
          %s1567 = scalar_lea.vmem %s852, 184
          %v1568 = vld [vmem:[%s1567] sm:$0xff]
          %v1569 = vadd.s32 %v855, 184
          %v1570 = vstv %s411
          %vm1571 = vcmp.gt.s32.totalorder %v1569, %v1570
          %v1572 = vsel %vm1571, %v1568, 0.0
          %v1573 = vrcp.pop %v851
          %v1574 = vmul.f32 %v851, %v1573
          %v1575 = vsub.f32 1.0, %v1574
          %v1576 = vmul.f32 %v1573, %v1575
          %v1577 = vadd.f32 %v1573, %v1576
          %vm1578 = vweird.f32 %v851
          %vm1579 = vweird.f32 %v1573
          %vm1580 = vmor %vm1578, %vm1579
          %v1581 = vsel %vm1580, %v1573, %v1577
          %v1582 = vand.u32 2147483647, %v851
          %vm1583 = vcmp.eq.f32.partialorder %v1582, 8.507059e+37
          %v1584 = vand.u32 %v851, 2147483648
          %v1585 = vor.u32 1.1754944e-38, %v1584
          %v1586 = vsel %vm1583, %v1585, %v1581
          %v1587 = vmul.f32 %v1572, %v1586
          %v1588 = vsel %vm754, 0.0, %v1587
          %v1589 = vstv %s411
          %v1590 = vlaneseq
          %v1591 = vand.u32 %v1590, 127
          %vm1592 = vcmp.eq.s32.totalorder %v1591, %v1589
          %v1593 = vsel %vm1592, %v1588, 0.0
          %1594 = vadd.xlane.f32.xlu0 %v1593
          %v1595 = vpop.xlane.xlu0 %1594
          %s1596 = scalar_lea.vmem [#allocation4], 184
          %1597 = vst [vmem:[%s1596] sm:$0xff] %v1595
          %s1598 = scalar_lea.vmem %s852, 192
          %v1599 = vld [vmem:[%s1598] sm:$0xff]
          %v1600 = vadd.s32 %v855, 192
          %v1601 = vstv %s411
          %vm1602 = vcmp.gt.s32.totalorder %v1600, %v1601
          %v1603 = vsel %vm1602, %v1599, 0.0
          %v1604 = vrcp.pop %v851
          %v1605 = vmul.f32 %v851, %v1604
          %v1606 = vsub.f32 1.0, %v1605
          %v1607 = vmul.f32 %v1604, %v1606
          %v1608 = vadd.f32 %v1604, %v1607
          %vm1609 = vweird.f32 %v851
          %vm1610 = vweird.f32 %v1604
          %vm1611 = vmor %vm1609, %vm1610
          %v1612 = vsel %vm1611, %v1604, %v1608
          %v1613 = vand.u32 2147483647, %v851
          %vm1614 = vcmp.eq.f32.partialorder %v1613, 8.507059e+37
          %v1615 = vand.u32 %v851, 2147483648
          %v1616 = vor.u32 1.1754944e-38, %v1615
          %v1617 = vsel %vm1614, %v1616, %v1612
          %v1618 = vmul.f32 %v1603, %v1617
          %v1619 = vsel %vm754, 0.0, %v1618
          %v1620 = vstv %s411
          %v1621 = vlaneseq
          %v1622 = vand.u32 %v1621, 127
          %vm1623 = vcmp.eq.s32.totalorder %v1622, %v1620
          %v1624 = vsel %vm1623, %v1619, 0.0
          %1625 = vadd.xlane.f32.xlu0 %v1624
          %v1626 = vpop.xlane.xlu0 %1625
          %s1627 = scalar_lea.vmem [#allocation4], 192
          %1628 = vst [vmem:[%s1627] sm:$0xff] %v1626
          %s1629 = scalar_lea.vmem %s852, 200
          %v1630 = vld [vmem:[%s1629] sm:$0xff]
          %v1631 = vadd.s32 %v855, 200
          %v1632 = vstv %s411
          %vm1633 = vcmp.gt.s32.totalorder %v1631, %v1632
          %v1634 = vsel %vm1633, %v1630, 0.0
          %v1635 = vrcp.pop %v851
          %v1636 = vmul.f32 %v851, %v1635
          %v1637 = vsub.f32 1.0, %v1636
          %v1638 = vmul.f32 %v1635, %v1637
          %v1639 = vadd.f32 %v1635, %v1638
          %vm1640 = vweird.f32 %v851
          %vm1641 = vweird.f32 %v1635
          %vm1642 = vmor %vm1640, %vm1641
          %v1643 = vsel %vm1642, %v1635, %v1639
          %v1644 = vand.u32 2147483647, %v851
          %vm1645 = vcmp.eq.f32.partialorder %v1644, 8.507059e+37
          %v1646 = vand.u32 %v851, 2147483648
          %v1647 = vor.u32 1.1754944e-38, %v1646
          %v1648 = vsel %vm1645, %v1647, %v1643
          %v1649 = vmul.f32 %v1634, %v1648
          %v1650 = vsel %vm754, 0.0, %v1649
          %v1651 = vstv %s411
          %v1652 = vlaneseq
          %v1653 = vand.u32 %v1652, 127
          %vm1654 = vcmp.eq.s32.totalorder %v1653, %v1651
          %v1655 = vsel %vm1654, %v1650, 0.0
          %1656 = vadd.xlane.f32.xlu0 %v1655
          %v1657 = vpop.xlane.xlu0 %1656
          %s1658 = scalar_lea.vmem [#allocation4], 200
          %1659 = vst [vmem:[%s1658] sm:$0xff] %v1657
          %s1660 = scalar_lea.vmem %s852, 208
          %v1661 = vld [vmem:[%s1660] sm:$0xff]
          %v1662 = vadd.s32 %v855, 208
          %v1663 = vstv %s411
          %vm1664 = vcmp.gt.s32.totalorder %v1662, %v1663
          %v1665 = vsel %vm1664, %v1661, 0.0
          %v1666 = vrcp.pop %v851
          %v1667 = vmul.f32 %v851, %v1666
          %v1668 = vsub.f32 1.0, %v1667
          %v1669 = vmul.f32 %v1666, %v1668
          %v1670 = vadd.f32 %v1666, %v1669
          %vm1671 = vweird.f32 %v851
          %vm1672 = vweird.f32 %v1666
          %vm1673 = vmor %vm1671, %vm1672
          %v1674 = vsel %vm1673, %v1666, %v1670
          %v1675 = vand.u32 2147483647, %v851
          %vm1676 = vcmp.eq.f32.partialorder %v1675, 8.507059e+37
          %v1677 = vand.u32 %v851, 2147483648
          %v1678 = vor.u32 1.1754944e-38, %v1677
          %v1679 = vsel %vm1676, %v1678, %v1674
          %v1680 = vmul.f32 %v1665, %v1679
          %v1681 = vsel %vm754, 0.0, %v1680
          %v1682 = vstv %s411
          %v1683 = vlaneseq
          %v1684 = vand.u32 %v1683, 127
          %vm1685 = vcmp.eq.s32.totalorder %v1684, %v1682
          %v1686 = vsel %vm1685, %v1681, 0.0
          %1687 = vadd.xlane.f32.xlu0 %v1686
          %v1688 = vpop.xlane.xlu0 %1687
          %s1689 = scalar_lea.vmem [#allocation4], 208
          %1690 = vst [vmem:[%s1689] sm:$0xff] %v1688
          %s1691 = scalar_lea.vmem %s852, 216
          %v1692 = vld [vmem:[%s1691] sm:$0xff]
          %v1693 = vadd.s32 %v855, 216
          %v1694 = vstv %s411
          %vm1695 = vcmp.gt.s32.totalorder %v1693, %v1694
          %v1696 = vsel %vm1695, %v1692, 0.0
          %v1697 = vrcp.pop %v851
          %v1698 = vmul.f32 %v851, %v1697
          %v1699 = vsub.f32 1.0, %v1698
          %v1700 = vmul.f32 %v1697, %v1699
          %v1701 = vadd.f32 %v1697, %v1700
          %vm1702 = vweird.f32 %v851
          %vm1703 = vweird.f32 %v1697
          %vm1704 = vmor %vm1702, %vm1703
          %v1705 = vsel %vm1704, %v1697, %v1701
          %v1706 = vand.u32 2147483647, %v851
          %vm1707 = vcmp.eq.f32.partialorder %v1706, 8.507059e+37
          %v1708 = vand.u32 %v851, 2147483648
          %v1709 = vor.u32 1.1754944e-38, %v1708
          %v1710 = vsel %vm1707, %v1709, %v1705
          %v1711 = vmul.f32 %v1696, %v1710
          %v1712 = vsel %vm754, 0.0, %v1711
          %v1713 = vstv %s411
          %v1714 = vlaneseq
          %v1715 = vand.u32 %v1714, 127
          %vm1716 = vcmp.eq.s32.totalorder %v1715, %v1713
          %v1717 = vsel %vm1716, %v1712, 0.0
          %1718 = vadd.xlane.f32.xlu0 %v1717
          %v1719 = vpop.xlane.xlu0 %1718
          %s1720 = scalar_lea.vmem [#allocation4], 216
          %1721 = vst [vmem:[%s1720] sm:$0xff] %v1719
          %s1722 = scalar_lea.vmem %s852, 224
          %v1723 = vld [vmem:[%s1722] sm:$0xff]
          %v1724 = vadd.s32 %v855, 224
          %v1725 = vstv %s411
          %vm1726 = vcmp.gt.s32.totalorder %v1724, %v1725
          %v1727 = vsel %vm1726, %v1723, 0.0
          %v1728 = vrcp.pop %v851
          %v1729 = vmul.f32 %v851, %v1728
          %v1730 = vsub.f32 1.0, %v1729
          %v1731 = vmul.f32 %v1728, %v1730
          %v1732 = vadd.f32 %v1728, %v1731
          %vm1733 = vweird.f32 %v851
          %vm1734 = vweird.f32 %v1728
          %vm1735 = vmor %vm1733, %vm1734
          %v1736 = vsel %vm1735, %v1728, %v1732
          %v1737 = vand.u32 2147483647, %v851
          %vm1738 = vcmp.eq.f32.partialorder %v1737, 8.507059e+37
          %v1739 = vand.u32 %v851, 2147483648
          %v1740 = vor.u32 1.1754944e-38, %v1739
          %v1741 = vsel %vm1738, %v1740, %v1736
          %v1742 = vmul.f32 %v1727, %v1741
          %v1743 = vsel %vm754, 0.0, %v1742
          %v1744 = vstv %s411
          %v1745 = vlaneseq
          %v1746 = vand.u32 %v1745, 127
          %vm1747 = vcmp.eq.s32.totalorder %v1746, %v1744
          %v1748 = vsel %vm1747, %v1743, 0.0
          %1749 = vadd.xlane.f32.xlu0 %v1748
          %v1750 = vpop.xlane.xlu0 %1749
          %s1751 = scalar_lea.vmem [#allocation4], 224
          %1752 = vst [vmem:[%s1751] sm:$0xff] %v1750
          %s1753 = scalar_lea.vmem %s852, 232
          %v1754 = vld [vmem:[%s1753] sm:$0xff]
          %v1755 = vadd.s32 %v855, 232
          %v1756 = vstv %s411
          %vm1757 = vcmp.gt.s32.totalorder %v1755, %v1756
          %v1758 = vsel %vm1757, %v1754, 0.0
          %v1759 = vrcp.pop %v851
          %v1760 = vmul.f32 %v851, %v1759
          %v1761 = vsub.f32 1.0, %v1760
          %v1762 = vmul.f32 %v1759, %v1761
          %v1763 = vadd.f32 %v1759, %v1762
          %vm1764 = vweird.f32 %v851
          %vm1765 = vweird.f32 %v1759
          %vm1766 = vmor %vm1764, %vm1765
          %v1767 = vsel %vm1766, %v1759, %v1763
          %v1768 = vand.u32 2147483647, %v851
          %vm1769 = vcmp.eq.f32.partialorder %v1768, 8.507059e+37
          %v1770 = vand.u32 %v851, 2147483648
          %v1771 = vor.u32 1.1754944e-38, %v1770
          %v1772 = vsel %vm1769, %v1771, %v1767
          %v1773 = vmul.f32 %v1758, %v1772
          %v1774 = vsel %vm754, 0.0, %v1773
          %v1775 = vstv %s411
          %v1776 = vlaneseq
          %v1777 = vand.u32 %v1776, 127
          %vm1778 = vcmp.eq.s32.totalorder %v1777, %v1775
          %v1779 = vsel %vm1778, %v1774, 0.0
          %1780 = vadd.xlane.f32.xlu0 %v1779
          %v1781 = vpop.xlane.xlu0 %1780
          %s1782 = scalar_lea.vmem [#allocation4], 232
          %1783 = vst [vmem:[%s1782] sm:$0xff] %v1781
          %s1784 = scalar_lea.vmem %s852, 240
          %v1785 = vld [vmem:[%s1784] sm:$0xff]
          %v1786 = vadd.s32 %v855, 240
          %v1787 = vstv %s411
          %vm1788 = vcmp.gt.s32.totalorder %v1786, %v1787
          %v1789 = vsel %vm1788, %v1785, 0.0
          %v1790 = vrcp.pop %v851
          %v1791 = vmul.f32 %v851, %v1790
          %v1792 = vsub.f32 1.0, %v1791
          %v1793 = vmul.f32 %v1790, %v1792
          %v1794 = vadd.f32 %v1790, %v1793
          %vm1795 = vweird.f32 %v851
          %vm1796 = vweird.f32 %v1790
          %vm1797 = vmor %vm1795, %vm1796
          %v1798 = vsel %vm1797, %v1790, %v1794
          %v1799 = vand.u32 2147483647, %v851
          %vm1800 = vcmp.eq.f32.partialorder %v1799, 8.507059e+37
          %v1801 = vand.u32 %v851, 2147483648
          %v1802 = vor.u32 1.1754944e-38, %v1801
          %v1803 = vsel %vm1800, %v1802, %v1798
          %v1804 = vmul.f32 %v1789, %v1803
          %v1805 = vsel %vm754, 0.0, %v1804
          %v1806 = vstv %s411
          %v1807 = vlaneseq
          %v1808 = vand.u32 %v1807, 127
          %vm1809 = vcmp.eq.s32.totalorder %v1808, %v1806
          %v1810 = vsel %vm1809, %v1805, 0.0
          %1811 = vadd.xlane.f32.xlu0 %v1810
          %v1812 = vpop.xlane.xlu0 %1811
          %s1813 = scalar_lea.vmem [#allocation4], 240
          %1814 = vst [vmem:[%s1813] sm:$0xff] %v1812
          %s1815 = scalar_lea.vmem %s852, 248
          %v1816 = vld [vmem:[%s1815] sm:$0xff]
          %v1817 = vadd.s32 %v855, 248
          %v1818 = vstv %s411
          %vm1819 = vcmp.gt.s32.totalorder %v1817, %v1818
          %vm1820 = vcmp.lt.s32.totalorder %v1817, 256
          %vm1821 = vmand %vm1819, %vm1820
          %v1822 = vsel %vm1821, %v1816, 0.0
          %v1823 = vrcp.pop %v851
          %v1824 = vmul.f32 %v851, %v1823
          %v1825 = vsub.f32 1.0, %v1824
          %v1826 = vmul.f32 %v1823, %v1825
          %v1827 = vadd.f32 %v1823, %v1826
          %vm1828 = vweird.f32 %v851
          %vm1829 = vweird.f32 %v1823
          %vm1830 = vmor %vm1828, %vm1829
          %v1831 = vsel %vm1830, %v1823, %v1827
          %v1832 = vand.u32 2147483647, %v851
          %vm1833 = vcmp.eq.f32.partialorder %v1832, 8.507059e+37
          %v1834 = vand.u32 %v851, 2147483648
          %v1835 = vor.u32 1.1754944e-38, %v1834
          %v1836 = vsel %vm1833, %v1835, %v1831
          %v1837 = vmul.f32 %v1822, %v1836
          %v1838 = vsel %vm754, 0.0, %v1837
          %v1839 = vstv %s411
          %v1840 = vlaneseq
          %v1841 = vand.u32 %v1840, 127
          %vm1842 = vcmp.eq.s32.totalorder %v1841, %v1839
          %v1843 = vsel %vm1842, %v1838, 0.0
          %1844 = vadd.xlane.f32.xlu0 %v1843
          %v1845 = vpop.xlane.xlu0 %1844
          %s1846 = scalar_lea.vmem [#allocation4], 248
          %1847 = vst [vmem:[%s1846] sm:$0xff] %v1845
          %s1848 = scalar_lea.vmem [#allocation4], %s411
          %1849 = vst [vmem:[%s1848] sm:$0x1] 1.0
          %v1850 = vstv %s411
          %v1851 = vlaneseq
          %v1852 = vand.u32 %v1851, 127
          %vm1853 = vcmp.eq.s32.totalorder %v1852, %v1850
          %v1854 = vsel %vm1853, %v850, 0.0
          %1855 = vadd.xlane.f32.xlu0 %v1854
          %v1856 = vpop.xlane.xlu0 %1855
          %v1857 = vstv %s411
          %v1858 = vlaneseq
          %v1859 = vand.u32 %v1858, 127
          %vm1860 = vcmp.eq.s32.totalorder %v1859, %v1857
          %v1861 = vld [vmem:[%s282] ss:$0 sm:$0xff]
          %v1862 = vsel %vm1860, %v1856, %v1861
          %1863 = vst [vmem:[%s282] sm:$0x1] %v1862
          %s1864 = smov %s266
          %s1865 = smov [#allocation4]
          %v1866 = vlaneseq
          %v1867 = vshrl.u32 %v1866, 7
          %v1868 = vmov %v1867
          %v1870 = vld [vmem:[%s1865] sm:$0xff]
          %v1871 = vld [vmem:[%s1864] sm:$0xff]
          %v1872 = vmul.f32 %v1870, %v1871
          %v1873 = vadd.s32 %v1868, 8
          %s1874 = scalar_lea.vmem %s1865, 8
          %v1875 = vld [vmem:[%s1874] sm:$0xff]
          %s1876 = scalar_lea.vmem %s1864, 8
          %v1877 = vld [vmem:[%s1876] sm:$0xff]
          %v1878 = vmul.f32 %v1875, %v1877
          %v1879 = vadd.f32 %v1872, %v1878
          %v1880 = vadd.s32 %v1868, 16
          %s1881 = scalar_lea.vmem %s1865, 16
          %v1882 = vld [vmem:[%s1881] sm:$0xff]
          %s1883 = scalar_lea.vmem %s1864, 16
          %v1884 = vld [vmem:[%s1883] sm:$0xff]
          %v1885 = vmul.f32 %v1882, %v1884
          %v1886 = vadd.f32 %v1879, %v1885
          %v1887 = vadd.s32 %v1868, 24
          %s1888 = scalar_lea.vmem %s1865, 24
          %v1889 = vld [vmem:[%s1888] sm:$0xff]
          %s1890 = scalar_lea.vmem %s1864, 24
          %v1891 = vld [vmem:[%s1890] sm:$0xff]
          %v1892 = vmul.f32 %v1889, %v1891
          %v1893 = vadd.f32 %v1886, %v1892
          %v1894 = vadd.s32 %v1868, 32
          %s1895 = scalar_lea.vmem %s1865, 32
          %v1896 = vld [vmem:[%s1895] sm:$0xff]
          %s1897 = scalar_lea.vmem %s1864, 32
          %v1898 = vld [vmem:[%s1897] sm:$0xff]
          %v1899 = vmul.f32 %v1896, %v1898
          %v1900 = vadd.f32 %v1893, %v1899
          %v1901 = vadd.s32 %v1868, 40
          %s1902 = scalar_lea.vmem %s1865, 40
          %v1903 = vld [vmem:[%s1902] sm:$0xff]
          %s1904 = scalar_lea.vmem %s1864, 40
          %v1905 = vld [vmem:[%s1904] sm:$0xff]
          %v1906 = vmul.f32 %v1903, %v1905
          %v1907 = vadd.f32 %v1900, %v1906
          %v1908 = vadd.s32 %v1868, 48
          %s1909 = scalar_lea.vmem %s1865, 48
          %v1910 = vld [vmem:[%s1909] sm:$0xff]
          %s1911 = scalar_lea.vmem %s1864, 48
          %v1912 = vld [vmem:[%s1911] sm:$0xff]
          %v1913 = vmul.f32 %v1910, %v1912
          %v1914 = vadd.f32 %v1907, %v1913
          %v1915 = vadd.s32 %v1868, 56
          %s1916 = scalar_lea.vmem %s1865, 56
          %v1917 = vld [vmem:[%s1916] sm:$0xff]
          %s1918 = scalar_lea.vmem %s1864, 56
          %v1919 = vld [vmem:[%s1918] sm:$0xff]
          %v1920 = vmul.f32 %v1917, %v1919
          %v1921 = vadd.f32 %v1914, %v1920
          %v1922 = vadd.s32 %v1868, 64
          %s1923 = scalar_lea.vmem %s1865, 64
          %v1924 = vld [vmem:[%s1923] sm:$0xff]
          %s1925 = scalar_lea.vmem %s1864, 64
          %v1926 = vld [vmem:[%s1925] sm:$0xff]
          %v1927 = vmul.f32 %v1924, %v1926
          %v1928 = vadd.f32 %v1921, %v1927
          %v1929 = vadd.s32 %v1868, 72
          %s1930 = scalar_lea.vmem %s1865, 72
          %v1931 = vld [vmem:[%s1930] sm:$0xff]
          %s1932 = scalar_lea.vmem %s1864, 72
          %v1933 = vld [vmem:[%s1932] sm:$0xff]
          %v1934 = vmul.f32 %v1931, %v1933
          %v1935 = vadd.f32 %v1928, %v1934
          %v1936 = vadd.s32 %v1868, 80
          %s1937 = scalar_lea.vmem %s1865, 80
          %v1938 = vld [vmem:[%s1937] sm:$0xff]
          %s1939 = scalar_lea.vmem %s1864, 80
          %v1940 = vld [vmem:[%s1939] sm:$0xff]
          %v1941 = vmul.f32 %v1938, %v1940
          %v1942 = vadd.f32 %v1935, %v1941
          %v1943 = vadd.s32 %v1868, 88
          %s1944 = scalar_lea.vmem %s1865, 88
          %v1945 = vld [vmem:[%s1944] sm:$0xff]
          %s1946 = scalar_lea.vmem %s1864, 88
          %v1947 = vld [vmem:[%s1946] sm:$0xff]
          %v1948 = vmul.f32 %v1945, %v1947
          %v1949 = vadd.f32 %v1942, %v1948
          %v1950 = vadd.s32 %v1868, 96
          %s1951 = scalar_lea.vmem %s1865, 96
          %v1952 = vld [vmem:[%s1951] sm:$0xff]
          %s1953 = scalar_lea.vmem %s1864, 96
          %v1954 = vld [vmem:[%s1953] sm:$0xff]
          %v1955 = vmul.f32 %v1952, %v1954
          %v1956 = vadd.f32 %v1949, %v1955
          %v1957 = vadd.s32 %v1868, 104
          %s1958 = scalar_lea.vmem %s1865, 104
          %v1959 = vld [vmem:[%s1958] sm:$0xff]
          %s1960 = scalar_lea.vmem %s1864, 104
          %v1961 = vld [vmem:[%s1960] sm:$0xff]
          %v1962 = vmul.f32 %v1959, %v1961
          %v1963 = vadd.f32 %v1956, %v1962
          %v1964 = vadd.s32 %v1868, 112
          %s1965 = scalar_lea.vmem %s1865, 112
          %v1966 = vld [vmem:[%s1965] sm:$0xff]
          %s1967 = scalar_lea.vmem %s1864, 112
          %v1968 = vld [vmem:[%s1967] sm:$0xff]
          %v1969 = vmul.f32 %v1966, %v1968
          %v1970 = vadd.f32 %v1963, %v1969
          %v1971 = vadd.s32 %v1868, 120
          %s1972 = scalar_lea.vmem %s1865, 120
          %v1973 = vld [vmem:[%s1972] sm:$0xff]
          %s1974 = scalar_lea.vmem %s1864, 120
          %v1975 = vld [vmem:[%s1974] sm:$0xff]
          %v1976 = vmul.f32 %v1973, %v1975
          %v1977 = vadd.f32 %v1970, %v1976
          %v1978 = vadd.s32 %v1868, 128
          %s1979 = scalar_lea.vmem %s1865, 128
          %v1980 = vld [vmem:[%s1979] sm:$0xff]
          %s1981 = scalar_lea.vmem %s1864, 128
          %v1982 = vld [vmem:[%s1981] sm:$0xff]
          %v1983 = vmul.f32 %v1980, %v1982
          %v1984 = vadd.f32 %v1977, %v1983
          %v1985 = vadd.s32 %v1868, 136
          %s1986 = scalar_lea.vmem %s1865, 136
          %v1987 = vld [vmem:[%s1986] sm:$0xff]
          %s1988 = scalar_lea.vmem %s1864, 136
          %v1989 = vld [vmem:[%s1988] sm:$0xff]
          %v1990 = vmul.f32 %v1987, %v1989
          %v1991 = vadd.f32 %v1984, %v1990
          %v1992 = vadd.s32 %v1868, 144
          %s1993 = scalar_lea.vmem %s1865, 144
          %v1994 = vld [vmem:[%s1993] sm:$0xff]
          %s1995 = scalar_lea.vmem %s1864, 144
          %v1996 = vld [vmem:[%s1995] sm:$0xff]
          %v1997 = vmul.f32 %v1994, %v1996
          %v1998 = vadd.f32 %v1991, %v1997
          %v1999 = vadd.s32 %v1868, 152
          %s2000 = scalar_lea.vmem %s1865, 152
          %v2001 = vld [vmem:[%s2000] sm:$0xff]
          %s2002 = scalar_lea.vmem %s1864, 152
          %v2003 = vld [vmem:[%s2002] sm:$0xff]
          %v2004 = vmul.f32 %v2001, %v2003
          %v2005 = vadd.f32 %v1998, %v2004
          %v2006 = vadd.s32 %v1868, 160
          %s2007 = scalar_lea.vmem %s1865, 160
          %v2008 = vld [vmem:[%s2007] sm:$0xff]
          %s2009 = scalar_lea.vmem %s1864, 160
          %v2010 = vld [vmem:[%s2009] sm:$0xff]
          %v2011 = vmul.f32 %v2008, %v2010
          %v2012 = vadd.f32 %v2005, %v2011
          %v2013 = vadd.s32 %v1868, 168
          %s2014 = scalar_lea.vmem %s1865, 168
          %v2015 = vld [vmem:[%s2014] sm:$0xff]
          %s2016 = scalar_lea.vmem %s1864, 168
          %v2017 = vld [vmem:[%s2016] sm:$0xff]
          %v2018 = vmul.f32 %v2015, %v2017
          %v2019 = vadd.f32 %v2012, %v2018
          %v2020 = vadd.s32 %v1868, 176
          %s2021 = scalar_lea.vmem %s1865, 176
          %v2022 = vld [vmem:[%s2021] sm:$0xff]
          %s2023 = scalar_lea.vmem %s1864, 176
          %v2024 = vld [vmem:[%s2023] sm:$0xff]
          %v2025 = vmul.f32 %v2022, %v2024
          %v2026 = vadd.f32 %v2019, %v2025
          %v2027 = vadd.s32 %v1868, 184
          %s2028 = scalar_lea.vmem %s1865, 184
          %v2029 = vld [vmem:[%s2028] sm:$0xff]
          %s2030 = scalar_lea.vmem %s1864, 184
          %v2031 = vld [vmem:[%s2030] sm:$0xff]
          %v2032 = vmul.f32 %v2029, %v2031
          %v2033 = vadd.f32 %v2026, %v2032
          %v2034 = vadd.s32 %v1868, 192
          %s2035 = scalar_lea.vmem %s1865, 192
          %v2036 = vld [vmem:[%s2035] sm:$0xff]
          %s2037 = scalar_lea.vmem %s1864, 192
          %v2038 = vld [vmem:[%s2037] sm:$0xff]
          %v2039 = vmul.f32 %v2036, %v2038
          %v2040 = vadd.f32 %v2033, %v2039
          %v2041 = vadd.s32 %v1868, 200
          %s2042 = scalar_lea.vmem %s1865, 200
          %v2043 = vld [vmem:[%s2042] sm:$0xff]
          %s2044 = scalar_lea.vmem %s1864, 200
          %v2045 = vld [vmem:[%s2044] sm:$0xff]
          %v2046 = vmul.f32 %v2043, %v2045
          %v2047 = vadd.f32 %v2040, %v2046
          %v2048 = vadd.s32 %v1868, 208
          %s2049 = scalar_lea.vmem %s1865, 208
          %v2050 = vld [vmem:[%s2049] sm:$0xff]
          %s2051 = scalar_lea.vmem %s1864, 208
          %v2052 = vld [vmem:[%s2051] sm:$0xff]
          %v2053 = vmul.f32 %v2050, %v2052
          %v2054 = vadd.f32 %v2047, %v2053
          %v2055 = vadd.s32 %v1868, 216
          %s2056 = scalar_lea.vmem %s1865, 216
          %v2057 = vld [vmem:[%s2056] sm:$0xff]
          %s2058 = scalar_lea.vmem %s1864, 216
          %v2059 = vld [vmem:[%s2058] sm:$0xff]
          %v2060 = vmul.f32 %v2057, %v2059
          %v2061 = vadd.f32 %v2054, %v2060
          %v2062 = vadd.s32 %v1868, 224
          %s2063 = scalar_lea.vmem %s1865, 224
          %v2064 = vld [vmem:[%s2063] sm:$0xff]
          %s2065 = scalar_lea.vmem %s1864, 224
          %v2066 = vld [vmem:[%s2065] sm:$0xff]
          %v2067 = vmul.f32 %v2064, %v2066
          %v2068 = vadd.f32 %v2061, %v2067
          %v2069 = vadd.s32 %v1868, 232
          %s2070 = scalar_lea.vmem %s1865, 232
          %v2071 = vld [vmem:[%s2070] sm:$0xff]
          %s2072 = scalar_lea.vmem %s1864, 232
          %v2073 = vld [vmem:[%s2072] sm:$0xff]
          %v2074 = vmul.f32 %v2071, %v2073
          %v2075 = vadd.f32 %v2068, %v2074
          %v2076 = vadd.s32 %v1868, 240
          %s2077 = scalar_lea.vmem %s1865, 240
          %v2078 = vld [vmem:[%s2077] sm:$0xff]
          %s2079 = scalar_lea.vmem %s1864, 240
          %v2080 = vld [vmem:[%s2079] sm:$0xff]
          %v2081 = vmul.f32 %v2078, %v2080
          %v2082 = vadd.f32 %v2075, %v2081
          %v2083 = vadd.s32 %v1868, 248
          %s2084 = scalar_lea.vmem %s1865, 248
          %v2085 = vld [vmem:[%s2084] sm:$0xff]
          %s2086 = scalar_lea.vmem %s1864, 248
          %v2087 = vld [vmem:[%s2086] sm:$0xff]
          %v2088 = vmul.f32 %v2085, %v2087
          %vm2089 = vcmp.lt.s32.totalorder %v2083, 256
          %v2090 = vsel %vm2089, %v2088, 0.0
          %v2091 = vadd.f32 %v2082, %v2090
          %v2092 = vrot.slane %v2091, 4
          %v2093 = vadd.f32 %v2091, %v2092
          %v2094 = vrot.slane %v2093, 2
          %v2095 = vadd.f32 %v2093, %v2094
          %v2096 = vrot.slane %v2095, 1
          %v2097 = vadd.f32 %v2095, %v2096
          %s2098 = smov %s1864
          %s2099 = smov %s1865
          %v2100 = vlaneseq
          %v2101 = vshrl.u32 %v2100, 7
          %v2102 = vmov %v2101
          %v2103 = vmul.f32 %v2097, %v1856
          %v2105 = vlaneseq
          %v2106 = vand.u32 %v2105, 127
          %v2107 = vld [vmem:[%s2099] sm:$0xff]
          %v2108 = vmul.f32 %v2107, %v2103
          %v2109 = vld [vmem:[%s2098] sm:$0xff]
          %v2110 = vstv %s411
          %vm2111 = vcmp.gt.s32.totalorder %v2106, %v2110
          %v2112 = vsub.f32 %v2109, %v2108
          %v2113 = vsel %vm2111, %v2112, %v2109
          %v2114 = vstv %s411
          %v2115 = vlaneseq
          %v2116 = vand.u32 %v2115, 127
          %vm2117 = vcmp.eq.s32.totalorder %v2116, %v2114
          %v2118 = vstv %s411
          %vm2119 = vcmp.ge.s32.totalorder %v2102, %v2118
          %vm2120 = vmand %vm2117, %vm2119
          %v2121 = vsel %vm2120, %v2107, %v2113
          %2122 = vst [vmem:[%s2098] sm:$0xff] %v2121
          %v2123 = vadd.s32 %v2102, 8
          %v2124 = vlaneseq
          %v2125 = vand.u32 %v2124, 127
          %s2126 = scalar_lea.vmem %s2099, 8
          %v2127 = vld [vmem:[%s2126] sm:$0xff]
          %v2128 = vmul.f32 %v2127, %v2103
          %s2129 = scalar_lea.vmem %s2098, 8
          %v2130 = vld [vmem:[%s2129] sm:$0xff]
          %v2131 = vstv %s411
          %vm2132 = vcmp.gt.s32.totalorder %v2125, %v2131
          %v2133 = vsub.f32 %v2130, %v2128
          %v2134 = vsel %vm2132, %v2133, %v2130
          %v2135 = vstv %s411
          %v2136 = vlaneseq
          %v2137 = vand.u32 %v2136, 127
          %vm2138 = vcmp.eq.s32.totalorder %v2137, %v2135
          %v2139 = vstv %s411
          %vm2140 = vcmp.ge.s32.totalorder %v2123, %v2139
          %vm2141 = vmand %vm2138, %vm2140
          %v2142 = vsel %vm2141, %v2127, %v2134
          %2143 = vst [vmem:[%s2129] sm:$0xff] %v2142
          %v2144 = vadd.s32 %v2102, 16
          %v2145 = vlaneseq
          %v2146 = vand.u32 %v2145, 127
          %s2147 = scalar_lea.vmem %s2099, 16
          %v2148 = vld [vmem:[%s2147] sm:$0xff]
          %v2149 = vmul.f32 %v2148, %v2103
          %s2150 = scalar_lea.vmem %s2098, 16
          %v2151 = vld [vmem:[%s2150] sm:$0xff]
          %v2152 = vstv %s411
          %vm2153 = vcmp.gt.s32.totalorder %v2146, %v2152
          %v2154 = vsub.f32 %v2151, %v2149
          %v2155 = vsel %vm2153, %v2154, %v2151
          %v2156 = vstv %s411
          %v2157 = vlaneseq
          %v2158 = vand.u32 %v2157, 127
          %vm2159 = vcmp.eq.s32.totalorder %v2158, %v2156
          %v2160 = vstv %s411
          %vm2161 = vcmp.ge.s32.totalorder %v2144, %v2160
          %vm2162 = vmand %vm2159, %vm2161
          %v2163 = vsel %vm2162, %v2148, %v2155
          %2164 = vst [vmem:[%s2150] sm:$0xff] %v2163
          %v2165 = vadd.s32 %v2102, 24
          %v2166 = vlaneseq
          %v2167 = vand.u32 %v2166, 127
          %s2168 = scalar_lea.vmem %s2099, 24
          %v2169 = vld [vmem:[%s2168] sm:$0xff]
          %v2170 = vmul.f32 %v2169, %v2103
          %s2171 = scalar_lea.vmem %s2098, 24
          %v2172 = vld [vmem:[%s2171] sm:$0xff]
          %v2173 = vstv %s411
          %vm2174 = vcmp.gt.s32.totalorder %v2167, %v2173
          %v2175 = vsub.f32 %v2172, %v2170
          %v2176 = vsel %vm2174, %v2175, %v2172
          %v2177 = vstv %s411
          %v2178 = vlaneseq
          %v2179 = vand.u32 %v2178, 127
          %vm2180 = vcmp.eq.s32.totalorder %v2179, %v2177
          %v2181 = vstv %s411
          %vm2182 = vcmp.ge.s32.totalorder %v2165, %v2181
          %vm2183 = vmand %vm2180, %vm2182
          %v2184 = vsel %vm2183, %v2169, %v2176
          %2185 = vst [vmem:[%s2171] sm:$0xff] %v2184
          %v2186 = vadd.s32 %v2102, 32
          %v2187 = vlaneseq
          %v2188 = vand.u32 %v2187, 127
          %s2189 = scalar_lea.vmem %s2099, 32
          %v2190 = vld [vmem:[%s2189] sm:$0xff]
          %v2191 = vmul.f32 %v2190, %v2103
          %s2192 = scalar_lea.vmem %s2098, 32
          %v2193 = vld [vmem:[%s2192] sm:$0xff]
          %v2194 = vstv %s411
          %vm2195 = vcmp.gt.s32.totalorder %v2188, %v2194
          %v2196 = vsub.f32 %v2193, %v2191
          %v2197 = vsel %vm2195, %v2196, %v2193
          %v2198 = vstv %s411
          %v2199 = vlaneseq
          %v2200 = vand.u32 %v2199, 127
          %vm2201 = vcmp.eq.s32.totalorder %v2200, %v2198
          %v2202 = vstv %s411
          %vm2203 = vcmp.ge.s32.totalorder %v2186, %v2202
          %vm2204 = vmand %vm2201, %vm2203
          %v2205 = vsel %vm2204, %v2190, %v2197
          %2206 = vst [vmem:[%s2192] sm:$0xff] %v2205
          %v2207 = vadd.s32 %v2102, 40
          %v2208 = vlaneseq
          %v2209 = vand.u32 %v2208, 127
          %s2210 = scalar_lea.vmem %s2099, 40
          %v2211 = vld [vmem:[%s2210] sm:$0xff]
          %v2212 = vmul.f32 %v2211, %v2103
          %s2213 = scalar_lea.vmem %s2098, 40
          %v2214 = vld [vmem:[%s2213] sm:$0xff]
          %v2215 = vstv %s411
          %vm2216 = vcmp.gt.s32.totalorder %v2209, %v2215
          %v2217 = vsub.f32 %v2214, %v2212
          %v2218 = vsel %vm2216, %v2217, %v2214
          %v2219 = vstv %s411
          %v2220 = vlaneseq
          %v2221 = vand.u32 %v2220, 127
          %vm2222 = vcmp.eq.s32.totalorder %v2221, %v2219
          %v2223 = vstv %s411
          %vm2224 = vcmp.ge.s32.totalorder %v2207, %v2223
          %vm2225 = vmand %vm2222, %vm2224
          %v2226 = vsel %vm2225, %v2211, %v2218
          %2227 = vst [vmem:[%s2213] sm:$0xff] %v2226
          %v2228 = vadd.s32 %v2102, 48
          %v2229 = vlaneseq
          %v2230 = vand.u32 %v2229, 127
          %s2231 = scalar_lea.vmem %s2099, 48
          %v2232 = vld [vmem:[%s2231] sm:$0xff]
          %v2233 = vmul.f32 %v2232, %v2103
          %s2234 = scalar_lea.vmem %s2098, 48
          %v2235 = vld [vmem:[%s2234] sm:$0xff]
          %v2236 = vstv %s411
          %vm2237 = vcmp.gt.s32.totalorder %v2230, %v2236
          %v2238 = vsub.f32 %v2235, %v2233
          %v2239 = vsel %vm2237, %v2238, %v2235
          %v2240 = vstv %s411
          %v2241 = vlaneseq
          %v2242 = vand.u32 %v2241, 127
          %vm2243 = vcmp.eq.s32.totalorder %v2242, %v2240
          %v2244 = vstv %s411
          %vm2245 = vcmp.ge.s32.totalorder %v2228, %v2244
          %vm2246 = vmand %vm2243, %vm2245
          %v2247 = vsel %vm2246, %v2232, %v2239
          %2248 = vst [vmem:[%s2234] sm:$0xff] %v2247
          %v2249 = vadd.s32 %v2102, 56
          %v2250 = vlaneseq
          %v2251 = vand.u32 %v2250, 127
          %s2252 = scalar_lea.vmem %s2099, 56
          %v2253 = vld [vmem:[%s2252] sm:$0xff]
          %v2254 = vmul.f32 %v2253, %v2103
          %s2255 = scalar_lea.vmem %s2098, 56
          %v2256 = vld [vmem:[%s2255] sm:$0xff]
          %v2257 = vstv %s411
          %vm2258 = vcmp.gt.s32.totalorder %v2251, %v2257
          %v2259 = vsub.f32 %v2256, %v2254
          %v2260 = vsel %vm2258, %v2259, %v2256
          %v2261 = vstv %s411
          %v2262 = vlaneseq
          %v2263 = vand.u32 %v2262, 127
          %vm2264 = vcmp.eq.s32.totalorder %v2263, %v2261
          %v2265 = vstv %s411
          %vm2266 = vcmp.ge.s32.totalorder %v2249, %v2265
          %vm2267 = vmand %vm2264, %vm2266
          %v2268 = vsel %vm2267, %v2253, %v2260
          %2269 = vst [vmem:[%s2255] sm:$0xff] %v2268
          %v2270 = vadd.s32 %v2102, 64
          %v2271 = vlaneseq
          %v2272 = vand.u32 %v2271, 127
          %s2273 = scalar_lea.vmem %s2099, 64
          %v2274 = vld [vmem:[%s2273] sm:$0xff]
          %v2275 = vmul.f32 %v2274, %v2103
          %s2276 = scalar_lea.vmem %s2098, 64
          %v2277 = vld [vmem:[%s2276] sm:$0xff]
          %v2278 = vstv %s411
          %vm2279 = vcmp.gt.s32.totalorder %v2272, %v2278
          %v2280 = vsub.f32 %v2277, %v2275
          %v2281 = vsel %vm2279, %v2280, %v2277
          %v2282 = vstv %s411
          %v2283 = vlaneseq
          %v2284 = vand.u32 %v2283, 127
          %vm2285 = vcmp.eq.s32.totalorder %v2284, %v2282
          %v2286 = vstv %s411
          %vm2287 = vcmp.ge.s32.totalorder %v2270, %v2286
          %vm2288 = vmand %vm2285, %vm2287
          %v2289 = vsel %vm2288, %v2274, %v2281
          %2290 = vst [vmem:[%s2276] sm:$0xff] %v2289
          %v2291 = vadd.s32 %v2102, 72
          %v2292 = vlaneseq
          %v2293 = vand.u32 %v2292, 127
          %s2294 = scalar_lea.vmem %s2099, 72
          %v2295 = vld [vmem:[%s2294] sm:$0xff]
          %v2296 = vmul.f32 %v2295, %v2103
          %s2297 = scalar_lea.vmem %s2098, 72
          %v2298 = vld [vmem:[%s2297] sm:$0xff]
          %v2299 = vstv %s411
          %vm2300 = vcmp.gt.s32.totalorder %v2293, %v2299
          %v2301 = vsub.f32 %v2298, %v2296
          %v2302 = vsel %vm2300, %v2301, %v2298
          %v2303 = vstv %s411
          %v2304 = vlaneseq
          %v2305 = vand.u32 %v2304, 127
          %vm2306 = vcmp.eq.s32.totalorder %v2305, %v2303
          %v2307 = vstv %s411
          %vm2308 = vcmp.ge.s32.totalorder %v2291, %v2307
          %vm2309 = vmand %vm2306, %vm2308
          %v2310 = vsel %vm2309, %v2295, %v2302
          %2311 = vst [vmem:[%s2297] sm:$0xff] %v2310
          %v2312 = vadd.s32 %v2102, 80
          %v2313 = vlaneseq
          %v2314 = vand.u32 %v2313, 127
          %s2315 = scalar_lea.vmem %s2099, 80
          %v2316 = vld [vmem:[%s2315] sm:$0xff]
          %v2317 = vmul.f32 %v2316, %v2103
          %s2318 = scalar_lea.vmem %s2098, 80
          %v2319 = vld [vmem:[%s2318] sm:$0xff]
          %v2320 = vstv %s411
          %vm2321 = vcmp.gt.s32.totalorder %v2314, %v2320
          %v2322 = vsub.f32 %v2319, %v2317
          %v2323 = vsel %vm2321, %v2322, %v2319
          %v2324 = vstv %s411
          %v2325 = vlaneseq
          %v2326 = vand.u32 %v2325, 127
          %vm2327 = vcmp.eq.s32.totalorder %v2326, %v2324
          %v2328 = vstv %s411
          %vm2329 = vcmp.ge.s32.totalorder %v2312, %v2328
          %vm2330 = vmand %vm2327, %vm2329
          %v2331 = vsel %vm2330, %v2316, %v2323
          %2332 = vst [vmem:[%s2318] sm:$0xff] %v2331
          %v2333 = vadd.s32 %v2102, 88
          %v2334 = vlaneseq
          %v2335 = vand.u32 %v2334, 127
          %s2336 = scalar_lea.vmem %s2099, 88
          %v2337 = vld [vmem:[%s2336] sm:$0xff]
          %v2338 = vmul.f32 %v2337, %v2103
          %s2339 = scalar_lea.vmem %s2098, 88
          %v2340 = vld [vmem:[%s2339] sm:$0xff]
          %v2341 = vstv %s411
          %vm2342 = vcmp.gt.s32.totalorder %v2335, %v2341
          %v2343 = vsub.f32 %v2340, %v2338
          %v2344 = vsel %vm2342, %v2343, %v2340
          %v2345 = vstv %s411
          %v2346 = vlaneseq
          %v2347 = vand.u32 %v2346, 127
          %vm2348 = vcmp.eq.s32.totalorder %v2347, %v2345
          %v2349 = vstv %s411
          %vm2350 = vcmp.ge.s32.totalorder %v2333, %v2349
          %vm2351 = vmand %vm2348, %vm2350
          %v2352 = vsel %vm2351, %v2337, %v2344
          %2353 = vst [vmem:[%s2339] sm:$0xff] %v2352
          %v2354 = vadd.s32 %v2102, 96
          %v2355 = vlaneseq
          %v2356 = vand.u32 %v2355, 127
          %s2357 = scalar_lea.vmem %s2099, 96
          %v2358 = vld [vmem:[%s2357] sm:$0xff]
          %v2359 = vmul.f32 %v2358, %v2103
          %s2360 = scalar_lea.vmem %s2098, 96
          %v2361 = vld [vmem:[%s2360] sm:$0xff]
          %v2362 = vstv %s411
          %vm2363 = vcmp.gt.s32.totalorder %v2356, %v2362
          %v2364 = vsub.f32 %v2361, %v2359
          %v2365 = vsel %vm2363, %v2364, %v2361
          %v2366 = vstv %s411
          %v2367 = vlaneseq
          %v2368 = vand.u32 %v2367, 127
          %vm2369 = vcmp.eq.s32.totalorder %v2368, %v2366
          %v2370 = vstv %s411
          %vm2371 = vcmp.ge.s32.totalorder %v2354, %v2370
          %vm2372 = vmand %vm2369, %vm2371
          %v2373 = vsel %vm2372, %v2358, %v2365
          %2374 = vst [vmem:[%s2360] sm:$0xff] %v2373
          %v2375 = vadd.s32 %v2102, 104
          %v2376 = vlaneseq
          %v2377 = vand.u32 %v2376, 127
          %s2378 = scalar_lea.vmem %s2099, 104
          %v2379 = vld [vmem:[%s2378] sm:$0xff]
          %v2380 = vmul.f32 %v2379, %v2103
          %s2381 = scalar_lea.vmem %s2098, 104
          %v2382 = vld [vmem:[%s2381] sm:$0xff]
          %v2383 = vstv %s411
          %vm2384 = vcmp.gt.s32.totalorder %v2377, %v2383
          %v2385 = vsub.f32 %v2382, %v2380
          %v2386 = vsel %vm2384, %v2385, %v2382
          %v2387 = vstv %s411
          %v2388 = vlaneseq
          %v2389 = vand.u32 %v2388, 127
          %vm2390 = vcmp.eq.s32.totalorder %v2389, %v2387
          %v2391 = vstv %s411
          %vm2392 = vcmp.ge.s32.totalorder %v2375, %v2391
          %vm2393 = vmand %vm2390, %vm2392
          %v2394 = vsel %vm2393, %v2379, %v2386
          %2395 = vst [vmem:[%s2381] sm:$0xff] %v2394
          %v2396 = vadd.s32 %v2102, 112
          %v2397 = vlaneseq
          %v2398 = vand.u32 %v2397, 127
          %s2399 = scalar_lea.vmem %s2099, 112
          %v2400 = vld [vmem:[%s2399] sm:$0xff]
          %v2401 = vmul.f32 %v2400, %v2103
          %s2402 = scalar_lea.vmem %s2098, 112
          %v2403 = vld [vmem:[%s2402] sm:$0xff]
          %v2404 = vstv %s411
          %vm2405 = vcmp.gt.s32.totalorder %v2398, %v2404
          %v2406 = vsub.f32 %v2403, %v2401
          %v2407 = vsel %vm2405, %v2406, %v2403
          %v2408 = vstv %s411
          %v2409 = vlaneseq
          %v2410 = vand.u32 %v2409, 127
          %vm2411 = vcmp.eq.s32.totalorder %v2410, %v2408
          %v2412 = vstv %s411
          %vm2413 = vcmp.ge.s32.totalorder %v2396, %v2412
          %vm2414 = vmand %vm2411, %vm2413
          %v2415 = vsel %vm2414, %v2400, %v2407
          %2416 = vst [vmem:[%s2402] sm:$0xff] %v2415
          %v2417 = vadd.s32 %v2102, 120
          %v2418 = vlaneseq
          %v2419 = vand.u32 %v2418, 127
          %s2420 = scalar_lea.vmem %s2099, 120
          %v2421 = vld [vmem:[%s2420] sm:$0xff]
          %v2422 = vmul.f32 %v2421, %v2103
          %s2423 = scalar_lea.vmem %s2098, 120
          %v2424 = vld [vmem:[%s2423] sm:$0xff]
          %v2425 = vstv %s411
          %vm2426 = vcmp.gt.s32.totalorder %v2419, %v2425
          %v2427 = vsub.f32 %v2424, %v2422
          %v2428 = vsel %vm2426, %v2427, %v2424
          %v2429 = vstv %s411
          %v2430 = vlaneseq
          %v2431 = vand.u32 %v2430, 127
          %vm2432 = vcmp.eq.s32.totalorder %v2431, %v2429
          %v2433 = vstv %s411
          %vm2434 = vcmp.ge.s32.totalorder %v2417, %v2433
          %vm2435 = vmand %vm2432, %vm2434
          %v2436 = vsel %vm2435, %v2421, %v2428
          %2437 = vst [vmem:[%s2423] sm:$0xff] %v2436
          %v2438 = vadd.s32 %v2102, 128
          %v2439 = vlaneseq
          %v2440 = vand.u32 %v2439, 127
          %s2441 = scalar_lea.vmem %s2099, 128
          %v2442 = vld [vmem:[%s2441] sm:$0xff]
          %v2443 = vmul.f32 %v2442, %v2103
          %s2444 = scalar_lea.vmem %s2098, 128
          %v2445 = vld [vmem:[%s2444] sm:$0xff]
          %v2446 = vstv %s411
          %vm2447 = vcmp.gt.s32.totalorder %v2440, %v2446
          %v2448 = vsub.f32 %v2445, %v2443
          %v2449 = vsel %vm2447, %v2448, %v2445
          %v2450 = vstv %s411
          %v2451 = vlaneseq
          %v2452 = vand.u32 %v2451, 127
          %vm2453 = vcmp.eq.s32.totalorder %v2452, %v2450
          %v2454 = vstv %s411
          %vm2455 = vcmp.ge.s32.totalorder %v2438, %v2454
          %vm2456 = vmand %vm2453, %vm2455
          %v2457 = vsel %vm2456, %v2442, %v2449
          %2458 = vst [vmem:[%s2444] sm:$0xff] %v2457
          %v2459 = vadd.s32 %v2102, 136
          %v2460 = vlaneseq
          %v2461 = vand.u32 %v2460, 127
          %s2462 = scalar_lea.vmem %s2099, 136
          %v2463 = vld [vmem:[%s2462] sm:$0xff]
          %v2464 = vmul.f32 %v2463, %v2103
          %s2465 = scalar_lea.vmem %s2098, 136
          %v2466 = vld [vmem:[%s2465] sm:$0xff]
          %v2467 = vstv %s411
          %vm2468 = vcmp.gt.s32.totalorder %v2461, %v2467
          %v2469 = vsub.f32 %v2466, %v2464
          %v2470 = vsel %vm2468, %v2469, %v2466
          %v2471 = vstv %s411
          %v2472 = vlaneseq
          %v2473 = vand.u32 %v2472, 127
          %vm2474 = vcmp.eq.s32.totalorder %v2473, %v2471
          %v2475 = vstv %s411
          %vm2476 = vcmp.ge.s32.totalorder %v2459, %v2475
          %vm2477 = vmand %vm2474, %vm2476
          %v2478 = vsel %vm2477, %v2463, %v2470
          %2479 = vst [vmem:[%s2465] sm:$0xff] %v2478
          %v2480 = vadd.s32 %v2102, 144
          %v2481 = vlaneseq
          %v2482 = vand.u32 %v2481, 127
          %s2483 = scalar_lea.vmem %s2099, 144
          %v2484 = vld [vmem:[%s2483] sm:$0xff]
          %v2485 = vmul.f32 %v2484, %v2103
          %s2486 = scalar_lea.vmem %s2098, 144
          %v2487 = vld [vmem:[%s2486] sm:$0xff]
          %v2488 = vstv %s411
          %vm2489 = vcmp.gt.s32.totalorder %v2482, %v2488
          %v2490 = vsub.f32 %v2487, %v2485
          %v2491 = vsel %vm2489, %v2490, %v2487
          %v2492 = vstv %s411
          %v2493 = vlaneseq
          %v2494 = vand.u32 %v2493, 127
          %vm2495 = vcmp.eq.s32.totalorder %v2494, %v2492
          %v2496 = vstv %s411
          %vm2497 = vcmp.ge.s32.totalorder %v2480, %v2496
          %vm2498 = vmand %vm2495, %vm2497
          %v2499 = vsel %vm2498, %v2484, %v2491
          %2500 = vst [vmem:[%s2486] sm:$0xff] %v2499
          %v2501 = vadd.s32 %v2102, 152
          %v2502 = vlaneseq
          %v2503 = vand.u32 %v2502, 127
          %s2504 = scalar_lea.vmem %s2099, 152
          %v2505 = vld [vmem:[%s2504] sm:$0xff]
          %v2506 = vmul.f32 %v2505, %v2103
          %s2507 = scalar_lea.vmem %s2098, 152
          %v2508 = vld [vmem:[%s2507] sm:$0xff]
          %v2509 = vstv %s411
          %vm2510 = vcmp.gt.s32.totalorder %v2503, %v2509
          %v2511 = vsub.f32 %v2508, %v2506
          %v2512 = vsel %vm2510, %v2511, %v2508
          %v2513 = vstv %s411
          %v2514 = vlaneseq
          %v2515 = vand.u32 %v2514, 127
          %vm2516 = vcmp.eq.s32.totalorder %v2515, %v2513
          %v2517 = vstv %s411
          %vm2518 = vcmp.ge.s32.totalorder %v2501, %v2517
          %vm2519 = vmand %vm2516, %vm2518
          %v2520 = vsel %vm2519, %v2505, %v2512
          %2521 = vst [vmem:[%s2507] sm:$0xff] %v2520
          %v2522 = vadd.s32 %v2102, 160
          %v2523 = vlaneseq
          %v2524 = vand.u32 %v2523, 127
          %s2525 = scalar_lea.vmem %s2099, 160
          %v2526 = vld [vmem:[%s2525] sm:$0xff]
          %v2527 = vmul.f32 %v2526, %v2103
          %s2528 = scalar_lea.vmem %s2098, 160
          %v2529 = vld [vmem:[%s2528] sm:$0xff]
          %v2530 = vstv %s411
          %vm2531 = vcmp.gt.s32.totalorder %v2524, %v2530
          %v2532 = vsub.f32 %v2529, %v2527
          %v2533 = vsel %vm2531, %v2532, %v2529
          %v2534 = vstv %s411
          %v2535 = vlaneseq
          %v2536 = vand.u32 %v2535, 127
          %vm2537 = vcmp.eq.s32.totalorder %v2536, %v2534
          %v2538 = vstv %s411
          %vm2539 = vcmp.ge.s32.totalorder %v2522, %v2538
          %vm2540 = vmand %vm2537, %vm2539
          %v2541 = vsel %vm2540, %v2526, %v2533
          %2542 = vst [vmem:[%s2528] sm:$0xff] %v2541
          %v2543 = vadd.s32 %v2102, 168
          %v2544 = vlaneseq
          %v2545 = vand.u32 %v2544, 127
          %s2546 = scalar_lea.vmem %s2099, 168
          %v2547 = vld [vmem:[%s2546] sm:$0xff]
          %v2548 = vmul.f32 %v2547, %v2103
          %s2549 = scalar_lea.vmem %s2098, 168
          %v2550 = vld [vmem:[%s2549] sm:$0xff]
          %v2551 = vstv %s411
          %vm2552 = vcmp.gt.s32.totalorder %v2545, %v2551
          %v2553 = vsub.f32 %v2550, %v2548
          %v2554 = vsel %vm2552, %v2553, %v2550
          %v2555 = vstv %s411
          %v2556 = vlaneseq
          %v2557 = vand.u32 %v2556, 127
          %vm2558 = vcmp.eq.s32.totalorder %v2557, %v2555
          %v2559 = vstv %s411
          %vm2560 = vcmp.ge.s32.totalorder %v2543, %v2559
          %vm2561 = vmand %vm2558, %vm2560
          %v2562 = vsel %vm2561, %v2547, %v2554
          %2563 = vst [vmem:[%s2549] sm:$0xff] %v2562
          %v2564 = vadd.s32 %v2102, 176
          %v2565 = vlaneseq
          %v2566 = vand.u32 %v2565, 127
          %s2567 = scalar_lea.vmem %s2099, 176
          %v2568 = vld [vmem:[%s2567] sm:$0xff]
          %v2569 = vmul.f32 %v2568, %v2103
          %s2570 = scalar_lea.vmem %s2098, 176
          %v2571 = vld [vmem:[%s2570] sm:$0xff]
          %v2572 = vstv %s411
          %vm2573 = vcmp.gt.s32.totalorder %v2566, %v2572
          %v2574 = vsub.f32 %v2571, %v2569
          %v2575 = vsel %vm2573, %v2574, %v2571
          %v2576 = vstv %s411
          %v2577 = vlaneseq
          %v2578 = vand.u32 %v2577, 127
          %vm2579 = vcmp.eq.s32.totalorder %v2578, %v2576
          %v2580 = vstv %s411
          %vm2581 = vcmp.ge.s32.totalorder %v2564, %v2580
          %vm2582 = vmand %vm2579, %vm2581
          %v2583 = vsel %vm2582, %v2568, %v2575
          %2584 = vst [vmem:[%s2570] sm:$0xff] %v2583
          %v2585 = vadd.s32 %v2102, 184
          %v2586 = vlaneseq
          %v2587 = vand.u32 %v2586, 127
          %s2588 = scalar_lea.vmem %s2099, 184
          %v2589 = vld [vmem:[%s2588] sm:$0xff]
          %v2590 = vmul.f32 %v2589, %v2103
          %s2591 = scalar_lea.vmem %s2098, 184
          %v2592 = vld [vmem:[%s2591] sm:$0xff]
          %v2593 = vstv %s411
          %vm2594 = vcmp.gt.s32.totalorder %v2587, %v2593
          %v2595 = vsub.f32 %v2592, %v2590
          %v2596 = vsel %vm2594, %v2595, %v2592
          %v2597 = vstv %s411
          %v2598 = vlaneseq
          %v2599 = vand.u32 %v2598, 127
          %vm2600 = vcmp.eq.s32.totalorder %v2599, %v2597
          %v2601 = vstv %s411
          %vm2602 = vcmp.ge.s32.totalorder %v2585, %v2601
          %vm2603 = vmand %vm2600, %vm2602
          %v2604 = vsel %vm2603, %v2589, %v2596
          %2605 = vst [vmem:[%s2591] sm:$0xff] %v2604
          %v2606 = vadd.s32 %v2102, 192
          %v2607 = vlaneseq
          %v2608 = vand.u32 %v2607, 127
          %s2609 = scalar_lea.vmem %s2099, 192
          %v2610 = vld [vmem:[%s2609] sm:$0xff]
          %v2611 = vmul.f32 %v2610, %v2103
          %s2612 = scalar_lea.vmem %s2098, 192
          %v2613 = vld [vmem:[%s2612] sm:$0xff]
          %v2614 = vstv %s411
          %vm2615 = vcmp.gt.s32.totalorder %v2608, %v2614
          %v2616 = vsub.f32 %v2613, %v2611
          %v2617 = vsel %vm2615, %v2616, %v2613
          %v2618 = vstv %s411
          %v2619 = vlaneseq
          %v2620 = vand.u32 %v2619, 127
          %vm2621 = vcmp.eq.s32.totalorder %v2620, %v2618
          %v2622 = vstv %s411
          %vm2623 = vcmp.ge.s32.totalorder %v2606, %v2622
          %vm2624 = vmand %vm2621, %vm2623
          %v2625 = vsel %vm2624, %v2610, %v2617
          %2626 = vst [vmem:[%s2612] sm:$0xff] %v2625
          %v2627 = vadd.s32 %v2102, 200
          %v2628 = vlaneseq
          %v2629 = vand.u32 %v2628, 127
          %s2630 = scalar_lea.vmem %s2099, 200
          %v2631 = vld [vmem:[%s2630] sm:$0xff]
          %v2632 = vmul.f32 %v2631, %v2103
          %s2633 = scalar_lea.vmem %s2098, 200
          %v2634 = vld [vmem:[%s2633] sm:$0xff]
          %v2635 = vstv %s411
          %vm2636 = vcmp.gt.s32.totalorder %v2629, %v2635
          %v2637 = vsub.f32 %v2634, %v2632
          %v2638 = vsel %vm2636, %v2637, %v2634
          %v2639 = vstv %s411
          %v2640 = vlaneseq
          %v2641 = vand.u32 %v2640, 127
          %vm2642 = vcmp.eq.s32.totalorder %v2641, %v2639
          %v2643 = vstv %s411
          %vm2644 = vcmp.ge.s32.totalorder %v2627, %v2643
          %vm2645 = vmand %vm2642, %vm2644
          %v2646 = vsel %vm2645, %v2631, %v2638
          %2647 = vst [vmem:[%s2633] sm:$0xff] %v2646
          %v2648 = vadd.s32 %v2102, 208
          %v2649 = vlaneseq
          %v2650 = vand.u32 %v2649, 127
          %s2651 = scalar_lea.vmem %s2099, 208
          %v2652 = vld [vmem:[%s2651] sm:$0xff]
          %v2653 = vmul.f32 %v2652, %v2103
          %s2654 = scalar_lea.vmem %s2098, 208
          %v2655 = vld [vmem:[%s2654] sm:$0xff]
          %v2656 = vstv %s411
          %vm2657 = vcmp.gt.s32.totalorder %v2650, %v2656
          %v2658 = vsub.f32 %v2655, %v2653
          %v2659 = vsel %vm2657, %v2658, %v2655
          %v2660 = vstv %s411
          %v2661 = vlaneseq
          %v2662 = vand.u32 %v2661, 127
          %vm2663 = vcmp.eq.s32.totalorder %v2662, %v2660
          %v2664 = vstv %s411
          %vm2665 = vcmp.ge.s32.totalorder %v2648, %v2664
          %vm2666 = vmand %vm2663, %vm2665
          %v2667 = vsel %vm2666, %v2652, %v2659
          %2668 = vst [vmem:[%s2654] sm:$0xff] %v2667
          %v2669 = vadd.s32 %v2102, 216
          %v2670 = vlaneseq
          %v2671 = vand.u32 %v2670, 127
          %s2672 = scalar_lea.vmem %s2099, 216
          %v2673 = vld [vmem:[%s2672] sm:$0xff]
          %v2674 = vmul.f32 %v2673, %v2103
          %s2675 = scalar_lea.vmem %s2098, 216
          %v2676 = vld [vmem:[%s2675] sm:$0xff]
          %v2677 = vstv %s411
          %vm2678 = vcmp.gt.s32.totalorder %v2671, %v2677
          %v2679 = vsub.f32 %v2676, %v2674
          %v2680 = vsel %vm2678, %v2679, %v2676
          %v2681 = vstv %s411
          %v2682 = vlaneseq
          %v2683 = vand.u32 %v2682, 127
          %vm2684 = vcmp.eq.s32.totalorder %v2683, %v2681
          %v2685 = vstv %s411
          %vm2686 = vcmp.ge.s32.totalorder %v2669, %v2685
          %vm2687 = vmand %vm2684, %vm2686
          %v2688 = vsel %vm2687, %v2673, %v2680
          %2689 = vst [vmem:[%s2675] sm:$0xff] %v2688
          %v2690 = vadd.s32 %v2102, 224
          %v2691 = vlaneseq
          %v2692 = vand.u32 %v2691, 127
          %s2693 = scalar_lea.vmem %s2099, 224
          %v2694 = vld [vmem:[%s2693] sm:$0xff]
          %v2695 = vmul.f32 %v2694, %v2103
          %s2696 = scalar_lea.vmem %s2098, 224
          %v2697 = vld [vmem:[%s2696] sm:$0xff]
          %v2698 = vstv %s411
          %vm2699 = vcmp.gt.s32.totalorder %v2692, %v2698
          %v2700 = vsub.f32 %v2697, %v2695
          %v2701 = vsel %vm2699, %v2700, %v2697
          %v2702 = vstv %s411
          %v2703 = vlaneseq
          %v2704 = vand.u32 %v2703, 127
          %vm2705 = vcmp.eq.s32.totalorder %v2704, %v2702
          %v2706 = vstv %s411
          %vm2707 = vcmp.ge.s32.totalorder %v2690, %v2706
          %vm2708 = vmand %vm2705, %vm2707
          %v2709 = vsel %vm2708, %v2694, %v2701
          %2710 = vst [vmem:[%s2696] sm:$0xff] %v2709
          %v2711 = vadd.s32 %v2102, 232
          %v2712 = vlaneseq
          %v2713 = vand.u32 %v2712, 127
          %s2714 = scalar_lea.vmem %s2099, 232
          %v2715 = vld [vmem:[%s2714] sm:$0xff]
          %v2716 = vmul.f32 %v2715, %v2103
          %s2717 = scalar_lea.vmem %s2098, 232
          %v2718 = vld [vmem:[%s2717] sm:$0xff]
          %v2719 = vstv %s411
          %vm2720 = vcmp.gt.s32.totalorder %v2713, %v2719
          %v2721 = vsub.f32 %v2718, %v2716
          %v2722 = vsel %vm2720, %v2721, %v2718
          %v2723 = vstv %s411
          %v2724 = vlaneseq
          %v2725 = vand.u32 %v2724, 127
          %vm2726 = vcmp.eq.s32.totalorder %v2725, %v2723
          %v2727 = vstv %s411
          %vm2728 = vcmp.ge.s32.totalorder %v2711, %v2727
          %vm2729 = vmand %vm2726, %vm2728
          %v2730 = vsel %vm2729, %v2715, %v2722
          %2731 = vst [vmem:[%s2717] sm:$0xff] %v2730
          %v2732 = vadd.s32 %v2102, 240
          %v2733 = vlaneseq
          %v2734 = vand.u32 %v2733, 127
          %s2735 = scalar_lea.vmem %s2099, 240
          %v2736 = vld [vmem:[%s2735] sm:$0xff]
          %v2737 = vmul.f32 %v2736, %v2103
          %s2738 = scalar_lea.vmem %s2098, 240
          %v2739 = vld [vmem:[%s2738] sm:$0xff]
          %v2740 = vstv %s411
          %vm2741 = vcmp.gt.s32.totalorder %v2734, %v2740
          %v2742 = vsub.f32 %v2739, %v2737
          %v2743 = vsel %vm2741, %v2742, %v2739
          %v2744 = vstv %s411
          %v2745 = vlaneseq
          %v2746 = vand.u32 %v2745, 127
          %vm2747 = vcmp.eq.s32.totalorder %v2746, %v2744
          %v2748 = vstv %s411
          %vm2749 = vcmp.ge.s32.totalorder %v2732, %v2748
          %vm2750 = vmand %vm2747, %vm2749
          %v2751 = vsel %vm2750, %v2736, %v2743
          %2752 = vst [vmem:[%s2738] sm:$0xff] %v2751
          %v2753 = vadd.s32 %v2102, 248
          %v2754 = vlaneseq
          %v2755 = vand.u32 %v2754, 127
          %s2756 = scalar_lea.vmem %s2099, 248
          %v2757 = vld [vmem:[%s2756] sm:$0xff]
          %v2758 = vmul.f32 %v2757, %v2103
          %s2759 = scalar_lea.vmem %s2098, 248
          %v2760 = vld [vmem:[%s2759] sm:$0xff]
          %v2761 = vstv %s411
          %vm2762 = vcmp.gt.s32.totalorder %v2755, %v2761
          %v2763 = vsub.f32 %v2760, %v2758
          %v2764 = vsel %vm2762, %v2763, %v2760
          %v2765 = vstv %s411
          %v2766 = vlaneseq
          %v2767 = vand.u32 %v2766, 127
          %vm2768 = vcmp.eq.s32.totalorder %v2767, %v2765
          %v2769 = vstv %s411
          %vm2770 = vcmp.ge.s32.totalorder %v2753, %v2769
          %vm2771 = vmand %vm2768, %vm2770
          %v2772 = vsel %vm2771, %v2757, %v2764
          %2773 = vst [vmem:[%s2759] sm:$0xff] %v2772
          %s2774 = scalar_lea.vmem %s2098, %s411
          %v2775 = vld [vmem:[%s2774] ss:$0 sm:$0xff]
          %v2776 = vstv %s411
          %v2777 = vlaneseq
          %v2778 = vand.u32 %v2777, 127
          %vm2779 = vcmp.eq.s32.totalorder %v2778, %v2776
          %v2780 = vsel %vm2779, %v849, %v2775
          %2781 = vst [vmem:[%s2774] sm:$0x1] %v2780
        $region59: #{custom-call.6} parent=53 // loop_footer
          %s415 = sadd.s32 1, %s411
        $region60: #{custom-call.6} parent=53 // loop_footer_branch
          %410 = sbr.rel target = $region56
        $region61: #{custom-call.6} parent=53 // loop_exit
          _
        %s2783 = ssub.s32 4, 1
        %v2784 = vld [vmem:[#allocation2] sm:%s2783]
        %s2786 = ssub.s32 4, 1
        %2787 = vst [vmem:[%s272] sm:%s2786] %v2784
        %s2788 = sand.u32 %s10, 1
        %s2789 = sand.u32 %s10, 1
        %s2790 = smul.addr %s2789, 256
        %s2791 = scalar_lea.vmem [#allocation1], %s2790
        %s2792 = sand.u32 %s49, 1
        %s2793 = sand.u32 %s49, 1
        %s2794 = smul.addr %s2793, 2
        %s2795 = scalar_lea.vmem [#allocation3], %s2794
        %s2796 = smul.u32 32, %s16
        %s2797 = sadd.s32 %s17, %s2796
        %s2798 = smul.addr %s15, 32
        %s2799 = sadd.s32 %s2797, %s2798
        %s2800 = smul.addr %s2799, 8
        %s2801 = scalar_lea.vmem %s1, %s2800
        // Predicated region
        $region62: #{custom-call.6} parent=53 // pred_check
          _
        $region63: #{custom-call.6} parent=53 // pred_check_branch
          %2803 = sbr.rel (0) target = $region65
        $region64: #{custom-call.6} parent=53 // pred_region
          // Predicated region
          $region66: #{custom-call.6} parent=64 // pred_check
            _
          $region67: #{custom-call.6} parent=64 // pred_check_branch
            %2805 = sbr.rel (0) target = $region69
          $region68: #{custom-call.6} parent=64 // pred_region
            // Predicated region
            $region81: #{custom-call.6} parent=68 // pred_check
              _
            $region82: #{custom-call.6} parent=68 // pred_check_branch
              %2883 = sbr.rel (0) target = $region84
            $region83: #{custom-call.6} parent=68 // pred_region
              loop: start=0, step=1, limit=1
              $region85: #{custom-call.6} parent=83 // loop_pre_header
                _
              $region86: #{custom-call.6} parent=83 // loop_header
                %s2885 = sphi 0, %s2889
                %p2886 = scmp.ge.s32.totalorder %s2885, 1
                %s2890 = sphi %s2791, %s2791
                %s2891 = sphi %s2801, %s2801
              $region87: #{custom-call.6} parent=83 // loop_header_branch
                %2888 = sbr.rel (%p2886) target = $region91
              $region88: #{custom-call.6} parent=83 // loop_body
                %v2892 = vld [vmem:[%s2890] sm:$0xff]
                %2893 = vst [vmem:[%s2891] sm:$0xff] %v2892
                %v2894 = vld [vmem:[%s2890 + $0x8] sm:$0xff]
                %2895 = vst [vmem:[%s2891 + $0x8] sm:$0xff] %v2894
                %v2896 = vld [vmem:[%s2890 + $0x10] sm:$0xff]
                %2897 = vst [vmem:[%s2891 + $0x10] sm:$0xff] %v2896
                %v2898 = vld [vmem:[%s2890 + $0x18] sm:$0xff]
                %2899 = vst [vmem:[%s2891 + $0x18] sm:$0xff] %v2898
                %v2900 = vld [vmem:[%s2890 + $0x20] sm:$0xff]
                %2901 = vst [vmem:[%s2891 + $0x20] sm:$0xff] %v2900
                %v2902 = vld [vmem:[%s2890 + $0x28] sm:$0xff]
                %2903 = vst [vmem:[%s2891 + $0x28] sm:$0xff] %v2902
                %v2904 = vld [vmem:[%s2890 + $0x30] sm:$0xff]
                %2905 = vst [vmem:[%s2891 + $0x30] sm:$0xff] %v2904
                %v2906 = vld [vmem:[%s2890 + $0x38] sm:$0xff]
                %2907 = vst [vmem:[%s2891 + $0x38] sm:$0xff] %v2906
                %v2908 = vld [vmem:[%s2890 + $0x40] sm:$0xff]
                %2909 = vst [vmem:[%s2891 + $0x40] sm:$0xff] %v2908
                %v2910 = vld [vmem:[%s2890 + $0x48] sm:$0xff]
                %2911 = vst [vmem:[%s2891 + $0x48] sm:$0xff] %v2910
                %v2912 = vld [vmem:[%s2890 + $0x50] sm:$0xff]
                %2913 = vst [vmem:[%s2891 + $0x50] sm:$0xff] %v2912
                %v2914 = vld [vmem:[%s2890 + $0x58] sm:$0xff]
                %2915 = vst [vmem:[%s2891 + $0x58] sm:$0xff] %v2914
                %v2916 = vld [vmem:[%s2890 + $0x60] sm:$0xff]
                %2917 = vst [vmem:[%s2891 + $0x60] sm:$0xff] %v2916
                %v2918 = vld [vmem:[%s2890 + $0x68] sm:$0xff]
                %2919 = vst [vmem:[%s2891 + $0x68] sm:$0xff] %v2918
                %v2920 = vld [vmem:[%s2890 + $0x70] sm:$0xff]
                %2921 = vst [vmem:[%s2891 + $0x70] sm:$0xff] %v2920
                %v2922 = vld [vmem:[%s2890 + $0x78] sm:$0xff]
                %2923 = vst [vmem:[%s2891 + $0x78] sm:$0xff] %v2922
                %v2924 = vld [vmem:[%s2890 + $0x80] sm:$0xff]
                %2925 = vst [vmem:[%s2891 + $0x80] sm:$0xff] %v2924
                %v2926 = vld [vmem:[%s2890 + $0x88] sm:$0xff]
                %2927 = vst [vmem:[%s2891 + $0x88] sm:$0xff] %v2926
                %v2928 = vld [vmem:[%s2890 + $0x90] sm:$0xff]
                %2929 = vst [vmem:[%s2891 + $0x90] sm:$0xff] %v2928
                %v2930 = vld [vmem:[%s2890 + $0x98] sm:$0xff]
                %2931 = vst [vmem:[%s2891 + $0x98] sm:$0xff] %v2930
                %v2932 = vld [vmem:[%s2890 + $0xa0] sm:$0xff]
                %2933 = vst [vmem:[%s2891 + $0xa0] sm:$0xff] %v2932
                %v2934 = vld [vmem:[%s2890 + $0xa8] sm:$0xff]
                %2935 = vst [vmem:[%s2891 + $0xa8] sm:$0xff] %v2934
                %v2936 = vld [vmem:[%s2890 + $0xb0] sm:$0xff]
                %2937 = vst [vmem:[%s2891 + $0xb0] sm:$0xff] %v2936
                %v2938 = vld [vmem:[%s2890 + $0xb8] sm:$0xff]
                %2939 = vst [vmem:[%s2891 + $0xb8] sm:$0xff] %v2938
                %v2940 = vld [vmem:[%s2890 + $0xc0] sm:$0xff]
                %2941 = vst [vmem:[%s2891 + $0xc0] sm:$0xff] %v2940
                %v2942 = vld [vmem:[%s2890 + $0xc8] sm:$0xff]
                %2943 = vst [vmem:[%s2891 + $0xc8] sm:$0xff] %v2942
                %v2944 = vld [vmem:[%s2890 + $0xd0] sm:$0xff]
                %2945 = vst [vmem:[%s2891 + $0xd0] sm:$0xff] %v2944
                %v2946 = vld [vmem:[%s2890 + $0xd8] sm:$0xff]
                %2947 = vst [vmem:[%s2891 + $0xd8] sm:$0xff] %v2946
                %v2948 = vld [vmem:[%s2890 + $0xe0] sm:$0xff]
                %2949 = vst [vmem:[%s2891 + $0xe0] sm:$0xff] %v2948
                %v2950 = vld [vmem:[%s2890 + $0xe8] sm:$0xff]
                %2951 = vst [vmem:[%s2891 + $0xe8] sm:$0xff] %v2950
                %v2952 = vld [vmem:[%s2890 + $0xf0] sm:$0xff]
                %2953 = vst [vmem:[%s2891 + $0xf0] sm:$0xff] %v2952
                %v2954 = vld [vmem:[%s2890 + $0xf8] sm:$0xff]
                %2955 = vst [vmem:[%s2891 + $0xf8] sm:$0xff] %v2954
              $region89: #{custom-call.6} parent=83 // loop_footer
                %s2889 = sadd.s32 1, %s2885
              $region90: #{custom-call.6} parent=83 // loop_footer_branch
                %2884 = sbr.rel target = $region86
              $region91: #{custom-call.6} parent=83 // loop_exit
                _
            $region84: #{custom-call.6} parent=68 // pred_fallthru
              _
            // Predicated region
            $region92: #{custom-call.6} parent=68 // pred_check
              _
            $region93: #{custom-call.6} parent=68 // pred_check_branch
              %2957 = sbr.rel target = $region95
            $region94: #{custom-call.6} parent=68 // pred_region
              _
            $region95: #{custom-call.6} parent=68 // pred_fallthru
              _
          $region69: #{custom-call.6} parent=64 // pred_fallthru
            _
          // Predicated region
          $region70: #{custom-call.6} parent=64 // pred_check
            _
          $region71: #{custom-call.6} parent=64 // pred_check_branch
            %2807 = sbr.rel target = $region73
          $region72: #{custom-call.6} parent=64 // pred_region
            %s2809 = ssub.s32 256, 1
            loop: start=0, step=1, limit=1
            $region74: #{custom-call.6} parent=72 // loop_pre_header
              _
            $region75: #{custom-call.6} parent=72 // loop_header
              %s2811 = sphi 0, %s2815
              %p2812 = scmp.ge.s32.totalorder %s2811, 1
              %s2816 = sphi %s2791, %s2791
              %s2817 = sphi %s2801, %s2801
            $region76: #{custom-call.6} parent=72 // loop_header_branch
              %2814 = sbr.rel (%p2812) target = $region80
            $region77: #{custom-call.6} parent=72 // loop_body
              %v2818 = vld [vmem:[%s2816] sm:%s2809]
              %2819 = vst [vmem:[%s2817] sm:%s2809] %v2818
              %v2820 = vld [vmem:[%s2816 + $0x8] sm:%s2809]
              %2821 = vst [vmem:[%s2817 + $0x8] sm:%s2809] %v2820
              %v2822 = vld [vmem:[%s2816 + $0x10] sm:%s2809]
              %2823 = vst [vmem:[%s2817 + $0x10] sm:%s2809] %v2822
              %v2824 = vld [vmem:[%s2816 + $0x18] sm:%s2809]
              %2825 = vst [vmem:[%s2817 + $0x18] sm:%s2809] %v2824
              %v2826 = vld [vmem:[%s2816 + $0x20] sm:%s2809]
              %2827 = vst [vmem:[%s2817 + $0x20] sm:%s2809] %v2826
              %v2828 = vld [vmem:[%s2816 + $0x28] sm:%s2809]
              %2829 = vst [vmem:[%s2817 + $0x28] sm:%s2809] %v2828
              %v2830 = vld [vmem:[%s2816 + $0x30] sm:%s2809]
              %2831 = vst [vmem:[%s2817 + $0x30] sm:%s2809] %v2830
              %v2832 = vld [vmem:[%s2816 + $0x38] sm:%s2809]
              %2833 = vst [vmem:[%s2817 + $0x38] sm:%s2809] %v2832
              %v2834 = vld [vmem:[%s2816 + $0x40] sm:%s2809]
              %2835 = vst [vmem:[%s2817 + $0x40] sm:%s2809] %v2834
              %v2836 = vld [vmem:[%s2816 + $0x48] sm:%s2809]
              %2837 = vst [vmem:[%s2817 + $0x48] sm:%s2809] %v2836
              %v2838 = vld [vmem:[%s2816 + $0x50] sm:%s2809]
              %2839 = vst [vmem:[%s2817 + $0x50] sm:%s2809] %v2838
              %v2840 = vld [vmem:[%s2816 + $0x58] sm:%s2809]
              %2841 = vst [vmem:[%s2817 + $0x58] sm:%s2809] %v2840
              %v2842 = vld [vmem:[%s2816 + $0x60] sm:%s2809]
              %2843 = vst [vmem:[%s2817 + $0x60] sm:%s2809] %v2842
              %v2844 = vld [vmem:[%s2816 + $0x68] sm:%s2809]
              %2845 = vst [vmem:[%s2817 + $0x68] sm:%s2809] %v2844
              %v2846 = vld [vmem:[%s2816 + $0x70] sm:%s2809]
              %2847 = vst [vmem:[%s2817 + $0x70] sm:%s2809] %v2846
              %v2848 = vld [vmem:[%s2816 + $0x78] sm:%s2809]
              %2849 = vst [vmem:[%s2817 + $0x78] sm:%s2809] %v2848
              %v2850 = vld [vmem:[%s2816 + $0x80] sm:%s2809]
              %2851 = vst [vmem:[%s2817 + $0x80] sm:%s2809] %v2850
              %v2852 = vld [vmem:[%s2816 + $0x88] sm:%s2809]
              %2853 = vst [vmem:[%s2817 + $0x88] sm:%s2809] %v2852
              %v2854 = vld [vmem:[%s2816 + $0x90] sm:%s2809]
              %2855 = vst [vmem:[%s2817 + $0x90] sm:%s2809] %v2854
              %v2856 = vld [vmem:[%s2816 + $0x98] sm:%s2809]
              %2857 = vst [vmem:[%s2817 + $0x98] sm:%s2809] %v2856
              %v2858 = vld [vmem:[%s2816 + $0xa0] sm:%s2809]
              %2859 = vst [vmem:[%s2817 + $0xa0] sm:%s2809] %v2858
              %v2860 = vld [vmem:[%s2816 + $0xa8] sm:%s2809]
              %2861 = vst [vmem:[%s2817 + $0xa8] sm:%s2809] %v2860
              %v2862 = vld [vmem:[%s2816 + $0xb0] sm:%s2809]
              %2863 = vst [vmem:[%s2817 + $0xb0] sm:%s2809] %v2862
              %v2864 = vld [vmem:[%s2816 + $0xb8] sm:%s2809]
              %2865 = vst [vmem:[%s2817 + $0xb8] sm:%s2809] %v2864
              %v2866 = vld [vmem:[%s2816 + $0xc0] sm:%s2809]
              %2867 = vst [vmem:[%s2817 + $0xc0] sm:%s2809] %v2866
              %v2868 = vld [vmem:[%s2816 + $0xc8] sm:%s2809]
              %2869 = vst [vmem:[%s2817 + $0xc8] sm:%s2809] %v2868
              %v2870 = vld [vmem:[%s2816 + $0xd0] sm:%s2809]
              %2871 = vst [vmem:[%s2817 + $0xd0] sm:%s2809] %v2870
              %v2872 = vld [vmem:[%s2816 + $0xd8] sm:%s2809]
              %2873 = vst [vmem:[%s2817 + $0xd8] sm:%s2809] %v2872
              %v2874 = vld [vmem:[%s2816 + $0xe0] sm:%s2809]
              %2875 = vst [vmem:[%s2817 + $0xe0] sm:%s2809] %v2874
              %v2876 = vld [vmem:[%s2816 + $0xe8] sm:%s2809]
              %2877 = vst [vmem:[%s2817 + $0xe8] sm:%s2809] %v2876
              %v2878 = vld [vmem:[%s2816 + $0xf0] sm:%s2809]
              %2879 = vst [vmem:[%s2817 + $0xf0] sm:%s2809] %v2878
              %v2880 = vld [vmem:[%s2816 + $0xf8] sm:%s2809]
              %2881 = vst [vmem:[%s2817 + $0xf8] sm:%s2809] %v2880
            $region78: #{custom-call.6} parent=72 // loop_footer
              %s2815 = sadd.s32 1, %s2811
            $region79: #{custom-call.6} parent=72 // loop_footer_branch
              %2810 = sbr.rel target = $region75
            $region80: #{custom-call.6} parent=72 // loop_exit
              _
          $region73: #{custom-call.6} parent=64 // pred_fallthru
            _
        $region65: #{custom-call.6} parent=53 // pred_fallthru
          _
        %2958 = vnop
        // Predicated region
        $region96: #{custom-call.6} parent=53 // pred_check
          %p2959 = pneg %p59
        $region97: #{custom-call.6} parent=53 // pred_check_branch
          %2961 = sbr.rel (%p2959) target = $region99
        $region98: #{custom-call.6} parent=53 // pred_region
          %p2962 = scmp.lt.s32.totalorder %s15, 0
          %s2963 = ssub.s32 0, %s15
          %s2964 = scalar_select %p2962, %s2963, %s15
          %s2965 = sshrl.u32 %s2964, 3
          %s2966 = ssub.s32 0, %s2965
          %s2967 = scalar_select %p2962, %s2966, %s2965
          %s2968 = smul.addr %s2967, 2
          %s2969 = scalar_lea.vmem %s2, %s2968
          // Predicated region
          $region100: #{custom-call.6} parent=98 // pred_check
            _
          $region101: #{custom-call.6} parent=98 // pred_check_branch
            %2971 = sbr.rel (0) target = $region103
          $region102: #{custom-call.6} parent=98 // pred_region
            // Predicated region
            $region104: #{custom-call.6} parent=102 // pred_check
              _
            $region105: #{custom-call.6} parent=102 // pred_check_branch
              %2973 = sbr.rel target = $region107
            $region106: #{custom-call.6} parent=102 // pred_region
              // Predicated region
              $region119: #{custom-call.6} parent=106 // pred_check
                _
              $region120: #{custom-call.6} parent=106 // pred_check_branch
                %2989 = sbr.rel (0) target = $region122
              $region121: #{custom-call.6} parent=106 // pred_region
                %s2991 = ssub.s32 4, 1
                loop: start=0, step=1, limit=1
                $region123: #{custom-call.6} parent=121 // loop_pre_header
                  _
                $region124: #{custom-call.6} parent=121 // loop_header
                  %s2993 = sphi 0, %s2997
                  %p2994 = scmp.ge.s32.totalorder %s2993, 1
                  %s2998 = sphi %s2795, %s2795
                  %s2999 = sphi %s2969, %s2969
                $region125: #{custom-call.6} parent=121 // loop_header_branch
                  %2996 = sbr.rel (%p2994) target = $region129
                $region126: #{custom-call.6} parent=121 // loop_body
                  %v3000 = vld [vmem:[%s2998] sm:%s2991]
                  %3001 = vst [vmem:[%s2999] sm:%s2991] %v3000
                $region127: #{custom-call.6} parent=121 // loop_footer
                  %s2997 = sadd.s32 1, %s2993
                $region128: #{custom-call.6} parent=121 // loop_footer_branch
                  %2992 = sbr.rel target = $region124
                $region129: #{custom-call.6} parent=121 // loop_exit
                  _
              $region122: #{custom-call.6} parent=106 // pred_fallthru
                _
            $region107: #{custom-call.6} parent=102 // pred_fallthru
              _
            // Predicated region
            $region108: #{custom-call.6} parent=102 // pred_check
              _
            $region109: #{custom-call.6} parent=102 // pred_check_branch
              %2975 = sbr.rel (0) target = $region111
            $region110: #{custom-call.6} parent=102 // pred_region
              %s2977 = ssub.s32 4, 1
              loop: start=0, step=1, limit=1
              $region112: #{custom-call.6} parent=110 // loop_pre_header
                _
              $region113: #{custom-call.6} parent=110 // loop_header
                %s2979 = sphi 0, %s2983
                %p2980 = scmp.ge.s32.totalorder %s2979, 1
                %s2984 = sphi %s2795, %s2795
                %s2985 = sphi %s2969, %s2969
              $region114: #{custom-call.6} parent=110 // loop_header_branch
                %2982 = sbr.rel (%p2980) target = $region118
              $region115: #{custom-call.6} parent=110 // loop_body
                %v2986 = vld [vmem:[%s2984] sm:%s2977]
                %2987 = vst [vmem:[%s2985] sm:%s2977] %v2986
              $region116: #{custom-call.6} parent=110 // loop_footer
                %s2983 = sadd.s32 1, %s2979
              $region117: #{custom-call.6} parent=110 // loop_footer_branch
                %2978 = sbr.rel target = $region113
              $region118: #{custom-call.6} parent=110 // loop_exit
                _
            $region111: #{custom-call.6} parent=102 // pred_fallthru
              _
          $region103: #{custom-call.6} parent=98 // pred_fallthru
            _
          %3002 = vnop
        $region99: #{custom-call.6} parent=53 // pred_fallthru
          _
      $region54: #{custom-call.6} parent=5 // pred_fallthru
        _
      %p3003 = scmp.le.s32.totalorder 2, %s5
      // Predicated region
      $region130: #{custom-call.6} parent=5 // pred_check
        %p3004 = pneg %p3003
      $region131: #{custom-call.6} parent=5 // pred_check_branch
        %3006 = sbr.rel (%p3004) target = $region133
      $region132: #{custom-call.6} parent=5 // pred_region
        %s3007 = ssub.s32 %s5, 2
        %s3008 = sand.u32 %s11, 1
        %s3009 = sand.u32 %s11, 1
        %s3010 = smul.addr %s3009, 256
        %s3011 = scalar_lea.vmem [#allocation1], %s3010
        // Predicated region
        $region134: #{custom-call.6} parent=132 // pred_check
          %p3012 = pneg %p65
        $region135: #{custom-call.6} parent=132 // pred_check_branch
          %3014 = sbr.rel (%p3012) target = $region137
        $region136: #{custom-call.6} parent=132 // pred_region
          %s3015 = sand.u32 %s50, 1
          %s3016 = sand.u32 %s50, 1
          %s3017 = smul.addr %s3016, 2
          %s3018 = scalar_lea.vmem [#allocation3], %s3017
        $region137: #{custom-call.6} parent=132 // pred_fallthru
          _
      $region133: #{custom-call.6} parent=5 // pred_fallthru
        _
    $region6: #{custom-call.6} parent=1 // loop_footer
      %s9 = sadd.s32 1, %s5
    $region7: #{custom-call.6} parent=1 // loop_footer_branch
      %4 = sbr.rel target = $region3
    $region8: #{custom-call.6} parent=1 // loop_exit
      _

// kernel: custom-call.8
$region0: #{custom-call.8}
  %s0 = inlined_call_operand.vmem [shape: f32[2,4,4], index: 0, kind: input, shape index: {}]
  %s1 = inlined_call_operand.vmem [shape: f32[2,4,4], index: 1, kind: output, shape index: {}]
  $region1: #{custom-call.8} parent=0
    #allocation0 [shape = 'u8[4096]{0}', space=vmem, size = 0x1000, scoped, tag = 'operand span for operand 0']
    #allocation1 [shape = 'u8[4096]{0}', space=vmem, size = 0x1000, scoped, tag = 'packed  for operand 0']
    #allocation2 [shape = 'u8[4096]{0}', space=vmem, size = 0x1000, scoped, tag = 'operand span for operand 1']
    #allocation3 [shape = 'u8[4096]{0}', space=vmem, size = 0x1000, scoped, tag = 'packed  for operand 1']
    loop: start=0, step=1, limit=4
    $region2: #{custom-call.8} parent=1 // loop_pre_header
      _
    $region3: #{custom-call.8} parent=1 // loop_header
      %s3 = sphi 0, %s7
      %p4 = scmp.ge.s32.totalorder %s3, 4
    $region4: #{custom-call.8} parent=1 // loop_header_branch
      %6 = sbr.rel (%p4) target = $region8
    $region5: #{custom-call.8} parent=1 // loop_body
      %s8 = ssub.s32 %s3, 1
      %s9 = ssub.s32 %s3, 2
      %s10 = sadd.s32 %s3, 1
      %p11 = scmp.le.s32.totalorder 1, %s3
      %p12 = scmp.lt.s32.totalorder %s3, 3
      %p13 = pnand %p11, %p12
      %p14 = pneg %p13
      // Predicated region
      $region9: #{custom-call.8} parent=5 // pred_check
        _
      $region10: #{custom-call.8} parent=5 // pred_check_branch
        %16 = sbr.rel (%p13) target = $region12
      $region11: #{custom-call.8} parent=5 // pred_region
        %s17 = ssub.s32 %s3, 1
      $region12: #{custom-call.8} parent=5 // pred_fallthru
        _
      %p18 = scmp.lt.s32.totalorder %s3, 2
      // Predicated region
      $region13: #{custom-call.8} parent=5 // pred_check
        %p19 = pneg %p18
      $region14: #{custom-call.8} parent=5 // pred_check_branch
        %21 = sbr.rel (%p19) target = $region16
      $region15: #{custom-call.8} parent=5 // pred_region
        %s22 = sand.u32 %s3, 1
        %s23 = sand.u32 %s3, 1
        %s24 = smul.addr %s23, 4
        %s25 = scalar_lea.vmem [#allocation1], %s24
        %s26 = smul.addr %s3, 4
        %s27 = scalar_lea.vmem %s0, %s26
        // Predicated region
        $region17: #{custom-call.8} parent=15 // pred_check
          _
        $region18: #{custom-call.8} parent=15 // pred_check_branch
          %29 = sbr.rel (0) target = $region20
        $region19: #{custom-call.8} parent=15 // pred_region
          // Predicated region
          $region21: #{custom-call.8} parent=19 // pred_check
            _
          $region22: #{custom-call.8} parent=19 // pred_check_branch
            %31 = sbr.rel target = $region24
          $region23: #{custom-call.8} parent=19 // pred_region
            // Predicated region
            $region36: #{custom-call.8} parent=23 // pred_check
              _
            $region37: #{custom-call.8} parent=23 // pred_check_branch
              %47 = sbr.rel (0) target = $region39
            $region38: #{custom-call.8} parent=23 // pred_region
              %s49 = ssub.s32 16, 1
              loop: start=0, step=1, limit=1
              $region40: #{custom-call.8} parent=38 // loop_pre_header
                _
              $region41: #{custom-call.8} parent=38 // loop_header
                %s51 = sphi 0, %s55
                %p52 = scmp.ge.s32.totalorder %s51, 1
                %s56 = sphi %s27, %s27
                %s57 = sphi %s25, %s25
              $region42: #{custom-call.8} parent=38 // loop_header_branch
                %54 = sbr.rel (%p52) target = $region46
              $region43: #{custom-call.8} parent=38 // loop_body
                %v58 = vld [vmem:[%s56] sm:%s49]
                %59 = vst [vmem:[%s57] sm:%s49] %v58
              $region44: #{custom-call.8} parent=38 // loop_footer
                %s55 = sadd.s32 1, %s51
              $region45: #{custom-call.8} parent=38 // loop_footer_branch
                %50 = sbr.rel target = $region41
              $region46: #{custom-call.8} parent=38 // loop_exit
                _
            $region39: #{custom-call.8} parent=23 // pred_fallthru
              _
          $region24: #{custom-call.8} parent=19 // pred_fallthru
            _
          // Predicated region
          $region25: #{custom-call.8} parent=19 // pred_check
            _
          $region26: #{custom-call.8} parent=19 // pred_check_branch
            %33 = sbr.rel (0) target = $region28
          $region27: #{custom-call.8} parent=19 // pred_region
            %s35 = ssub.s32 16, 1
            loop: start=0, step=1, limit=1
            $region29: #{custom-call.8} parent=27 // loop_pre_header
              _
            $region30: #{custom-call.8} parent=27 // loop_header
              %s37 = sphi 0, %s41
              %p38 = scmp.ge.s32.totalorder %s37, 1
              %s42 = sphi %s27, %s27
              %s43 = sphi %s25, %s25
            $region31: #{custom-call.8} parent=27 // loop_header_branch
              %40 = sbr.rel (%p38) target = $region35
            $region32: #{custom-call.8} parent=27 // loop_body
              %v44 = vld [vmem:[%s42] sm:%s35]
              %45 = vst [vmem:[%s43] sm:%s35] %v44
            $region33: #{custom-call.8} parent=27 // loop_footer
              %s41 = sadd.s32 1, %s37
            $region34: #{custom-call.8} parent=27 // loop_footer_branch
              %36 = sbr.rel target = $region30
            $region35: #{custom-call.8} parent=27 // loop_exit
              _
          $region28: #{custom-call.8} parent=19 // pred_fallthru
            _
        $region20: #{custom-call.8} parent=15 // pred_fallthru
          _
        %60 = vnop
      $region16: #{custom-call.8} parent=5 // pred_fallthru
        _
      %p61 = scmp.le.s32.totalorder 1, %s3
      %p62 = scmp.lt.s32.totalorder %s3, 3
      %p63 = pnand %p61, %p62
      %p64 = pneg %p63
      // Predicated region
      $region47: #{custom-call.8} parent=5 // pred_check
        _
      $region48: #{custom-call.8} parent=5 // pred_check_branch
        %66 = sbr.rel (%p63) target = $region50
      $region49: #{custom-call.8} parent=5 // pred_region
        %s67 = ssub.s32 %s3, 1
        %s68 = sand.u32 %s8, 1
        %s69 = sand.u32 %s8, 1
        %s70 = smul.addr %s69, 4
        %s71 = scalar_lea.vmem [#allocation1], %s70
        %s72 = sand.u32 %s8, 1
        %s73 = sand.u32 %s8, 1
        %s74 = smul.addr %s73, 4
        %s75 = scalar_lea.vmem [#allocation1], %s74
        %s76 = sand.u32 %s8, 1
        %s77 = sand.u32 %s8, 1
        %s78 = smul.addr %s77, 4
        %s79 = scalar_lea.vmem [#allocation3], %s78
        %s81 = ssub.s32 16, 1
        %v82 = vld [vmem:[%s75] sm:%s81]
        %83 = vst [vmem:[#allocation0] sm:%s81] %v82
        %v84 = vlaneseq
        %v85 = vand.u32 %v84, 127
        %v86 = vlaneseq
        %v87 = vshrl.u32 %v86, 7
        %vm89 = vcmp.eq.s32.totalorder %v85, %v87
        %v90 = vld [vmem:[#allocation0] sm:$0xff]
        %v91 = vlaneseq
        %v92 = vand.u32 %v91, 127
        %vm93 = vcmp.eq.s32.totalorder %v92, 0
        %v94 = vsel %vm93, %v90, 1.0
        %v95 = vsel %vm89, %v94, 0.0
        %s96 = scalar_lea.vmem [#allocation0], 1
        %v97 = vld [vmem:[%s96] ss:$0 sm:$0xff]
        %vm98 = vcmask 31744
        %v99 = vsel %vm98, %v97, 0.0
        %v100 = vlaneseq
        %v101 = vand.u32 %v100, 127
        %vm102 = vcmp.eq.s32.totalorder %v101, 1
        %v103 = vmul.f32 %v99, %v95
        %104 = vadd.xlane.f32.xlu0 %v103
        %v105 = vpop.xlane.xlu0 %104
        %v106 = vsel %vm102, %v105, %v95
        %s107 = scalar_lea.vmem [#allocation0], 2
        %v108 = vld [vmem:[%s107] ss:$0 sm:$0xff]
        %vm109 = vcmask 31744
        %v110 = vsel %vm109, %v108, 0.0
        %v111 = vlaneseq
        %v112 = vand.u32 %v111, 127
        %vm113 = vcmp.eq.s32.totalorder %v112, 2
        %v114 = vmul.f32 %v110, %v106
        %115 = vadd.xlane.f32.xlu0 %v114
        %v116 = vpop.xlane.xlu0 %115
        %v117 = vsel %vm113, %v116, %v106
        %s118 = scalar_lea.vmem [#allocation0], 3
        %v119 = vld [vmem:[%s118] ss:$0 sm:$0xff]
        %vm120 = vcmask 31744
        %v121 = vsel %vm120, %v119, 0.0
        %v122 = vlaneseq
        %v123 = vand.u32 %v122, 127
        %vm124 = vcmp.eq.s32.totalorder %v123, 3
        %v125 = vmul.f32 %v121, %v117
        %126 = vadd.xlane.f32.xlu0 %v125
        %v127 = vpop.xlane.xlu0 %126
        %v128 = vsel %vm124, %v127, %v117
        %129 = vst [vmem:[#allocation2] sm:$0xff] %v128
        %s131 = ssub.s32 16, 1
        %v132 = vld [vmem:[#allocation2] sm:%s131]
        %s134 = ssub.s32 16, 1
        %135 = vst [vmem:[%s79] sm:%s134] %v132
        %s136 = sand.u32 %s8, 1
        %s137 = sand.u32 %s8, 1
        %s138 = smul.addr %s137, 4
        %s139 = scalar_lea.vmem [#allocation3], %s138
        %s140 = smul.addr %s8, 4
        %s141 = scalar_lea.vmem %s1, %s140
        // Predicated region
        $region51: #{custom-call.8} parent=49 // pred_check
          _
        $region52: #{custom-call.8} parent=49 // pred_check_branch
          %143 = sbr.rel (0) target = $region54
        $region53: #{custom-call.8} parent=49 // pred_region
          // Predicated region
          $region55: #{custom-call.8} parent=53 // pred_check
            _
          $region56: #{custom-call.8} parent=53 // pred_check_branch
            %145 = sbr.rel target = $region58
          $region57: #{custom-call.8} parent=53 // pred_region
            // Predicated region
            $region70: #{custom-call.8} parent=57 // pred_check
              _
            $region71: #{custom-call.8} parent=57 // pred_check_branch
              %161 = sbr.rel (0) target = $region73
            $region72: #{custom-call.8} parent=57 // pred_region
              %s163 = ssub.s32 16, 1
              loop: start=0, step=1, limit=1
              $region74: #{custom-call.8} parent=72 // loop_pre_header
                _
              $region75: #{custom-call.8} parent=72 // loop_header
                %s165 = sphi 0, %s169
                %p166 = scmp.ge.s32.totalorder %s165, 1
                %s170 = sphi %s139, %s139
                %s171 = sphi %s141, %s141
              $region76: #{custom-call.8} parent=72 // loop_header_branch
                %168 = sbr.rel (%p166) target = $region80
              $region77: #{custom-call.8} parent=72 // loop_body
                %v172 = vld [vmem:[%s170] sm:%s163]
                %173 = vst [vmem:[%s171] sm:%s163] %v172
              $region78: #{custom-call.8} parent=72 // loop_footer
                %s169 = sadd.s32 1, %s165
              $region79: #{custom-call.8} parent=72 // loop_footer_branch
                %164 = sbr.rel target = $region75
              $region80: #{custom-call.8} parent=72 // loop_exit
                _
            $region73: #{custom-call.8} parent=57 // pred_fallthru
              _
          $region58: #{custom-call.8} parent=53 // pred_fallthru
            _
          // Predicated region
          $region59: #{custom-call.8} parent=53 // pred_check
            _
          $region60: #{custom-call.8} parent=53 // pred_check_branch
            %147 = sbr.rel (0) target = $region62
          $region61: #{custom-call.8} parent=53 // pred_region
            %s149 = ssub.s32 16, 1
            loop: start=0, step=1, limit=1
            $region63: #{custom-call.8} parent=61 // loop_pre_header
              _
            $region64: #{custom-call.8} parent=61 // loop_header
              %s151 = sphi 0, %s155
              %p152 = scmp.ge.s32.totalorder %s151, 1
              %s156 = sphi %s139, %s139
              %s157 = sphi %s141, %s141
            $region65: #{custom-call.8} parent=61 // loop_header_branch
              %154 = sbr.rel (%p152) target = $region69
            $region66: #{custom-call.8} parent=61 // loop_body
              %v158 = vld [vmem:[%s156] sm:%s149]
              %159 = vst [vmem:[%s157] sm:%s149] %v158
            $region67: #{custom-call.8} parent=61 // loop_footer
              %s155 = sadd.s32 1, %s151
            $region68: #{custom-call.8} parent=61 // loop_footer_branch
              %150 = sbr.rel target = $region64
            $region69: #{custom-call.8} parent=61 // loop_exit
              _
          $region62: #{custom-call.8} parent=53 // pred_fallthru
            _
        $region54: #{custom-call.8} parent=49 // pred_fallthru
          _
        %174 = vnop
      $region50: #{custom-call.8} parent=5 // pred_fallthru
        _
      %p175 = scmp.le.s32.totalorder 2, %s3
      // Predicated region
      $region81: #{custom-call.8} parent=5 // pred_check
        %p176 = pneg %p175
      $region82: #{custom-call.8} parent=5 // pred_check_branch
        %178 = sbr.rel (%p176) target = $region84
      $region83: #{custom-call.8} parent=5 // pred_region
        %s179 = ssub.s32 %s3, 2
        %s180 = sand.u32 %s9, 1
        %s181 = sand.u32 %s9, 1
        %s182 = smul.addr %s181, 4
        %s183 = scalar_lea.vmem [#allocation3], %s182
      $region84: #{custom-call.8} parent=5 // pred_fallthru
        _
    $region6: #{custom-call.8} parent=1 // loop_footer
      %s7 = sadd.s32 1, %s3
    $region7: #{custom-call.8} parent=1 // loop_footer_branch
      %2 = sbr.rel target = $region3
    $region8: #{custom-call.8} parent=1 // loop_exit
      _

// kernel: _powersvd_forward.2
$region0: #{_powersvd_forward.2}
  #allocation0 [shape = 'u32[]', space=smem, size = 0x4, offset = 0x4, fixed_abs, tag = 'smem constant byte address 0x4 - core index']
  #allocation1 [shape = 'u32[72,128]{1,0:T(1,128)}', space=vmem, size = 0x9000, scoped, tag = 'internal scratch']
  %s0 = inlined_call_operand.vmem [shape: bf16[2,4,256], index: 0, kind: input, shape index: {}]
  %s1 = inlined_call_operand.vmem [shape: f32[2,4,256], index: 1, kind: input, shape index: {}, may-alias: {1,3}]
  %s2 = inlined_call_operand.hbm [shape: f32[2,4,4], index: 2, kind: output, shape index: {0}]
  %s3 = inlined_call_operand.vmem [shape: f32[2,4,256], index: 3, kind: output, shape index: {1}, may-alias: {1,3}]
  %4 = xla_tuple %s2, %s3
  %s5 = sld [smem:[#allocation0]]
  $region49: #{_powersvd_forward.2} parent=0
    _
  %s7 = ssub.s32 1, %s5
  %s8 = scalar_select 0, %s7, %s5
  $region1: #{_powersvd_forward.2} parent=0
    #allocation2 [shape = 'u8[4096]{0}', space=vmem, size = 0x1000, scoped, tag = 'output window, operand 0']
    #allocation3 [shape = 's32[2]{0}', space=sflag, size = 0x8, scoped, tag = 'scoped memory for _powersvd_forward.2']
    %9 = vsyncpa [#allocation3], 0
    %s10 = scalar_lea.sflag [#allocation3], 1
    %11 = vsyncpa %s10, 0
    loop: start=0, step=1, limit=4
    $region2: #{_powersvd_forward.2} parent=1 // loop_pre_header
      _
    $region3: #{_powersvd_forward.2} parent=1 // loop_header
      %s13 = sphi 0, %s17
      %p14 = scmp.ge.s32.totalorder %s13, 4
      %s23 = sphi 0, %s25
      %s26 = sphi 0, %s23
      %s27 = sphi 0, %s26
      %s43 = sphi 0, %s27
      %s49 = sphi 0, %s51
      %s52 = sphi 0, %s49
      %s53 = sphi 0, %s52
      %s69 = sphi 0, %s53
      %s75 = sphi 0, %s77
      %s78 = sphi 0, %s75
      %s79 = sphi 0, %s78
      %s95 = sphi 0, %s79
      %s101 = sphi 0, %s103
      %s104 = sphi 0, %s101
      %s105 = sphi 0, %s104
      %s121 = sphi 0, %s105
    $region4: #{_powersvd_forward.2} parent=1 // loop_header_branch
      %16 = sbr.rel (%p14) target = $region8
    $region5: #{_powersvd_forward.2} parent=1 // loop_body
      %s18 = ssub.s32 %s13, 1
      %s19 = ssub.s32 %s13, 2
      %s20 = sadd.s32 %s13, 1
      %s21 = ssub.s32 %s13, %s20
      %p22 = scmp.eq.s32.totalorder %s21, 0
      %s24 = sadd.s32 %s23, 1
      %s25 = scalar_select %p22, %s23, %s24
      %p28 = pneg %p22
      %p29 = scmp.eq.s32.totalorder %s13, 1
      %p30 = por %p28, %p29
      %p31 = scmp.ne.s32.totalorder %s23, %s26
      %p32 = scmp.eq.s32.totalorder %s13, 0
      %p33 = por %p31, %p32
      %p34 = scmp.ne.s32.totalorder %s23, %s26
      %p35 = scmp.eq.s32.totalorder %s18, 1
      %p36 = por %p34, %p35
      %p37 = scmp.ne.s32.totalorder %s26, %s27
      %p38 = scmp.eq.s32.totalorder %s18, 0
      %p39 = por %p37, %p38
      %p40 = scmp.ne.s32.totalorder %s26, %s27
      %p41 = scmp.eq.s32.totalorder %s19, 1
      %p42 = por %p40, %p41
      %p44 = scmp.ne.s32.totalorder %s27, %s43
      %p45 = scmp.eq.s32.totalorder %s19, 0
      %p46 = por %p44, %p45
      %s47 = ssub.s32 %s13, %s20
      %p48 = scmp.eq.s32.totalorder %s47, 0
      %s50 = sadd.s32 %s49, 1
      %s51 = scalar_select %p48, %s49, %s50
      %p54 = pneg %p48
      %p55 = scmp.eq.s32.totalorder %s13, 1
      %p56 = por %p54, %p55
      %p57 = scmp.ne.s32.totalorder %s49, %s52
      %p58 = scmp.eq.s32.totalorder %s13, 0
      %p59 = por %p57, %p58
      %p60 = scmp.ne.s32.totalorder %s49, %s52
      %p61 = scmp.eq.s32.totalorder %s18, 1
      %p62 = por %p60, %p61
      %p63 = scmp.ne.s32.totalorder %s52, %s53
      %p64 = scmp.eq.s32.totalorder %s18, 0
      %p65 = por %p63, %p64
      %p66 = scmp.ne.s32.totalorder %s52, %s53
      %p67 = scmp.eq.s32.totalorder %s19, 1
      %p68 = por %p66, %p67
      %p70 = scmp.ne.s32.totalorder %s53, %s69
      %p71 = scmp.eq.s32.totalorder %s19, 0
      %p72 = por %p70, %p71
      %s73 = ssub.s32 %s13, %s20
      %p74 = scmp.eq.s32.totalorder %s73, 0
      %s76 = sadd.s32 %s75, 1
      %s77 = scalar_select %p74, %s75, %s76
      %p80 = pneg %p74
      %p81 = scmp.eq.s32.totalorder %s13, 1
      %p82 = por %p80, %p81
      %p83 = scmp.ne.s32.totalorder %s75, %s78
      %p84 = scmp.eq.s32.totalorder %s13, 0
      %p85 = por %p83, %p84
      %p86 = scmp.ne.s32.totalorder %s75, %s78
      %p87 = scmp.eq.s32.totalorder %s18, 1
      %p88 = por %p86, %p87
      %p89 = scmp.ne.s32.totalorder %s78, %s79
      %p90 = scmp.eq.s32.totalorder %s18, 0
      %p91 = por %p89, %p90
      %p92 = scmp.ne.s32.totalorder %s78, %s79
      %p93 = scmp.eq.s32.totalorder %s19, 1
      %p94 = por %p92, %p93
      %p96 = scmp.ne.s32.totalorder %s79, %s95
      %p97 = scmp.eq.s32.totalorder %s19, 0
      %p98 = por %p96, %p97
      %s99 = ssub.s32 %s13, %s20
      %p100 = scmp.eq.s32.totalorder %s99, 0
      %s102 = sadd.s32 %s101, 1
      %s103 = scalar_select %p100, %s101, %s102
      %p106 = pneg %p100
      %p107 = scmp.eq.s32.totalorder %s13, 1
      %p108 = por %p106, %p107
      %p109 = scmp.ne.s32.totalorder %s101, %s104
      %p110 = scmp.eq.s32.totalorder %s13, 0
      %p111 = por %p109, %p110
      %p112 = scmp.ne.s32.totalorder %s101, %s104
      %p113 = scmp.eq.s32.totalorder %s18, 1
      %p114 = por %p112, %p113
      %p115 = scmp.ne.s32.totalorder %s104, %s105
      %p116 = scmp.eq.s32.totalorder %s18, 0
      %p117 = por %p115, %p116
      %p118 = scmp.ne.s32.totalorder %s104, %s105
      %p119 = scmp.eq.s32.totalorder %s19, 1
      %p120 = por %p118, %p119
      %p122 = scmp.ne.s32.totalorder %s105, %s121
      %p123 = scmp.eq.s32.totalorder %s19, 0
      %p124 = por %p122, %p123
      %p125 = scmp.le.s32.totalorder 1, %s13
      %p126 = scmp.lt.s32.totalorder %s13, 3
      %p127 = pnand %p125, %p126
      %p128 = pneg %p127
      // Predicated region
      $region9: #{_powersvd_forward.2} parent=5 // pred_check
        _
      $region10: #{_powersvd_forward.2} parent=5 // pred_check_branch
        %130 = sbr.rel (%p127) target = $region12
      $region11: #{_powersvd_forward.2} parent=5 // pred_region
        %s131 = ssub.s32 %s13, 1
      $region12: #{_powersvd_forward.2} parent=5 // pred_fallthru
        _
      %p132 = scmp.lt.s32.totalorder %s13, 2
      // Predicated region
      $region13: #{_powersvd_forward.2} parent=5 // pred_check
        %p133 = pneg %p132
      $region14: #{_powersvd_forward.2} parent=5 // pred_check_branch
        %135 = sbr.rel (%p133) target = $region16
      $region15: #{_powersvd_forward.2} parent=5 // pred_region
        // Predicated region
        $region17: #{_powersvd_forward.2} parent=15 // pred_check
          %p136 = pneg %p33
        $region18: #{_powersvd_forward.2} parent=15 // pred_check_branch
          %138 = sbr.rel (%p136) target = $region20
        $region19: #{_powersvd_forward.2} parent=15 // pred_region
          %p139 = scmp.lt.s32.totalorder %s13, 1
          %s140 = scalar_select %p139, %s13, 1
          %s141 = smul.addr %s140, 2
          %s142 = smul.addr %s141, 2
          %s143 = scalar_lea.vmem %s0, %s142
        $region20: #{_powersvd_forward.2} parent=15 // pred_fallthru
          _
        // Predicated region
        $region21: #{_powersvd_forward.2} parent=15 // pred_check
          %p144 = pneg %p59
        $region22: #{_powersvd_forward.2} parent=15 // pred_check_branch
          %146 = sbr.rel (%p144) target = $region24
        $region23: #{_powersvd_forward.2} parent=15 // pred_region
          %p147 = scmp.lt.s32.totalorder %s13, 1
          %s148 = scalar_select %p147, %s13, 1
          %s149 = smul.addr %s148, 2
          %s150 = smul.addr %s149, 4
          %s151 = scalar_lea.vmem %s1, %s150
        $region24: #{_powersvd_forward.2} parent=15 // pred_fallthru
          _
      $region16: #{_powersvd_forward.2} parent=5 // pred_fallthru
        _
      %p152 = scmp.le.s32.totalorder 1, %s13
      %p153 = scmp.lt.s32.totalorder %s13, 3
      %p154 = pnand %p152, %p153
      %p155 = pneg %p154
      // Predicated region
      $region25: #{_powersvd_forward.2} parent=5 // pred_check
        _
      $region26: #{_powersvd_forward.2} parent=5 // pred_check_branch
        %157 = sbr.rel (%p154) target = $region28
      $region27: #{_powersvd_forward.2} parent=5 // pred_region
        %s158 = ssub.s32 %s13, 1
        %p159 = scmp.lt.s32.totalorder %s18, 1
        %s160 = scalar_select %p159, %s18, 1
        %s161 = smul.addr %s160, 2
        %s162 = smul.addr %s161, 2
        %s163 = scalar_lea.vmem %s0, %s162
        %p164 = pneg %p39
        %p165 = pneg %p36
        %p166 = scmp.lt.s32.totalorder %s18, 1
        %s167 = scalar_select %p166, %s18, 1
        %s168 = smul.addr %s167, 2
        %s169 = smul.addr %s168, 4
        %s170 = scalar_lea.vmem %s1, %s169
        %p171 = pneg %p65
        %p172 = pneg %p62
        %p173 = pneg %p91
        %p174 = pneg %p88
        %s175 = sand.u32 %s78, 1
        %s176 = scalar_lea.sflag [#allocation3], %s175
        %s177 = sand.u32 %s78, 1
        %s178 = smul.addr %s177, 4
        %s179 = scalar_lea.vmem [#allocation2], %s178
        %p180 = pneg %p117
        %p181 = pneg %p114
        %p182 = scmp.lt.s32.totalorder %s18, 1
        %s183 = scalar_select %p182, %s18, 1
        %s184 = smul.addr %s183, 2
        %s185 = smul.addr %s184, 4
        %s186 = scalar_lea.vmem %s3, %s185
        %p187 = scmp.lt.s32.totalorder %s18, 1
        %s188 = scalar_select %p187, %s18, 1
        %s189 = smul.addr %s188, 2
        %s190 = smul.addr %s189, 2
        %s191 = scalar_lea.vmem %s0, %s190
        %p192 = scmp.lt.s32.totalorder %s18, 1
        %s193 = scalar_select %p192, %s18, 1
        %s194 = smul.addr %s193, 2
        %s195 = smul.addr %s194, 4
        %s196 = scalar_lea.vmem %s1, %s195
        %p197 = scmp.lt.s32.totalorder %s18, 1
        %s198 = scalar_select %p197, %s18, 1
        %s199 = smul.addr %s198, 2
        %s200 = smul.addr %s199, 4
        %s201 = scalar_lea.vmem %s3, %s200
        %v203 = vld [vmem:[%s191] sm:$0xf]
        %v204 = vld [vmem:[%s196] sm:$0xff]
        %206 = vst [vmem:[#allocation1] ss:$2 sm:$0xff] %v204
        %v207 = vld.sshfl [vmem:[#allocation1] sm:$0xff pattern:$0x75316420]
        %v208 = vld.sshfl [vmem:[#allocation1 + $0x8] sm:$0xff pattern:$0x75316420]
        %v211 = vpack.c.bf16 %v207, %v207
        %v212 = vpack.c.bf16 %v208, %v208
        %214 = vst [vmem:[#allocation1] ss:$4 sm:$0xff] %v203
        %v215 = vld.sshfl [vmem:[#allocation1] sm:$0xff pattern:$0x73625140]
        %v216 = vld.sshfl [vmem:[#allocation1 + $0x8] sm:$0xff pattern:$0x73625140]
        %219 = vmatpush.bf16.xpose.msra.mxu0 0
        %220 = vmatpush.bf16.xpose.msra.mxu0 0
        %221 = vmatpush.bf16.xpose.msra.mxu0 0
        %222 = vmatpush.bf16.xpose.msra.mxu0 0
        %223 = vmatpush.bf16.xpose.msra.mxu0 0
        %224 = vmatpush.bf16.xpose.msra.mxu0 0
        %225 = vmatpush.bf16.xpose.msra.mxu0 0
        %226 = vmatpush.bf16.xpose.msra.mxu0 %v211
        %227 = vmatmul.bf16.gmra.mxu0 %v215
        %v228 = vpop.f32.mrf.mxu0
        %v229 = vadd.f32 0.0, %v228
        %v230 = vpop.f32.mrf.mxu0
        %231 = vdwg.mxu0
        %232 = vmatpush.bf16.xpose.msra.mxu0 0
        %233 = vmatpush.bf16.xpose.msra.mxu0 0
        %234 = vmatpush.bf16.xpose.msra.mxu0 0
        %235 = vmatpush.bf16.xpose.msra.mxu0 0
        %236 = vmatpush.bf16.xpose.msra.mxu0 0
        %237 = vmatpush.bf16.xpose.msra.mxu0 0
        %238 = vmatpush.bf16.xpose.msra.mxu0 0
        %239 = vmatpush.bf16.xpose.msra.mxu0 %v212
        %240 = vmatmul.bf16.gmra.mxu0 %v216
        %v241 = vpop.f32.mrf.mxu0
        %v242 = vadd.f32 %v229, %v241
        %v243 = vpop.f32.mrf.mxu0
        %244 = vdwg.mxu0
        %v245 = vpack.c.bf16 %v242, %v242
        %246 = vxpose.xlu0.c.b16.start [1/8] %v245, 128
        %247 = vxpose.xlu0.c.b16.cont [2/8] 0, 128
        %248 = vxpose.xlu0.c.b16.cont [3/8] 0, 128
        %249 = vxpose.xlu0.c.b16.cont [4/8] 0, 128
        %250 = vxpose.xlu0.c.b16.cont [5/8] 0, 128
        %251 = vxpose.xlu0.c.b16.cont [6/8] 0, 128
        %252 = vxpose.xlu0.c.b16.cont [7/8] 0, 128
        %253 = vxpose.xlu0.c.b16.end [8/8] 0, 128
        %v254 = vpop.trf.xlu0
        %v255 = vpop.trf.xlu0
        %v256 = vpop.trf.xlu0
        %v257 = vpop.trf.xlu0
        %v258 = vpop.trf.xlu0
        %v259 = vpop.trf.xlu0
        %v260 = vpop.trf.xlu0
        %v261 = vpop.trf.xlu0
        %262 = vst [vmem:[#allocation1] ss:$4 sm:$0xff] %v203
        %v263 = vld.sshfl [vmem:[#allocation1] sm:$0xff pattern:$0x73625140]
        %v264 = vld.sshfl [vmem:[#allocation1 + $0x8] sm:$0xff pattern:$0x73625140]
        %vm265 = vcmask 31744
        %v267 = vsel %vm265, %v254, 0
        %vm269 = vcmask 1041408
        %v270 = vsel %vm269, %v263, 0
        %v272 = vsel %vm269, %v264, 0
        %274 = vmatpush.bf16.msra.mxu0 0
        %275 = vmatpush.bf16.msra.mxu0 0
        %276 = vmatpush.bf16.msra.mxu0 0
        %277 = vmatpush.bf16.msra.mxu0 0
        %278 = vmatpush.bf16.msra.mxu0 0
        %279 = vmatpush.bf16.msra.mxu0 0
        %280 = vmatpush.bf16.msra.mxu0 0
        %281 = vmatpush.bf16.msra.mxu0 %v270
        %282 = vmatmul.bf16.gmra.mxu0 %v267
        %v283 = vpop.f32.mrf.mxu0
        %v284 = vadd.f32 0.0, %v283
        %v285 = vpop.f32.mrf.mxu0
        %286 = vdwg.mxu0
        %287 = vmatpush.bf16.msra.mxu0 0
        %288 = vmatpush.bf16.msra.mxu0 0
        %289 = vmatpush.bf16.msra.mxu0 0
        %290 = vmatpush.bf16.msra.mxu0 0
        %291 = vmatpush.bf16.msra.mxu0 0
        %292 = vmatpush.bf16.msra.mxu0 0
        %293 = vmatpush.bf16.msra.mxu0 0
        %294 = vmatpush.bf16.msra.mxu0 %v272
        %295 = vmatmul.bf16.gmra.mxu0 %v267
        %v296 = vpop.f32.mrf.mxu0
        %v297 = vadd.f32 0.0, %v296
        %v298 = vpop.f32.mrf.mxu0
        %299 = vdwg.mxu0
        %vm300 = vcmask 27648
        %301 = vst.msk [vmem:[%s179] sm:$0xf] %vm300, %v242
        %v304 = vrot.slane %v297, 4
        %vm305 = vcmask 1043456
        %v306 = vsel %vm305, %v284, %v304
        %308 = vst [vmem:[%s201] sm:$0xff] %v306
        %s309 = sand.u32 %s78, 1
        %s310 = scalar_lea.sflag [#allocation3], %s309
        %s311 = sand.u32 %s78, 1
        %s312 = smul.addr %s311, 4
        %s313 = scalar_lea.vmem [#allocation2], %s312
        %p314 = scmp.lt.s32.totalorder %s18, 1
        %s315 = scalar_select %p314, %s18, 1
        %s316 = smul.addr %s315, 2
        %s317 = smul.addr %s316, 4
        %s318 = scalar_lea.vmem %s3, %s317
        // Predicated region
        $region29: #{_powersvd_forward.2} parent=27 // pred_check
          %p319 = pneg %p88
        $region30: #{_powersvd_forward.2} parent=27 // pred_check_branch
          %321 = sbr.rel (%p319) target = $region32
        $region31: #{_powersvd_forward.2} parent=27 // pred_region
          %323 = vsyncadd %s310, 0
          %s324 = smul.addr %s18, 4
          %s325 = scalar_lea.hbm %s2, %s324
          %s327 = sshll.u32 %s313, 4
          %s328 = int_to_ptr.vmem [resolvable:$true] %s327
          %s329 = sshll.u32 %s325, 4
          %s330 = int_to_ptr.hbm [resolvable:$true] %s329
          %332 = dma.vmem_to_hbm [thread:$0]  %s328, 64, %s330, %s310
        $region32: #{_powersvd_forward.2} parent=27 // pred_fallthru
          _
        // Predicated region
        $region33: #{_powersvd_forward.2} parent=27 // pred_check
          %p333 = pneg %p114
        $region34: #{_powersvd_forward.2} parent=27 // pred_check_branch
          %335 = sbr.rel (%p333) target = $region36
        $region35: #{_powersvd_forward.2} parent=27 // pred_region
          _
        $region36: #{_powersvd_forward.2} parent=27 // pred_fallthru
          _
      $region28: #{_powersvd_forward.2} parent=5 // pred_fallthru
        _
      %p336 = scmp.le.s32.totalorder 2, %s13
      // Predicated region
      $region37: #{_powersvd_forward.2} parent=5 // pred_check
        %p337 = pneg %p336
      $region38: #{_powersvd_forward.2} parent=5 // pred_check_branch
        %339 = sbr.rel (%p337) target = $region40
      $region39: #{_powersvd_forward.2} parent=5 // pred_region
        %s340 = ssub.s32 %s13, 2
        // Predicated region
        $region41: #{_powersvd_forward.2} parent=39 // pred_check
          %p341 = pneg %p94
        $region42: #{_powersvd_forward.2} parent=39 // pred_check_branch
          %343 = sbr.rel (%p341) target = $region44
        $region43: #{_powersvd_forward.2} parent=39 // pred_region
          %s344 = sand.u32 %s79, 1
          %s345 = scalar_lea.sflag [#allocation3], %s344
          %s346 = sand.u32 %s79, 1
          %s347 = smul.addr %s346, 4
          %s348 = scalar_lea.vmem [#allocation2], %s347
          %350 = dma.done %s345, 64
        $region44: #{_powersvd_forward.2} parent=39 // pred_fallthru
          _
        // Predicated region
        $region45: #{_powersvd_forward.2} parent=39 // pred_check
          %p351 = pneg %p120
        $region46: #{_powersvd_forward.2} parent=39 // pred_check_branch
          %353 = sbr.rel (%p351) target = $region48
        $region47: #{_powersvd_forward.2} parent=39 // pred_region
          %p354 = scmp.lt.s32.totalorder %s19, 1
          %s355 = scalar_select %p354, %s19, 1
          %s356 = smul.addr %s355, 2
          %s357 = smul.addr %s356, 4
          %s358 = scalar_lea.vmem %s3, %s357
        $region48: #{_powersvd_forward.2} parent=39 // pred_fallthru
          _
      $region40: #{_powersvd_forward.2} parent=5 // pred_fallthru
        _
    $region6: #{_powersvd_forward.2} parent=1 // loop_footer
      %s17 = sadd.s32 1, %s13
    $region7: #{_powersvd_forward.2} parent=1 // loop_footer_branch
      %12 = sbr.rel target = $region3
    $region8: #{_powersvd_forward.2} parent=1 // loop_exit
      _
    %359 = vsyncpa [#allocation3], 1
    %s360 = scalar_lea.sflag [#allocation3], 1
    %361 = vsyncpa %s360, 1

</llo_original>
